<compile_context>
chip_gen: v5e
topology: v5e:2x2
jax: 0.10.0
libtpu: 0.0.40
codegen_flags: <defaults>
</compile_context>

<pallas_src>
from functools import partial

import jax
import jax.numpy as jnp
from jax.experimental import pallas as pl
from jax.experimental.pallas import tpu as pltpu


NPAD = 128    # lane padding for the fully connected dims
GRID = 256    # flattened 16x16 position grid used by both conv stages
PAD_W = 384   # position grid padded so shifted (conv-tap) reads stay in bounds


# ----------------------------------------------------------------------------
# Fused kernel: whole LeNet forward for one block of BB images.
# ----------------------------------------------------------------------------
def _lenet_kernel(x_ref, w1_ref, b1_ref, w2_ref, b2_ref,
                  wf1_ref, bf1_ref, wf2_ref, bf2_ref, wf3_ref, bf3_ref,
                  o_ref, cols1, pooled1, cols2, fcin):
    f32 = jnp.float32
    BB = x_ref.shape[0]

    # conv2 reads shifted windows of pooled1; keep the never-written tail finite.
    pooled1[:, :, GRID:PAD_W] = jnp.zeros((BB, 8, PAD_W - GRID), f32)

    # ---- conv1 im2col: extended 6x6 tap grid over the parity-split image. -----
    # Tap (a,b) reads parity plane (a%2, b%2) at constant lane shift
    # (a//2)*16 + (b//2); all 4 pool quadrants share these 36 slices.
    for a in range(6):
        for b in range(6):
            t = a * 6 + b
            qin = (a % 2) * 2 + (b % 2)
            shift = (a // 2) * 16 + (b // 2)
            cols1[:, t * 8:(t + 1) * 8, :] = x_ref[:, qin, :, shift:shift + GRID]

    # ---- conv1 + bias + ReLU + 2x2 maxpool (one GEMM per image). --------------
    # w1_ref stacks the 4 pool-quadrant weight matrices along M (4 x 8 rows).
    for i in range(BB):
        y = jnp.dot(w1_ref[...], cols1[i], preferred_element_type=f32)   # (32,256)
        m = jnp.maximum(jnp.maximum(y[0:8], y[8:16]),
                        jnp.maximum(y[16:24], y[24:32]))                 # (8,256)
        pooled1[i, :, 0:GRID] = jnp.maximum(m + b1_ref[...], 0.0)

    # ---- conv2 im2col: 36 constant-shift slices of the pooled conv1 map. ------
    for a in range(6):
        for b in range(6):
            t = a * 6 + b
            shift = a * 16 + b
            cols2[:, t * 8:(t + 1) * 8, :] = pooled1[:, :, shift:shift + GRID]

    # ---- conv2 + bias + ReLU + 2x2 maxpool (one GEMM per image). --------------
    for i in range(BB):
        y = jnp.dot(w2_ref[...], cols2[i], preferred_element_type=f32)   # (64,256)
        m = jnp.maximum(jnp.maximum(y[0:16], y[16:32]),
                        jnp.maximum(y[32:48], y[48:64]))                 # (16,256)
        fcin[i] = jnp.maximum(m + b2_ref[...], 0.0)

    # ---- classifier, batched over the BB images (M = BB). ---------------------
    # fc1 contracts (channel, lane); weights are zero except at the 25 valid
    # pooled lanes of each channel -> 16 GEMMs of (BB,256)@(256,128).
    acc = jnp.dot(fcin[:, 0, :], wf1_ref[0], preferred_element_type=f32)
    for c in range(1, 16):
        acc = acc + jnp.dot(fcin[:, c, :], wf1_ref[c], preferred_element_type=f32)
    h = jnp.maximum(acc + bf1_ref[...], 0.0)
    h = jnp.maximum(jnp.dot(h, wf2_ref[...], preferred_element_type=f32)
                    + bf2_ref[...], 0.0)
    out = jnp.dot(h, wf3_ref[...], preferred_element_type=f32) + bf3_ref[...]
    o_ref[:, 0, :] = out


# ----------------------------------------------------------------------------
# Trace-time (XLA) layout prep: tiny, no data expansion.
# ----------------------------------------------------------------------------
def _parity_split(x):
    """(B,3,32,32) -> (B,4,8,384): 4 (row,col)-parity planes, channels zero-padded
    to 8, each plane flattened on a 16-lane-stride grid and lane-padded to 384."""
    B = x.shape[0]
    xc = jnp.pad(x, ((0, 0), (0, 5), (0, 0), (0, 0)))                 # (B,8,32,32)
    xp = xc.reshape(B, 8, 16, 2, 16, 2).transpose(0, 3, 5, 1, 2, 4)   # (B,2,2,8,16,16)
    xp = xp.reshape(B, 4, 8, GRID)
    return jnp.pad(xp, ((0, 0), (0, 0), (0, 0), (0, PAD_W - GRID)))


def _quadrant_conv_weights(w, m_pad):
    """(O,Cin,5,5) -> (4*m_pad, 288): 4 pool-quadrant weight matrices stacked on M;
    column index is (a*6+b)*8 + c over the extended 6x6 tap grid / 8 channels."""
    O, C = w.shape[0], w.shape[1]
    wc = jnp.pad(w, ((0, 0), (0, 8 - C), (0, 0), (0, 0)))             # (O,8,5,5)
    blocks = []
    for dh in (0, 1):
        for dw in (0, 1):
            wq = jnp.pad(wc, ((0, 0), (0, 0), (dh, 1 - dh), (dw, 1 - dw)))  # (O,8,6,6)
            blk = wq.transpose(0, 2, 3, 1).reshape(O, 288)
            blocks.append(jnp.pad(blk, ((0, m_pad - O), (0, 0))))
    return jnp.concatenate(blocks, axis=0)


def _fc1_weights(wf1):
    """(120,400) -> (16,256,128): weight rows scattered to lane 32*i2 + 2*j2 of each
    conv2-channel block, so fc1 reads the pooled conv2 map in place (zeros elsewhere)."""
    wt = jnp.pad(wf1.T, ((0, 0), (0, NPAD - 120)))                    # (400,128)
    wt = wt.reshape(16, 25, NPAD)
    pos = jnp.arange(25)
    lanes = 32 * (pos // 5) + 2 * (pos % 5)
    return jnp.zeros((16, GRID, NPAD), jnp.float32).at[:, lanes, :].set(wt)


def _pick_block(batch):
    bb = min(8, batch)
    if batch >= 2:      # keep >= 2 grid steps so v7x's two TensorCores both get work
        bb = min(bb, max(1, batch // 2))
    return max(1, bb)


# ----------------------------------------------------------------------------
# LeNetSequential forward (1 pallas_call)
# ----------------------------------------------------------------------------
def lenet_forward(x, params, classes):
    (w1, b1, w2, b2, wf1, bf1, wf2, bf2, wf3, bf3) = params
    B = x.shape[0]
    assert x.shape[1:] == (3, 32, 32), x.shape
    assert classes <= NPAD

    BB = _pick_block(B)
    Bp = ((B + BB - 1) // BB) * BB
    if Bp != B:
        x = jnp.pad(x, ((0, Bp - B), (0, 0), (0, 0), (0, 0)))

    xp = _parity_split(x)                                             # (Bp,4,8,384)

    # Trace-time weight prep (all tiny).
    w1q = _quadrant_conv_weights(w1, 8)                               # (32,288)
    w2q = _quadrant_conv_weights(w2, 16)                              # (64,288)
    b1p = jnp.pad(b1, (0, 2)).reshape(8, 1)
    b2c = b2.reshape(16, 1)
    wf1c = _fc1_weights(wf1)                                          # (16,256,128)
    bf1p = jnp.pad(bf1, (0, NPAD - 120)).reshape(1, NPAD)
    wf2p = jnp.pad(wf2.T, ((0, NPAD - 120), (0, NPAD - 84)))
    bf2p = jnp.pad(bf2, (0, NPAD - 84)).reshape(1, NPAD)
    wf3p = jnp.pad(wf3.T, ((0, NPAD - 84), (0, NPAD - classes)))
    bf3p = jnp.pad(bf3, (0, NPAD - classes)).reshape(1, NPAD)

    flops_img = (2 * 32 * 288 * GRID + 2 * 64 * 288 * GRID
                 + 2 * 16 * GRID * NPAD + 2 * 2 * NPAD * NPAD)
    weight_bytes = 4 * (w1q.size + w2q.size + wf1c.size + wf2p.size + wf3p.size)
    cost = pl.CostEstimate(flops=Bp * flops_img, transcendentals=0,
                           bytes_accessed=int(4 * xp.size + 4 * Bp * NPAD
                                              + weight_bytes))

    const2 = lambda i: (0, 0)
    out_pad = pl.pallas_call(
        _lenet_kernel,
        out_shape=jax.ShapeDtypeStruct((Bp, 1, NPAD), jnp.float32),
        grid=(Bp // BB,),
        in_specs=[
            pl.BlockSpec((BB, 4, 8, PAD_W), lambda i: (i, 0, 0, 0)),
            pl.BlockSpec((32, 288), const2),
            pl.BlockSpec((8, 1), const2),
            pl.BlockSpec((64, 288), const2),
            pl.BlockSpec((16, 1), const2),
            pl.BlockSpec((16, GRID, NPAD), lambda i: (0, 0, 0)),
            pl.BlockSpec((1, NPAD), const2),
            pl.BlockSpec((NPAD, NPAD), const2),
            pl.BlockSpec((1, NPAD), const2),
            pl.BlockSpec((NPAD, NPAD), const2),
            pl.BlockSpec((1, NPAD), const2),
        ],
        out_specs=pl.BlockSpec((BB, 1, NPAD), lambda i: (i, 0, 0)),
        scratch_shapes=[
            pltpu.VMEM((BB, 288, GRID), jnp.float32),   # conv1 im2col
            pltpu.VMEM((BB, 8, PAD_W), jnp.float32),    # pooled conv1 map
            pltpu.VMEM((BB, 288, GRID), jnp.float32),   # conv2 im2col
            pltpu.VMEM((BB, 16, GRID), jnp.float32),    # pooled conv2 map (fc input)
        ],
        compiler_params=pltpu.CompilerParams(dimension_semantics=("parallel",)),
        cost_estimate=cost,
    )(xp, w1q, b1p, w2q, b2c, wf1c, bf1p, wf2p, bf2p, wf3p, bf3p)

    return out_pad[:B, 0, :classes]


# ----------------------------------------------------------------------------
# Pure-JAX reference (for correctness check)
# ----------------------------------------------------------------------------
def lenet_reference(x, params):
    (w1, b1, w2, b2, wf1, bf1, wf2, bf2, wf3, bf3) = params
    dn = ("NCHW", "OIHW", "NCHW")

    def conv(x, w, b):
        y = jax.lax.conv_general_dilated(x, w, (1, 1), "VALID",
                                         dimension_numbers=dn)
        return jnp.maximum(y + b[None, :, None, None], 0.0)

    def pool(x):
        return jax.lax.reduce_window(x, -jnp.inf, jax.lax.max,
                                     (1, 1, 2, 2), (1, 1, 2, 2), "VALID")

    x = pool(conv(x, w1, b1))
    x = pool(conv(x, w2, b2))
    x = x.reshape(x.shape[0], -1)
    x = jnp.maximum(x @ wf1.T + bf1, 0.0)
    x = jnp.maximum(x @ wf2.T + bf2, 0.0)
    return x @ wf3.T + bf3


# ----------------------------------------------------------------------------
# Parameter init (deterministic, synthetic)
# ----------------------------------------------------------------------------
def init_params(key, classes):
    shapes = [
        ((6, 3, 5, 5), (6,)),        # conv1
        ((16, 6, 5, 5), (16,)),      # conv2
        ((120, 400), (120,)),        # fc1
        ((84, 120), (84,)),          # fc2
        ((classes, 84), (classes,))  # fc3
    ]
    params = []
    for ws, bs in shapes:
        key, kw, kb = jax.random.split(key, 3)
        params.append(0.1 * jax.random.normal(kw, ws, dtype=jnp.float32))
        params.append(0.1 * jax.random.normal(kb, bs, dtype=jnp.float32))
    return tuple(params)


if __name__ == "__main__":
    classes = 10
    key = jax.random.PRNGKey(0)
    key, kx = jax.random.split(key)
    # LeNet's classifier (16*5*5 -> 120) implies a 3x32x32 input.
    x = jax.random.normal(kx, (2, 3, 32, 32), dtype=jnp.float32)
    params = init_params(key, classes)

    fwd = jax.jit(partial(lenet_forward, classes=classes))
    out = jax.block_until_ready(fwd(x, params))
    assert out.shape == (2, classes), out.shape

    ref = jax.block_until_ready(lenet_reference(x, params))
    err = float(jnp.max(jnp.abs(out - ref)))
    assert jnp.allclose(out, ref, rtol=2e-3, atol=2e-3), ("mismatch vs ref", err)

    print("KERNEL_OK")
</pallas_src>

<mosaic_0001>
module attributes {stable_mosaic.version = 11 : i64} {
  func.func @_lenet_kernel(%arg0: i32, %arg1: memref<1x4x8x384xf32, #tpu.memory_space<vmem>>, %arg2: memref<32x288xf32, #tpu.memory_space<vmem>>, %arg3: memref<8x1xf32, #tpu.memory_space<vmem>>, %arg4: memref<64x288xf32, #tpu.memory_space<vmem>>, %arg5: memref<16x1xf32, #tpu.memory_space<vmem>>, %arg6: memref<16x256x128xf32, #tpu.memory_space<vmem>>, %arg7: memref<1x128xf32, #tpu.memory_space<vmem>>, %arg8: memref<128x128xf32, #tpu.memory_space<vmem>>, %arg9: memref<1x128xf32, #tpu.memory_space<vmem>>, %arg10: memref<128x128xf32, #tpu.memory_space<vmem>>, %arg11: memref<1x128xf32, #tpu.memory_space<vmem>>, %arg12: memref<1x1x128xf32, #tpu.memory_space<vmem>>, %arg13: memref<1x288x256xf32, #tpu.memory_space<vmem>>, %arg14: memref<1x8x384xf32, #tpu.memory_space<vmem>>, %arg15: memref<1x288x256xf32, #tpu.memory_space<vmem>>, %arg16: memref<1x16x256xf32, #tpu.memory_space<vmem>>) attributes {dimension_semantics = [#tpu.dimension_semantics<parallel>], iteration_bounds = array<i64: 2>, scalar_prefetch = 0 : i64, scratch_operands = 4 : i64, tpu.core_type = #tpu.core_type<tc>, window_params = [{transform_indices = @transform_0, window_bounds = array<i64: 1, 4, 8, 384>}, {pipeline_mode = #tpu.pipeline_mode<synchronous>, transform_indices = @transform_1, window_bounds = array<i64: 32, 288>}, {pipeline_mode = #tpu.pipeline_mode<synchronous>, transform_indices = @transform_2, window_bounds = array<i64: 8, 1>}, {pipeline_mode = #tpu.pipeline_mode<synchronous>, transform_indices = @transform_3, window_bounds = array<i64: 64, 288>}, {pipeline_mode = #tpu.pipeline_mode<synchronous>, transform_indices = @transform_4, window_bounds = array<i64: 16, 1>}, {pipeline_mode = #tpu.pipeline_mode<synchronous>, transform_indices = @transform_5, window_bounds = array<i64: 16, 256, 128>}, {pipeline_mode = #tpu.pipeline_mode<synchronous>, transform_indices = @transform_6, window_bounds = array<i64: 1, 128>}, {pipeline_mode = #tpu.pipeline_mode<synchronous>, transform_indices = @transform_7, window_bounds = array<i64: 128, 128>}, {pipeline_mode = #tpu.pipeline_mode<synchronous>, transform_indices = @transform_8, window_bounds = array<i64: 1, 128>}, {pipeline_mode = #tpu.pipeline_mode<synchronous>, transform_indices = @transform_9, window_bounds = array<i64: 128, 128>}, {pipeline_mode = #tpu.pipeline_mode<synchronous>, transform_indices = @transform_10, window_bounds = array<i64: 1, 128>}, {transform_indices = @transform_11, window_bounds = array<i64: 1, 1, 128>}]} {
    %cst = arith.constant 0.000000e+00 : f32
    %0 = vector.broadcast %cst : f32 to vector<1x8x128xf32>
    %c0 = arith.constant 0 : index
    %c0_0 = arith.constant 0 : index
    %c256 = arith.constant 256 : index
    %1 = vector.load %arg14[%c0, %c0_0, %c256] : memref<1x8x384xf32, #tpu.memory_space<vmem>>, vector<1x8x128xf32>
    tpu.vector_store %arg14[%c0, %c0_0, %c256], %0 {strides = array<i32>} : memref<1x8x384xf32, #tpu.memory_space<vmem>>, vector<1x8x128xf32>,
    %c0_1 = arith.constant 0 : index
    %c0_2 = arith.constant 0 : index
    %c0_3 = arith.constant 0 : index
    %c0_4 = arith.constant 0 : index
    %2 = vector.load %arg1[%c0_1, %c0_2, %c0_3, %c0_4] : memref<1x4x8x384xf32, #tpu.memory_space<vmem>>, vector<1x1x8x256xf32>
    %3 = vector.shape_cast %2 : vector<1x1x8x256xf32> to vector<1x8x256xf32>
    %c0_5 = arith.constant 0 : index
    %c0_6 = arith.constant 0 : index
    %c0_7 = arith.constant 0 : index
    %4 = vector.load %arg13[%c0_5, %c0_6, %c0_7] : memref<1x288x256xf32, #tpu.memory_space<vmem>>, vector<1x8x256xf32>
    tpu.vector_store %arg13[%c0_5, %c0_6, %c0_7], %3 {strides = array<i32>} : memref<1x288x256xf32, #tpu.memory_space<vmem>>, vector<1x8x256xf32>,
    %c0_8 = arith.constant 0 : index
    %c1 = arith.constant 1 : index
    %c0_9 = arith.constant 0 : index
    %c0_10 = arith.constant 0 : index
    %5 = vector.load %arg1[%c0_8, %c1, %c0_9, %c0_10] : memref<1x4x8x384xf32, #tpu.memory_space<vmem>>, vector<1x1x8x256xf32>
    %6 = vector.shape_cast %5 : vector<1x1x8x256xf32> to vector<1x8x256xf32>
    %c0_11 = arith.constant 0 : index
    %c8 = arith.constant 8 : index
    %c0_12 = arith.constant 0 : index
    %7 = vector.load %arg13[%c0_11, %c8, %c0_12] : memref<1x288x256xf32, #tpu.memory_space<vmem>>, vector<1x8x256xf32>
    tpu.vector_store %arg13[%c0_11, %c8, %c0_12], %6 {strides = array<i32>} : memref<1x288x256xf32, #tpu.memory_space<vmem>>, vector<1x8x256xf32>,
    %c0_13 = arith.constant 0 : index
    %c0_14 = arith.constant 0 : index
    %c0_15 = arith.constant 0 : index
    %c1_16 = arith.constant 1 : index
    %8 = vector.load %arg1[%c0_13, %c0_14, %c0_15, %c1_16] : memref<1x4x8x384xf32, #tpu.memory_space<vmem>>, vector<1x1x8x256xf32>
    %9 = vector.shape_cast %8 : vector<1x1x8x256xf32> to vector<1x8x256xf32>
    %c0_17 = arith.constant 0 : index
    %c16 = arith.constant 16 : index
    %c0_18 = arith.constant 0 : index
    %10 = vector.load %arg13[%c0_17, %c16, %c0_18] : memref<1x288x256xf32, #tpu.memory_space<vmem>>, vector<1x8x256xf32>
    tpu.vector_store %arg13[%c0_17, %c16, %c0_18], %9 {strides = array<i32>} : memref<1x288x256xf32, #tpu.memory_space<vmem>>, vector<1x8x256xf32>,
    %c0_19 = arith.constant 0 : index
    %c1_20 = arith.constant 1 : index
    %c0_21 = arith.constant 0 : index
    %c1_22 = arith.constant 1 : index
    %11 = vector.load %arg1[%c0_19, %c1_20, %c0_21, %c1_22] : memref<1x4x8x384xf32, #tpu.memory_space<vmem>>, vector<1x1x8x256xf32>
    %12 = vector.shape_cast %11 : vector<1x1x8x256xf32> to vector<1x8x256xf32>
    %c0_23 = arith.constant 0 : index
    %c24 = arith.constant 24 : index
    %c0_24 = arith.constant 0 : index
    %13 = vector.load %arg13[%c0_23, %c24, %c0_24] : memref<1x288x256xf32, #tpu.memory_space<vmem>>, vector<1x8x256xf32>
    tpu.vector_store %arg13[%c0_23, %c24, %c0_24], %12 {strides = array<i32>} : memref<1x288x256xf32, #tpu.memory_space<vmem>>, vector<1x8x256xf32>,
    %c0_25 = arith.constant 0 : index
    %c0_26 = arith.constant 0 : index
    %c0_27 = arith.constant 0 : index
    %c2 = arith.constant 2 : index
    %14 = vector.load %arg1[%c0_25, %c0_26, %c0_27, %c2] : memref<1x4x8x384xf32, #tpu.memory_space<vmem>>, vector<1x1x8x256xf32>
    %15 = vector.shape_cast %14 : vector<1x1x8x256xf32> to vector<1x8x256xf32>
    %c0_28 = arith.constant 0 : index
    %c32 = arith.constant 32 : index
    %c0_29 = arith.constant 0 : index
    %16 = vector.load %arg13[%c0_28, %c32, %c0_29] : memref<1x288x256xf32, #tpu.memory_space<vmem>>, vector<1x8x256xf32>
    tpu.vector_store %arg13[%c0_28, %c32, %c0_29], %15 {strides = array<i32>} : memref<1x288x256xf32, #tpu.memory_space<vmem>>, vector<1x8x256xf32>,
    %c0_30 = arith.constant 0 : index
    %c1_31 = arith.constant 1 : index
    %c0_32 = arith.constant 0 : index
    %c2_33 = arith.constant 2 : index
    %17 = vector.load %arg1[%c0_30, %c1_31, %c0_32, %c2_33] : memref<1x4x8x384xf32, #tpu.memory_space<vmem>>, vector<1x1x8x256xf32>
    %18 = vector.shape_cast %17 : vector<1x1x8x256xf32> to vector<1x8x256xf32>
    %c0_34 = arith.constant 0 : index
    %c40 = arith.constant 40 : index
    %c0_35 = arith.constant 0 : index
    %19 = vector.load %arg13[%c0_34, %c40, %c0_35] : memref<1x288x256xf32, #tpu.memory_space<vmem>>, vector<1x8x256xf32>
    tpu.vector_store %arg13[%c0_34, %c40, %c0_35], %18 {strides = array<i32>} : memref<1x288x256xf32, #tpu.memory_space<vmem>>, vector<1x8x256xf32>,
    %c0_36 = arith.constant 0 : index
    %c2_37 = arith.constant 2 : index
    %c0_38 = arith.constant 0 : index
    %c0_39 = arith.constant 0 : index
    %20 = vector.load %arg1[%c0_36, %c2_37, %c0_38, %c0_39] : memref<1x4x8x384xf32, #tpu.memory_space<vmem>>, vector<1x1x8x256xf32>
    %21 = vector.shape_cast %20 : vector<1x1x8x256xf32> to vector<1x8x256xf32>
    %c0_40 = arith.constant 0 : index
    %c48 = arith.constant 48 : index
    %c0_41 = arith.constant 0 : index
    %22 = vector.load %arg13[%c0_40, %c48, %c0_41] : memref<1x288x256xf32, #tpu.memory_space<vmem>>, vector<1x8x256xf32>
    tpu.vector_store %arg13[%c0_40, %c48, %c0_41], %21 {strides = array<i32>} : memref<1x288x256xf32, #tpu.memory_space<vmem>>, vector<1x8x256xf32>,
    %c0_42 = arith.constant 0 : index
    %c3 = arith.constant 3 : index
    %c0_43 = arith.constant 0 : index
    %c0_44 = arith.constant 0 : index
    %23 = vector.load %arg1[%c0_42, %c3, %c0_43, %c0_44] : memref<1x4x8x384xf32, #tpu.memory_space<vmem>>, vector<1x1x8x256xf32>
    %24 = vector.shape_cast %23 : vector<1x1x8x256xf32> to vector<1x8x256xf32>
    %c0_45 = arith.constant 0 : index
    %c56 = arith.constant 56 : index
    %c0_46 = arith.constant 0 : index
    %25 = vector.load %arg13[%c0_45, %c56, %c0_46] : memref<1x288x256xf32, #tpu.memory_space<vmem>>, vector<1x8x256xf32>
    tpu.vector_store %arg13[%c0_45, %c56, %c0_46], %24 {strides = array<i32>} : memref<1x288x256xf32, #tpu.memory_space<vmem>>, vector<1x8x256xf32>,
    %c0_47 = arith.constant 0 : index
    %c2_48 = arith.constant 2 : index
    %c0_49 = arith.constant 0 : index
    %c1_50 = arith.constant 1 : index
    %26 = vector.load %arg1[%c0_47, %c2_48, %c0_49, %c1_50] : memref<1x4x8x384xf32, #tpu.memory_space<vmem>>, vector<1x1x8x256xf32>
    %27 = vector.shape_cast %26 : vector<1x1x8x256xf32> to vector<1x8x256xf32>
    %c0_51 = arith.constant 0 : index
    %c64 = arith.constant 64 : index
    %c0_52 = arith.constant 0 : index
    %28 = vector.load %arg13[%c0_51, %c64, %c0_52] : memref<1x288x256xf32, #tpu.memory_space<vmem>>, vector<1x8x256xf32>
    tpu.vector_store %arg13[%c0_51, %c64, %c0_52], %27 {strides = array<i32>} : memref<1x288x256xf32, #tpu.memory_space<vmem>>, vector<1x8x256xf32>,
    %c0_53 = arith.constant 0 : index
    %c3_54 = arith.constant 3 : index
    %c0_55 = arith.constant 0 : index
    %c1_56 = arith.constant 1 : index
    %29 = vector.load %arg1[%c0_53, %c3_54, %c0_55, %c1_56] : memref<1x4x8x384xf32, #tpu.memory_space<vmem>>, vector<1x1x8x256xf32>
    %30 = vector.shape_cast %29 : vector<1x1x8x256xf32> to vector<1x8x256xf32>
    %c0_57 = arith.constant 0 : index
    %c72 = arith.constant 72 : index
    %c0_58 = arith.constant 0 : index
    %31 = vector.load %arg13[%c0_57, %c72, %c0_58] : memref<1x288x256xf32, #tpu.memory_space<vmem>>, vector<1x8x256xf32>
    tpu.vector_store %arg13[%c0_57, %c72, %c0_58], %30 {strides = array<i32>} : memref<1x288x256xf32, #tpu.memory_space<vmem>>, vector<1x8x256xf32>,
    %c0_59 = arith.constant 0 : index
    %c2_60 = arith.constant 2 : index
    %c0_61 = arith.constant 0 : index
    %c2_62 = arith.constant 2 : index
    %32 = vector.load %arg1[%c0_59, %c2_60, %c0_61, %c2_62] : memref<1x4x8x384xf32, #tpu.memory_space<vmem>>, vector<1x1x8x256xf32>
    %33 = vector.shape_cast %32 : vector<1x1x8x256xf32> to vector<1x8x256xf32>
    %c0_63 = arith.constant 0 : index
    %c80 = arith.constant 80 : index
    %c0_64 = arith.constant 0 : index
    %34 = vector.load %arg13[%c0_63, %c80, %c0_64] : memref<1x288x256xf32, #tpu.memory_space<vmem>>, vector<1x8x256xf32>
    tpu.vector_store %arg13[%c0_63, %c80, %c0_64], %33 {strides = array<i32>} : memref<1x288x256xf32, #tpu.memory_space<vmem>>, vector<1x8x256xf32>,
    %c0_65 = arith.constant 0 : index
    %c3_66 = arith.constant 3 : index
    %c0_67 = arith.constant 0 : index
    %c2_68 = arith.constant 2 : index
    %35 = vector.load %arg1[%c0_65, %c3_66, %c0_67, %c2_68] : memref<1x4x8x384xf32, #tpu.memory_space<vmem>>, vector<1x1x8x256xf32>
    %36 = vector.shape_cast %35 : vector<1x1x8x256xf32> to vector<1x8x256xf32>
    %c0_69 = arith.constant 0 : index
    %c88 = arith.constant 88 : index
    %c0_70 = arith.constant 0 : index
    %37 = vector.load %arg13[%c0_69, %c88, %c0_70] : memref<1x288x256xf32, #tpu.memory_space<vmem>>, vector<1x8x256xf32>
    tpu.vector_store %arg13[%c0_69, %c88, %c0_70], %36 {strides = array<i32>} : memref<1x288x256xf32, #tpu.memory_space<vmem>>, vector<1x8x256xf32>,
    %c0_71 = arith.constant 0 : index
    %c0_72 = arith.constant 0 : index
    %c0_73 = arith.constant 0 : index
    %c16_74 = arith.constant 16 : index
    %38 = vector.load %arg1[%c0_71, %c0_72, %c0_73, %c16_74] : memref<1x4x8x384xf32, #tpu.memory_space<vmem>>, vector<1x1x8x256xf32>
    %39 = vector.shape_cast %38 : vector<1x1x8x256xf32> to vector<1x8x256xf32>
    %c0_75 = arith.constant 0 : index
    %c96 = arith.constant 96 : index
    %c0_76 = arith.constant 0 : index
    %40 = vector.load %arg13[%c0_75, %c96, %c0_76] : memref<1x288x256xf32, #tpu.memory_space<vmem>>, vector<1x8x256xf32>
    tpu.vector_store %arg13[%c0_75, %c96, %c0_76], %39 {strides = array<i32>} : memref<1x288x256xf32, #tpu.memory_space<vmem>>, vector<1x8x256xf32>,
    %c0_77 = arith.constant 0 : index
    %c1_78 = arith.constant 1 : index
    %c0_79 = arith.constant 0 : index
    %c16_80 = arith.constant 16 : index
    %41 = vector.load %arg1[%c0_77, %c1_78, %c0_79, %c16_80] : memref<1x4x8x384xf32, #tpu.memory_space<vmem>>, vector<1x1x8x256xf32>
    %42 = vector.shape_cast %41 : vector<1x1x8x256xf32> to vector<1x8x256xf32>
    %c0_81 = arith.constant 0 : index
    %c104 = arith.constant 104 : index
    %c0_82 = arith.constant 0 : index
    %43 = vector.load %arg13[%c0_81, %c104, %c0_82] : memref<1x288x256xf32, #tpu.memory_space<vmem>>, vector<1x8x256xf32>
    tpu.vector_store %arg13[%c0_81, %c104, %c0_82], %42 {strides = array<i32>} : memref<1x288x256xf32, #tpu.memory_space<vmem>>, vector<1x8x256xf32>,
    %c0_83 = arith.constant 0 : index
    %c0_84 = arith.constant 0 : index
    %c0_85 = arith.constant 0 : index
    %c17 = arith.constant 17 : index
    %44 = vector.load %arg1[%c0_83, %c0_84, %c0_85, %c17] : memref<1x4x8x384xf32, #tpu.memory_space<vmem>>, vector<1x1x8x256xf32>
    %45 = vector.shape_cast %44 : vector<1x1x8x256xf32> to vector<1x8x256xf32>
    %c0_86 = arith.constant 0 : index
    %c112 = arith.constant 112 : index
    %c0_87 = arith.constant 0 : index
    %46 = vector.load %arg13[%c0_86, %c112, %c0_87] : memref<1x288x256xf32, #tpu.memory_space<vmem>>, vector<1x8x256xf32>
    tpu.vector_store %arg13[%c0_86, %c112, %c0_87], %45 {strides = array<i32>} : memref<1x288x256xf32, #tpu.memory_space<vmem>>, vector<1x8x256xf32>,
    %c0_88 = arith.constant 0 : index
    %c1_89 = arith.constant 1 : index
    %c0_90 = arith.constant 0 : index
    %c17_91 = arith.constant 17 : index
    %47 = vector.load %arg1[%c0_88, %c1_89, %c0_90, %c17_91] : memref<1x4x8x384xf32, #tpu.memory_space<vmem>>, vector<1x1x8x256xf32>
    %48 = vector.shape_cast %47 : vector<1x1x8x256xf32> to vector<1x8x256xf32>
    %c0_92 = arith.constant 0 : index
    %c120 = arith.constant 120 : index
    %c0_93 = arith.constant 0 : index
    %49 = vector.load %arg13[%c0_92, %c120, %c0_93] : memref<1x288x256xf32, #tpu.memory_space<vmem>>, vector<1x8x256xf32>
    tpu.vector_store %arg13[%c0_92, %c120, %c0_93], %48 {strides = array<i32>} : memref<1x288x256xf32, #tpu.memory_space<vmem>>, vector<1x8x256xf32>,
    %c0_94 = arith.constant 0 : index
    %c0_95 = arith.constant 0 : index
    %c0_96 = arith.constant 0 : index
    %c18 = arith.constant 18 : index
    %50 = vector.load %arg1[%c0_94, %c0_95, %c0_96, %c18] : memref<1x4x8x384xf32, #tpu.memory_space<vmem>>, vector<1x1x8x256xf32>
    %51 = vector.shape_cast %50 : vector<1x1x8x256xf32> to vector<1x8x256xf32>
    %c0_97 = arith.constant 0 : index
    %c128 = arith.constant 128 : index
    %c0_98 = arith.constant 0 : index
    %52 = vector.load %arg13[%c0_97, %c128, %c0_98] : memref<1x288x256xf32, #tpu.memory_space<vmem>>, vector<1x8x256xf32>
    tpu.vector_store %arg13[%c0_97, %c128, %c0_98], %51 {strides = array<i32>} : memref<1x288x256xf32, #tpu.memory_space<vmem>>, vector<1x8x256xf32>,
    %c0_99 = arith.constant 0 : index
    %c1_100 = arith.constant 1 : index
    %c0_101 = arith.constant 0 : index
    %c18_102 = arith.constant 18 : index
    %53 = vector.load %arg1[%c0_99, %c1_100, %c0_101, %c18_102] : memref<1x4x8x384xf32, #tpu.memory_space<vmem>>, vector<1x1x8x256xf32>
    %54 = vector.shape_cast %53 : vector<1x1x8x256xf32> to vector<1x8x256xf32>
    %c0_103 = arith.constant 0 : index
    %c136 = arith.constant 136 : index
    %c0_104 = arith.constant 0 : index
    %55 = vector.load %arg13[%c0_103, %c136, %c0_104] : memref<1x288x256xf32, #tpu.memory_space<vmem>>, vector<1x8x256xf32>
    tpu.vector_store %arg13[%c0_103, %c136, %c0_104], %54 {strides = array<i32>} : memref<1x288x256xf32, #tpu.memory_space<vmem>>, vector<1x8x256xf32>,
    %c0_105 = arith.constant 0 : index
    %c2_106 = arith.constant 2 : index
    %c0_107 = arith.constant 0 : index
    %c16_108 = arith.constant 16 : index
    %56 = vector.load %arg1[%c0_105, %c2_106, %c0_107, %c16_108] : memref<1x4x8x384xf32, #tpu.memory_space<vmem>>, vector<1x1x8x256xf32>
    %57 = vector.shape_cast %56 : vector<1x1x8x256xf32> to vector<1x8x256xf32>
    %c0_109 = arith.constant 0 : index
    %c144 = arith.constant 144 : index
    %c0_110 = arith.constant 0 : index
    %58 = vector.load %arg13[%c0_109, %c144, %c0_110] : memref<1x288x256xf32, #tpu.memory_space<vmem>>, vector<1x8x256xf32>
    tpu.vector_store %arg13[%c0_109, %c144, %c0_110], %57 {strides = array<i32>} : memref<1x288x256xf32, #tpu.memory_space<vmem>>, vector<1x8x256xf32>,
    %c0_111 = arith.constant 0 : index
    %c3_112 = arith.constant 3 : index
    %c0_113 = arith.constant 0 : index
    %c16_114 = arith.constant 16 : index
    %59 = vector.load %arg1[%c0_111, %c3_112, %c0_113, %c16_114] : memref<1x4x8x384xf32, #tpu.memory_space<vmem>>, vector<1x1x8x256xf32>
    %60 = vector.shape_cast %59 : vector<1x1x8x256xf32> to vector<1x8x256xf32>
    %c0_115 = arith.constant 0 : index
    %c152 = arith.constant 152 : index
    %c0_116 = arith.constant 0 : index
    %61 = vector.load %arg13[%c0_115, %c152, %c0_116] : memref<1x288x256xf32, #tpu.memory_space<vmem>>, vector<1x8x256xf32>
    tpu.vector_store %arg13[%c0_115, %c152, %c0_116], %60 {strides = array<i32>} : memref<1x288x256xf32, #tpu.memory_space<vmem>>, vector<1x8x256xf32>,
    %c0_117 = arith.constant 0 : index
    %c2_118 = arith.constant 2 : index
    %c0_119 = arith.constant 0 : index
    %c17_120 = arith.constant 17 : index
    %62 = vector.load %arg1[%c0_117, %c2_118, %c0_119, %c17_120] : memref<1x4x8x384xf32, #tpu.memory_space<vmem>>, vector<1x1x8x256xf32>
    %63 = vector.shape_cast %62 : vector<1x1x8x256xf32> to vector<1x8x256xf32>
    %c0_121 = arith.constant 0 : index
    %c160 = arith.constant 160 : index
    %c0_122 = arith.constant 0 : index
    %64 = vector.load %arg13[%c0_121, %c160, %c0_122] : memref<1x288x256xf32, #tpu.memory_space<vmem>>, vector<1x8x256xf32>
    tpu.vector_store %arg13[%c0_121, %c160, %c0_122], %63 {strides = array<i32>} : memref<1x288x256xf32, #tpu.memory_space<vmem>>, vector<1x8x256xf32>,
    %c0_123 = arith.constant 0 : index
    %c3_124 = arith.constant 3 : index
    %c0_125 = arith.constant 0 : index
    %c17_126 = arith.constant 17 : index
    %65 = vector.load %arg1[%c0_123, %c3_124, %c0_125, %c17_126] : memref<1x4x8x384xf32, #tpu.memory_space<vmem>>, vector<1x1x8x256xf32>
    %66 = vector.shape_cast %65 : vector<1x1x8x256xf32> to vector<1x8x256xf32>
    %c0_127 = arith.constant 0 : index
    %c168 = arith.constant 168 : index
    %c0_128 = arith.constant 0 : index
    %67 = vector.load %arg13[%c0_127, %c168, %c0_128] : memref<1x288x256xf32, #tpu.memory_space<vmem>>, vector<1x8x256xf32>
    tpu.vector_store %arg13[%c0_127, %c168, %c0_128], %66 {strides = array<i32>} : memref<1x288x256xf32, #tpu.memory_space<vmem>>, vector<1x8x256xf32>,
    %c0_129 = arith.constant 0 : index
    %c2_130 = arith.constant 2 : index
    %c0_131 = arith.constant 0 : index
    %c18_132 = arith.constant 18 : index
    %68 = vector.load %arg1[%c0_129, %c2_130, %c0_131, %c18_132] : memref<1x4x8x384xf32, #tpu.memory_space<vmem>>, vector<1x1x8x256xf32>
    %69 = vector.shape_cast %68 : vector<1x1x8x256xf32> to vector<1x8x256xf32>
    %c0_133 = arith.constant 0 : index
    %c176 = arith.constant 176 : index
    %c0_134 = arith.constant 0 : index
    %70 = vector.load %arg13[%c0_133, %c176, %c0_134] : memref<1x288x256xf32, #tpu.memory_space<vmem>>, vector<1x8x256xf32>
    tpu.vector_store %arg13[%c0_133, %c176, %c0_134], %69 {strides = array<i32>} : memref<1x288x256xf32, #tpu.memory_space<vmem>>, vector<1x8x256xf32>,
    %c0_135 = arith.constant 0 : index
    %c3_136 = arith.constant 3 : index
    %c0_137 = arith.constant 0 : index
    %c18_138 = arith.constant 18 : index
    %71 = vector.load %arg1[%c0_135, %c3_136, %c0_137, %c18_138] : memref<1x4x8x384xf32, #tpu.memory_space<vmem>>, vector<1x1x8x256xf32>
    %72 = vector.shape_cast %71 : vector<1x1x8x256xf32> to vector<1x8x256xf32>
    %c0_139 = arith.constant 0 : index
    %c184 = arith.constant 184 : index
    %c0_140 = arith.constant 0 : index
    %73 = vector.load %arg13[%c0_139, %c184, %c0_140] : memref<1x288x256xf32, #tpu.memory_space<vmem>>, vector<1x8x256xf32>
    tpu.vector_store %arg13[%c0_139, %c184, %c0_140], %72 {strides = array<i32>} : memref<1x288x256xf32, #tpu.memory_space<vmem>>, vector<1x8x256xf32>,
    %c0_141 = arith.constant 0 : index
    %c0_142 = arith.constant 0 : index
    %c0_143 = arith.constant 0 : index
    %c32_144 = arith.constant 32 : index
    %74 = vector.load %arg1[%c0_141, %c0_142, %c0_143, %c32_144] : memref<1x4x8x384xf32, #tpu.memory_space<vmem>>, vector<1x1x8x256xf32>
    %75 = vector.shape_cast %74 : vector<1x1x8x256xf32> to vector<1x8x256xf32>
    %c0_145 = arith.constant 0 : index
    %c192 = arith.constant 192 : index
    %c0_146 = arith.constant 0 : index
    %76 = vector.load %arg13[%c0_145, %c192, %c0_146] : memref<1x288x256xf32, #tpu.memory_space<vmem>>, vector<1x8x256xf32>
    tpu.vector_store %arg13[%c0_145, %c192, %c0_146], %75 {strides = array<i32>} : memref<1x288x256xf32, #tpu.memory_space<vmem>>, vector<1x8x256xf32>,
    %c0_147 = arith.constant 0 : index
    %c1_148 = arith.constant 1 : index
    %c0_149 = arith.constant 0 : index
    %c32_150 = arith.constant 32 : index
    %77 = vector.load %arg1[%c0_147, %c1_148, %c0_149, %c32_150] : memref<1x4x8x384xf32, #tpu.memory_space<vmem>>, vector<1x1x8x256xf32>
    %78 = vector.shape_cast %77 : vector<1x1x8x256xf32> to vector<1x8x256xf32>
    %c0_151 = arith.constant 0 : index
    %c200 = arith.constant 200 : index
    %c0_152 = arith.constant 0 : index
    %79 = vector.load %arg13[%c0_151, %c200, %c0_152] : memref<1x288x256xf32, #tpu.memory_space<vmem>>, vector<1x8x256xf32>
    tpu.vector_store %arg13[%c0_151, %c200, %c0_152], %78 {strides = array<i32>} : memref<1x288x256xf32, #tpu.memory_space<vmem>>, vector<1x8x256xf32>,
    %c0_153 = arith.constant 0 : index
    %c0_154 = arith.constant 0 : index
    %c0_155 = arith.constant 0 : index
    %c33 = arith.constant 33 : index
    %80 = vector.load %arg1[%c0_153, %c0_154, %c0_155, %c33] : memref<1x4x8x384xf32, #tpu.memory_space<vmem>>, vector<1x1x8x256xf32>
    %81 = vector.shape_cast %80 : vector<1x1x8x256xf32> to vector<1x8x256xf32>
    %c0_156 = arith.constant 0 : index
    %c208 = arith.constant 208 : index
    %c0_157 = arith.constant 0 : index
    %82 = vector.load %arg13[%c0_156, %c208, %c0_157] : memref<1x288x256xf32, #tpu.memory_space<vmem>>, vector<1x8x256xf32>
    tpu.vector_store %arg13[%c0_156, %c208, %c0_157], %81 {strides = array<i32>} : memref<1x288x256xf32, #tpu.memory_space<vmem>>, vector<1x8x256xf32>,
    %c0_158 = arith.constant 0 : index
    %c1_159 = arith.constant 1 : index
    %c0_160 = arith.constant 0 : index
    %c33_161 = arith.constant 33 : index
    %83 = vector.load %arg1[%c0_158, %c1_159, %c0_160, %c33_161] : memref<1x4x8x384xf32, #tpu.memory_space<vmem>>, vector<1x1x8x256xf32>
    %84 = vector.shape_cast %83 : vector<1x1x8x256xf32> to vector<1x8x256xf32>
    %c0_162 = arith.constant 0 : index
    %c216 = arith.constant 216 : index
    %c0_163 = arith.constant 0 : index
    %85 = vector.load %arg13[%c0_162, %c216, %c0_163] : memref<1x288x256xf32, #tpu.memory_space<vmem>>, vector<1x8x256xf32>
    tpu.vector_store %arg13[%c0_162, %c216, %c0_163], %84 {strides = array<i32>} : memref<1x288x256xf32, #tpu.memory_space<vmem>>, vector<1x8x256xf32>,
    %c0_164 = arith.constant 0 : index
    %c0_165 = arith.constant 0 : index
    %c0_166 = arith.constant 0 : index
    %c34 = arith.constant 34 : index
    %86 = vector.load %arg1[%c0_164, %c0_165, %c0_166, %c34] : memref<1x4x8x384xf32, #tpu.memory_space<vmem>>, vector<1x1x8x256xf32>
    %87 = vector.shape_cast %86 : vector<1x1x8x256xf32> to vector<1x8x256xf32>
    %c0_167 = arith.constant 0 : index
    %c224 = arith.constant 224 : index
    %c0_168 = arith.constant 0 : index
    %88 = vector.load %arg13[%c0_167, %c224, %c0_168] : memref<1x288x256xf32, #tpu.memory_space<vmem>>, vector<1x8x256xf32>
    tpu.vector_store %arg13[%c0_167, %c224, %c0_168], %87 {strides = array<i32>} : memref<1x288x256xf32, #tpu.memory_space<vmem>>, vector<1x8x256xf32>,
    %c0_169 = arith.constant 0 : index
    %c1_170 = arith.constant 1 : index
    %c0_171 = arith.constant 0 : index
    %c34_172 = arith.constant 34 : index
    %89 = vector.load %arg1[%c0_169, %c1_170, %c0_171, %c34_172] : memref<1x4x8x384xf32, #tpu.memory_space<vmem>>, vector<1x1x8x256xf32>
    %90 = vector.shape_cast %89 : vector<1x1x8x256xf32> to vector<1x8x256xf32>
    %c0_173 = arith.constant 0 : index
    %c232 = arith.constant 232 : index
    %c0_174 = arith.constant 0 : index
    %91 = vector.load %arg13[%c0_173, %c232, %c0_174] : memref<1x288x256xf32, #tpu.memory_space<vmem>>, vector<1x8x256xf32>
    tpu.vector_store %arg13[%c0_173, %c232, %c0_174], %90 {strides = array<i32>} : memref<1x288x256xf32, #tpu.memory_space<vmem>>, vector<1x8x256xf32>,
    %c0_175 = arith.constant 0 : index
    %c2_176 = arith.constant 2 : index
    %c0_177 = arith.constant 0 : index
    %c32_178 = arith.constant 32 : index
    %92 = vector.load %arg1[%c0_175, %c2_176, %c0_177, %c32_178] : memref<1x4x8x384xf32, #tpu.memory_space<vmem>>, vector<1x1x8x256xf32>
    %93 = vector.shape_cast %92 : vector<1x1x8x256xf32> to vector<1x8x256xf32>
    %c0_179 = arith.constant 0 : index
    %c240 = arith.constant 240 : index
    %c0_180 = arith.constant 0 : index
    %94 = vector.load %arg13[%c0_179, %c240, %c0_180] : memref<1x288x256xf32, #tpu.memory_space<vmem>>, vector<1x8x256xf32>
    tpu.vector_store %arg13[%c0_179, %c240, %c0_180], %93 {strides = array<i32>} : memref<1x288x256xf32, #tpu.memory_space<vmem>>, vector<1x8x256xf32>,
    %c0_181 = arith.constant 0 : index
    %c3_182 = arith.constant 3 : index
    %c0_183 = arith.constant 0 : index
    %c32_184 = arith.constant 32 : index
    %95 = vector.load %arg1[%c0_181, %c3_182, %c0_183, %c32_184] : memref<1x4x8x384xf32, #tpu.memory_space<vmem>>, vector<1x1x8x256xf32>
    %96 = vector.shape_cast %95 : vector<1x1x8x256xf32> to vector<1x8x256xf32>
    %c0_185 = arith.constant 0 : index
    %c248 = arith.constant 248 : index
    %c0_186 = arith.constant 0 : index
    %97 = vector.load %arg13[%c0_185, %c248, %c0_186] : memref<1x288x256xf32, #tpu.memory_space<vmem>>, vector<1x8x256xf32>
    tpu.vector_store %arg13[%c0_185, %c248, %c0_186], %96 {strides = array<i32>} : memref<1x288x256xf32, #tpu.memory_space<vmem>>, vector<1x8x256xf32>,
    %c0_187 = arith.constant 0 : index
    %c2_188 = arith.constant 2 : index
    %c0_189 = arith.constant 0 : index
    %c33_190 = arith.constant 33 : index
    %98 = vector.load %arg1[%c0_187, %c2_188, %c0_189, %c33_190] : memref<1x4x8x384xf32, #tpu.memory_space<vmem>>, vector<1x1x8x256xf32>
    %99 = vector.shape_cast %98 : vector<1x1x8x256xf32> to vector<1x8x256xf32>
    %c0_191 = arith.constant 0 : index
    %c256_192 = arith.constant 256 : index
    %c0_193 = arith.constant 0 : index
    %100 = vector.load %arg13[%c0_191, %c256_192, %c0_193] : memref<1x288x256xf32, #tpu.memory_space<vmem>>, vector<1x8x256xf32>
    tpu.vector_store %arg13[%c0_191, %c256_192, %c0_193], %99 {strides = array<i32>} : memref<1x288x256xf32, #tpu.memory_space<vmem>>, vector<1x8x256xf32>,
    %c0_194 = arith.constant 0 : index
    %c3_195 = arith.constant 3 : index
    %c0_196 = arith.constant 0 : index
    %c33_197 = arith.constant 33 : index
    %101 = vector.load %arg1[%c0_194, %c3_195, %c0_196, %c33_197] : memref<1x4x8x384xf32, #tpu.memory_space<vmem>>, vector<1x1x8x256xf32>
    %102 = vector.shape_cast %101 : vector<1x1x8x256xf32> to vector<1x8x256xf32>
    %c0_198 = arith.constant 0 : index
    %c264 = arith.constant 264 : index
    %c0_199 = arith.constant 0 : index
    %103 = vector.load %arg13[%c0_198, %c264, %c0_199] : memref<1x288x256xf32, #tpu.memory_space<vmem>>, vector<1x8x256xf32>
    tpu.vector_store %arg13[%c0_198, %c264, %c0_199], %102 {strides = array<i32>} : memref<1x288x256xf32, #tpu.memory_space<vmem>>, vector<1x8x256xf32>,
    %c0_200 = arith.constant 0 : index
    %c2_201 = arith.constant 2 : index
    %c0_202 = arith.constant 0 : index
    %c34_203 = arith.constant 34 : index
    %104 = vector.load %arg1[%c0_200, %c2_201, %c0_202, %c34_203] : memref<1x4x8x384xf32, #tpu.memory_space<vmem>>, vector<1x1x8x256xf32>
    %105 = vector.shape_cast %104 : vector<1x1x8x256xf32> to vector<1x8x256xf32>
    %c0_204 = arith.constant 0 : index
    %c272 = arith.constant 272 : index
    %c0_205 = arith.constant 0 : index
    %106 = vector.load %arg13[%c0_204, %c272, %c0_205] : memref<1x288x256xf32, #tpu.memory_space<vmem>>, vector<1x8x256xf32>
    tpu.vector_store %arg13[%c0_204, %c272, %c0_205], %105 {strides = array<i32>} : memref<1x288x256xf32, #tpu.memory_space<vmem>>, vector<1x8x256xf32>,
    %c0_206 = arith.constant 0 : index
    %c3_207 = arith.constant 3 : index
    %c0_208 = arith.constant 0 : index
    %c34_209 = arith.constant 34 : index
    %107 = vector.load %arg1[%c0_206, %c3_207, %c0_208, %c34_209] : memref<1x4x8x384xf32, #tpu.memory_space<vmem>>, vector<1x1x8x256xf32>
    %108 = vector.shape_cast %107 : vector<1x1x8x256xf32> to vector<1x8x256xf32>
    %c0_210 = arith.constant 0 : index
    %c280 = arith.constant 280 : index
    %c0_211 = arith.constant 0 : index
    %109 = vector.load %arg13[%c0_210, %c280, %c0_211] : memref<1x288x256xf32, #tpu.memory_space<vmem>>, vector<1x8x256xf32>
    tpu.vector_store %arg13[%c0_210, %c280, %c0_211], %108 {strides = array<i32>} : memref<1x288x256xf32, #tpu.memory_space<vmem>>, vector<1x8x256xf32>,
    %c0_212 = arith.constant 0 : index
    %c0_213 = arith.constant 0 : index
    %110 = vector.load %arg2[%c0_212, %c0_213] : memref<32x288xf32, #tpu.memory_space<vmem>>, vector<32x288xf32>
    %c0_214 = arith.constant 0 : index
    %c0_215 = arith.constant 0 : index
    %c0_216 = arith.constant 0 : index
    %111 = vector.load %arg13[%c0_214, %c0_215, %c0_216] : memref<1x288x256xf32, #tpu.memory_space<vmem>>, vector<1x288x256xf32>
    %112 = vector.shape_cast %111 : vector<1x288x256xf32> to vector<288x256xf32>
    %cst_217 = arith.constant dense<0.000000e+00> : vector<32x256xf32>
    %113 = tpu.matmul %110, %112, %cst_217 {dimension_numbers = #tpu.dot_dimension_numbers<[1], [0], [0], [1], [0, 0, 1, 1], [], []>} : vector<32x288xf32>, vector<288x256xf32>, vector<32x256xf32> -> vector<32x256xf32>
    %114 = vector.extract_strided_slice %113 {offsets = [0, 0], sizes = [8, 256], strides = [1, 1]} : vector<32x256xf32> to vector<8x256xf32>
    %115 = vector.extract_strided_slice %113 {offsets = [8, 0], sizes = [8, 256], strides = [1, 1]} : vector<32x256xf32> to vector<8x256xf32>
    %116 = arith.maximumf %114, %115 : vector<8x256xf32>
    %117 = vector.extract_strided_slice %113 {offsets = [16, 0], sizes = [8, 256], strides = [1, 1]} : vector<32x256xf32> to vector<8x256xf32>
    %118 = vector.extract_strided_slice %113 {offsets = [24, 0], sizes = [8, 256], strides = [1, 1]} : vector<32x256xf32> to vector<8x256xf32>
    %119 = arith.maximumf %117, %118 : vector<8x256xf32>
    %120 = arith.maximumf %116, %119 : vector<8x256xf32>
    %c0_218 = arith.constant 0 : index
    %c0_219 = arith.constant 0 : index
    %121 = vector.load %arg3[%c0_218, %c0_219] : memref<8x1xf32, #tpu.memory_space<vmem>>, vector<8x1xf32>
    %122 = vector.broadcast %121 : vector<8x1xf32> to vector<8x256xf32>
    %123 = arith.addf %120, %122 : vector<8x256xf32>
    %cst_220 = arith.constant 0.000000e+00 : f32
    %124 = vector.broadcast %cst_220 : f32 to vector<8x256xf32>
    %125 = arith.maximumf %123, %124 : vector<8x256xf32>
    %c0_221 = arith.constant 0 : index
    %c0_222 = arith.constant 0 : index
    %c0_223 = arith.constant 0 : index
    %126 = vector.load %arg14[%c0_221, %c0_222, %c0_223] : memref<1x8x384xf32, #tpu.memory_space<vmem>>, vector<1x8x256xf32>
    %127 = vector.shape_cast %126 : vector<1x8x256xf32> to vector<8x256xf32>
    %128 = vector.shape_cast %125 : vector<8x256xf32> to vector<1x8x256xf32>
    tpu.vector_store %arg14[%c0_221, %c0_222, %c0_223], %128 {strides = array<i32>} : memref<1x8x384xf32, #tpu.memory_space<vmem>>, vector<1x8x256xf32>,
    %c0_224 = arith.constant 0 : index
    %c0_225 = arith.constant 0 : index
    %c0_226 = arith.constant 0 : index
    %129 = vector.load %arg14[%c0_224, %c0_225, %c0_226] : memref<1x8x384xf32, #tpu.memory_space<vmem>>, vector<1x8x256xf32>
    %c0_227 = arith.constant 0 : index
    %c0_228 = arith.constant 0 : index
    %c0_229 = arith.constant 0 : index
    %130 = vector.load %arg15[%c0_227, %c0_228, %c0_229] : memref<1x288x256xf32, #tpu.memory_space<vmem>>, vector<1x8x256xf32>
    tpu.vector_store %arg15[%c0_227, %c0_228, %c0_229], %129 {strides = array<i32>} : memref<1x288x256xf32, #tpu.memory_space<vmem>>, vector<1x8x256xf32>,
    %c0_230 = arith.constant 0 : index
    %c0_231 = arith.constant 0 : index
    %c1_232 = arith.constant 1 : index
    %131 = vector.load %arg14[%c0_230, %c0_231, %c1_232] : memref<1x8x384xf32, #tpu.memory_space<vmem>>, vector<1x8x256xf32>
    %c0_233 = arith.constant 0 : index
    %c8_234 = arith.constant 8 : index
    %c0_235 = arith.constant 0 : index
    %132 = vector.load %arg15[%c0_233, %c8_234, %c0_235] : memref<1x288x256xf32, #tpu.memory_space<vmem>>, vector<1x8x256xf32>
    tpu.vector_store %arg15[%c0_233, %c8_234, %c0_235], %131 {strides = array<i32>} : memref<1x288x256xf32, #tpu.memory_space<vmem>>, vector<1x8x256xf32>,
    %c0_236 = arith.constant 0 : index
    %c0_237 = arith.constant 0 : index
    %c2_238 = arith.constant 2 : index
    %133 = vector.load %arg14[%c0_236, %c0_237, %c2_238] : memref<1x8x384xf32, #tpu.memory_space<vmem>>, vector<1x8x256xf32>
    %c0_239 = arith.constant 0 : index
    %c16_240 = arith.constant 16 : index
    %c0_241 = arith.constant 0 : index
    %134 = vector.load %arg15[%c0_239, %c16_240, %c0_241] : memref<1x288x256xf32, #tpu.memory_space<vmem>>, vector<1x8x256xf32>
    tpu.vector_store %arg15[%c0_239, %c16_240, %c0_241], %133 {strides = array<i32>} : memref<1x288x256xf32, #tpu.memory_space<vmem>>, vector<1x8x256xf32>,
    %c0_242 = arith.constant 0 : index
    %c0_243 = arith.constant 0 : index
    %c3_244 = arith.constant 3 : index
    %135 = vector.load %arg14[%c0_242, %c0_243, %c3_244] : memref<1x8x384xf32, #tpu.memory_space<vmem>>, vector<1x8x256xf32>
    %c0_245 = arith.constant 0 : index
    %c24_246 = arith.constant 24 : index
    %c0_247 = arith.constant 0 : index
    %136 = vector.load %arg15[%c0_245, %c24_246, %c0_247] : memref<1x288x256xf32, #tpu.memory_space<vmem>>, vector<1x8x256xf32>
    tpu.vector_store %arg15[%c0_245, %c24_246, %c0_247], %135 {strides = array<i32>} : memref<1x288x256xf32, #tpu.memory_space<vmem>>, vector<1x8x256xf32>,
    %c0_248 = arith.constant 0 : index
    %c0_249 = arith.constant 0 : index
    %c4 = arith.constant 4 : index
    %137 = vector.load %arg14[%c0_248, %c0_249, %c4] : memref<1x8x384xf32, #tpu.memory_space<vmem>>, vector<1x8x256xf32>
    %c0_250 = arith.constant 0 : index
    %c32_251 = arith.constant 32 : index
    %c0_252 = arith.constant 0 : index
    %138 = vector.load %arg15[%c0_250, %c32_251, %c0_252] : memref<1x288x256xf32, #tpu.memory_space<vmem>>, vector<1x8x256xf32>
    tpu.vector_store %arg15[%c0_250, %c32_251, %c0_252], %137 {strides = array<i32>} : memref<1x288x256xf32, #tpu.memory_space<vmem>>, vector<1x8x256xf32>,
    %c0_253 = arith.constant 0 : index
    %c0_254 = arith.constant 0 : index
    %c5 = arith.constant 5 : index
    %139 = vector.load %arg14[%c0_253, %c0_254, %c5] : memref<1x8x384xf32, #tpu.memory_space<vmem>>, vector<1x8x256xf32>
    %c0_255 = arith.constant 0 : index
    %c40_256 = arith.constant 40 : index
    %c0_257 = arith.constant 0 : index
    %140 = vector.load %arg15[%c0_255, %c40_256, %c0_257] : memref<1x288x256xf32, #tpu.memory_space<vmem>>, vector<1x8x256xf32>
    tpu.vector_store %arg15[%c0_255, %c40_256, %c0_257], %139 {strides = array<i32>} : memref<1x288x256xf32, #tpu.memory_space<vmem>>, vector<1x8x256xf32>,
    %c0_258 = arith.constant 0 : index
    %c0_259 = arith.constant 0 : index
    %c16_260 = arith.constant 16 : index
    %141 = vector.load %arg14[%c0_258, %c0_259, %c16_260] : memref<1x8x384xf32, #tpu.memory_space<vmem>>, vector<1x8x256xf32>
    %c0_261 = arith.constant 0 : index
    %c48_262 = arith.constant 48 : index
    %c0_263 = arith.constant 0 : index
    %142 = vector.load %arg15[%c0_261, %c48_262, %c0_263] : memref<1x288x256xf32, #tpu.memory_space<vmem>>, vector<1x8x256xf32>
    tpu.vector_store %arg15[%c0_261, %c48_262, %c0_263], %141 {strides = array<i32>} : memref<1x288x256xf32, #tpu.memory_space<vmem>>, vector<1x8x256xf32>,
    %c0_264 = arith.constant 0 : index
    %c0_265 = arith.constant 0 : index
    %c17_266 = arith.constant 17 : index
    %143 = vector.load %arg14[%c0_264, %c0_265, %c17_266] : memref<1x8x384xf32, #tpu.memory_space<vmem>>, vector<1x8x256xf32>
    %c0_267 = arith.constant 0 : index
    %c56_268 = arith.constant 56 : index
    %c0_269 = arith.constant 0 : index
    %144 = vector.load %arg15[%c0_267, %c56_268, %c0_269] : memref<1x288x256xf32, #tpu.memory_space<vmem>>, vector<1x8x256xf32>
    tpu.vector_store %arg15[%c0_267, %c56_268, %c0_269], %143 {strides = array<i32>} : memref<1x288x256xf32, #tpu.memory_space<vmem>>, vector<1x8x256xf32>,
    %c0_270 = arith.constant 0 : index
    %c0_271 = arith.constant 0 : index
    %c18_272 = arith.constant 18 : index
    %145 = vector.load %arg14[%c0_270, %c0_271, %c18_272] : memref<1x8x384xf32, #tpu.memory_space<vmem>>, vector<1x8x256xf32>
    %c0_273 = arith.constant 0 : index
    %c64_274 = arith.constant 64 : index
    %c0_275 = arith.constant 0 : index
    %146 = vector.load %arg15[%c0_273, %c64_274, %c0_275] : memref<1x288x256xf32, #tpu.memory_space<vmem>>, vector<1x8x256xf32>
    tpu.vector_store %arg15[%c0_273, %c64_274, %c0_275], %145 {strides = array<i32>} : memref<1x288x256xf32, #tpu.memory_space<vmem>>, vector<1x8x256xf32>,
    %c0_276 = arith.constant 0 : index
    %c0_277 = arith.constant 0 : index
    %c19 = arith.constant 19 : index
    %147 = vector.load %arg14[%c0_276, %c0_277, %c19] : memref<1x8x384xf32, #tpu.memory_space<vmem>>, vector<1x8x256xf32>
    %c0_278 = arith.constant 0 : index
    %c72_279 = arith.constant 72 : index
    %c0_280 = arith.constant 0 : index
    %148 = vector.load %arg15[%c0_278, %c72_279, %c0_280] : memref<1x288x256xf32, #tpu.memory_space<vmem>>, vector<1x8x256xf32>
    tpu.vector_store %arg15[%c0_278, %c72_279, %c0_280], %147 {strides = array<i32>} : memref<1x288x256xf32, #tpu.memory_space<vmem>>, vector<1x8x256xf32>,
    %c0_281 = arith.constant 0 : index
    %c0_282 = arith.constant 0 : index
    %c20 = arith.constant 20 : index
    %149 = vector.load %arg14[%c0_281, %c0_282, %c20] : memref<1x8x384xf32, #tpu.memory_space<vmem>>, vector<1x8x256xf32>
    %c0_283 = arith.constant 0 : index
    %c80_284 = arith.constant 80 : index
    %c0_285 = arith.constant 0 : index
    %150 = vector.load %arg15[%c0_283, %c80_284, %c0_285] : memref<1x288x256xf32, #tpu.memory_space<vmem>>, vector<1x8x256xf32>
    tpu.vector_store %arg15[%c0_283, %c80_284, %c0_285], %149 {strides = array<i32>} : memref<1x288x256xf32, #tpu.memory_space<vmem>>, vector<1x8x256xf32>,
    %c0_286 = arith.constant 0 : index
    %c0_287 = arith.constant 0 : index
    %c21 = arith.constant 21 : index
    %151 = vector.load %arg14[%c0_286, %c0_287, %c21] : memref<1x8x384xf32, #tpu.memory_space<vmem>>, vector<1x8x256xf32>
    %c0_288 = arith.constant 0 : index
    %c88_289 = arith.constant 88 : index
    %c0_290 = arith.constant 0 : index
    %152 = vector.load %arg15[%c0_288, %c88_289, %c0_290] : memref<1x288x256xf32, #tpu.memory_space<vmem>>, vector<1x8x256xf32>
    tpu.vector_store %arg15[%c0_288, %c88_289, %c0_290], %151 {strides = array<i32>} : memref<1x288x256xf32, #tpu.memory_space<vmem>>, vector<1x8x256xf32>,
    %c0_291 = arith.constant 0 : index
    %c0_292 = arith.constant 0 : index
    %c32_293 = arith.constant 32 : index
    %153 = vector.load %arg14[%c0_291, %c0_292, %c32_293] : memref<1x8x384xf32, #tpu.memory_space<vmem>>, vector<1x8x256xf32>
    %c0_294 = arith.constant 0 : index
    %c96_295 = arith.constant 96 : index
    %c0_296 = arith.constant 0 : index
    %154 = vector.load %arg15[%c0_294, %c96_295, %c0_296] : memref<1x288x256xf32, #tpu.memory_space<vmem>>, vector<1x8x256xf32>
    tpu.vector_store %arg15[%c0_294, %c96_295, %c0_296], %153 {strides = array<i32>} : memref<1x288x256xf32, #tpu.memory_space<vmem>>, vector<1x8x256xf32>,
    %c0_297 = arith.constant 0 : index
    %c0_298 = arith.constant 0 : index
    %c33_299 = arith.constant 33 : index
    %155 = vector.load %arg14[%c0_297, %c0_298, %c33_299] : memref<1x8x384xf32, #tpu.memory_space<vmem>>, vector<1x8x256xf32>
    %c0_300 = arith.constant 0 : index
    %c104_301 = arith.constant 104 : index
    %c0_302 = arith.constant 0 : index
    %156 = vector.load %arg15[%c0_300, %c104_301, %c0_302] : memref<1x288x256xf32, #tpu.memory_space<vmem>>, vector<1x8x256xf32>
    tpu.vector_store %arg15[%c0_300, %c104_301, %c0_302], %155 {strides = array<i32>} : memref<1x288x256xf32, #tpu.memory_space<vmem>>, vector<1x8x256xf32>,
    %c0_303 = arith.constant 0 : index
    %c0_304 = arith.constant 0 : index
    %c34_305 = arith.constant 34 : index
    %157 = vector.load %arg14[%c0_303, %c0_304, %c34_305] : memref<1x8x384xf32, #tpu.memory_space<vmem>>, vector<1x8x256xf32>
    %c0_306 = arith.constant 0 : index
    %c112_307 = arith.constant 112 : index
    %c0_308 = arith.constant 0 : index
    %158 = vector.load %arg15[%c0_306, %c112_307, %c0_308] : memref<1x288x256xf32, #tpu.memory_space<vmem>>, vector<1x8x256xf32>
    tpu.vector_store %arg15[%c0_306, %c112_307, %c0_308], %157 {strides = array<i32>} : memref<1x288x256xf32, #tpu.memory_space<vmem>>, vector<1x8x256xf32>,
    %c0_309 = arith.constant 0 : index
    %c0_310 = arith.constant 0 : index
    %c35 = arith.constant 35 : index
    %159 = vector.load %arg14[%c0_309, %c0_310, %c35] : memref<1x8x384xf32, #tpu.memory_space<vmem>>, vector<1x8x256xf32>
    %c0_311 = arith.constant 0 : index
    %c120_312 = arith.constant 120 : index
    %c0_313 = arith.constant 0 : index
    %160 = vector.load %arg15[%c0_311, %c120_312, %c0_313] : memref<1x288x256xf32, #tpu.memory_space<vmem>>, vector<1x8x256xf32>
    tpu.vector_store %arg15[%c0_311, %c120_312, %c0_313], %159 {strides = array<i32>} : memref<1x288x256xf32, #tpu.memory_space<vmem>>, vector<1x8x256xf32>,
    %c0_314 = arith.constant 0 : index
    %c0_315 = arith.constant 0 : index
    %c36 = arith.constant 36 : index
    %161 = vector.load %arg14[%c0_314, %c0_315, %c36] : memref<1x8x384xf32, #tpu.memory_space<vmem>>, vector<1x8x256xf32>
    %c0_316 = arith.constant 0 : index
    %c128_317 = arith.constant 128 : index
    %c0_318 = arith.constant 0 : index
    %162 = vector.load %arg15[%c0_316, %c128_317, %c0_318] : memref<1x288x256xf32, #tpu.memory_space<vmem>>, vector<1x8x256xf32>
    tpu.vector_store %arg15[%c0_316, %c128_317, %c0_318], %161 {strides = array<i32>} : memref<1x288x256xf32, #tpu.memory_space<vmem>>, vector<1x8x256xf32>,
    %c0_319 = arith.constant 0 : index
    %c0_320 = arith.constant 0 : index
    %c37 = arith.constant 37 : index
    %163 = vector.load %arg14[%c0_319, %c0_320, %c37] : memref<1x8x384xf32, #tpu.memory_space<vmem>>, vector<1x8x256xf32>
    %c0_321 = arith.constant 0 : index
    %c136_322 = arith.constant 136 : index
    %c0_323 = arith.constant 0 : index
    %164 = vector.load %arg15[%c0_321, %c136_322, %c0_323] : memref<1x288x256xf32, #tpu.memory_space<vmem>>, vector<1x8x256xf32>
    tpu.vector_store %arg15[%c0_321, %c136_322, %c0_323], %163 {strides = array<i32>} : memref<1x288x256xf32, #tpu.memory_space<vmem>>, vector<1x8x256xf32>,
    %c0_324 = arith.constant 0 : index
    %c0_325 = arith.constant 0 : index
    %c48_326 = arith.constant 48 : index
    %165 = vector.load %arg14[%c0_324, %c0_325, %c48_326] : memref<1x8x384xf32, #tpu.memory_space<vmem>>, vector<1x8x256xf32>
    %c0_327 = arith.constant 0 : index
    %c144_328 = arith.constant 144 : index
    %c0_329 = arith.constant 0 : index
    %166 = vector.load %arg15[%c0_327, %c144_328, %c0_329] : memref<1x288x256xf32, #tpu.memory_space<vmem>>, vector<1x8x256xf32>
    tpu.vector_store %arg15[%c0_327, %c144_328, %c0_329], %165 {strides = array<i32>} : memref<1x288x256xf32, #tpu.memory_space<vmem>>, vector<1x8x256xf32>,
    %c0_330 = arith.constant 0 : index
    %c0_331 = arith.constant 0 : index
    %c49 = arith.constant 49 : index
    %167 = vector.load %arg14[%c0_330, %c0_331, %c49] : memref<1x8x384xf32, #tpu.memory_space<vmem>>, vector<1x8x256xf32>
    %c0_332 = arith.constant 0 : index
    %c152_333 = arith.constant 152 : index
    %c0_334 = arith.constant 0 : index
    %168 = vector.load %arg15[%c0_332, %c152_333, %c0_334] : memref<1x288x256xf32, #tpu.memory_space<vmem>>, vector<1x8x256xf32>
    tpu.vector_store %arg15[%c0_332, %c152_333, %c0_334], %167 {strides = array<i32>} : memref<1x288x256xf32, #tpu.memory_space<vmem>>, vector<1x8x256xf32>,
    %c0_335 = arith.constant 0 : index
    %c0_336 = arith.constant 0 : index
    %c50 = arith.constant 50 : index
    %169 = vector.load %arg14[%c0_335, %c0_336, %c50] : memref<1x8x384xf32, #tpu.memory_space<vmem>>, vector<1x8x256xf32>
    %c0_337 = arith.constant 0 : index
    %c160_338 = arith.constant 160 : index
    %c0_339 = arith.constant 0 : index
    %170 = vector.load %arg15[%c0_337, %c160_338, %c0_339] : memref<1x288x256xf32, #tpu.memory_space<vmem>>, vector<1x8x256xf32>
    tpu.vector_store %arg15[%c0_337, %c160_338, %c0_339], %169 {strides = array<i32>} : memref<1x288x256xf32, #tpu.memory_space<vmem>>, vector<1x8x256xf32>,
    %c0_340 = arith.constant 0 : index
    %c0_341 = arith.constant 0 : index
    %c51 = arith.constant 51 : index
    %171 = vector.load %arg14[%c0_340, %c0_341, %c51] : memref<1x8x384xf32, #tpu.memory_space<vmem>>, vector<1x8x256xf32>
    %c0_342 = arith.constant 0 : index
    %c168_343 = arith.constant 168 : index
    %c0_344 = arith.constant 0 : index
    %172 = vector.load %arg15[%c0_342, %c168_343, %c0_344] : memref<1x288x256xf32, #tpu.memory_space<vmem>>, vector<1x8x256xf32>
    tpu.vector_store %arg15[%c0_342, %c168_343, %c0_344], %171 {strides = array<i32>} : memref<1x288x256xf32, #tpu.memory_space<vmem>>, vector<1x8x256xf32>,
    %c0_345 = arith.constant 0 : index
    %c0_346 = arith.constant 0 : index
    %c52 = arith.constant 52 : index
    %173 = vector.load %arg14[%c0_345, %c0_346, %c52] : memref<1x8x384xf32, #tpu.memory_space<vmem>>, vector<1x8x256xf32>
    %c0_347 = arith.constant 0 : index
    %c176_348 = arith.constant 176 : index
    %c0_349 = arith.constant 0 : index
    %174 = vector.load %arg15[%c0_347, %c176_348, %c0_349] : memref<1x288x256xf32, #tpu.memory_space<vmem>>, vector<1x8x256xf32>
    tpu.vector_store %arg15[%c0_347, %c176_348, %c0_349], %173 {strides = array<i32>} : memref<1x288x256xf32, #tpu.memory_space<vmem>>, vector<1x8x256xf32>,
    %c0_350 = arith.constant 0 : index
    %c0_351 = arith.constant 0 : index
    %c53 = arith.constant 53 : index
    %175 = vector.load %arg14[%c0_350, %c0_351, %c53] : memref<1x8x384xf32, #tpu.memory_space<vmem>>, vector<1x8x256xf32>
    %c0_352 = arith.constant 0 : index
    %c184_353 = arith.constant 184 : index
    %c0_354 = arith.constant 0 : index
    %176 = vector.load %arg15[%c0_352, %c184_353, %c0_354] : memref<1x288x256xf32, #tpu.memory_space<vmem>>, vector<1x8x256xf32>
    tpu.vector_store %arg15[%c0_352, %c184_353, %c0_354], %175 {strides = array<i32>} : memref<1x288x256xf32, #tpu.memory_space<vmem>>, vector<1x8x256xf32>,
    %c0_355 = arith.constant 0 : index
    %c0_356 = arith.constant 0 : index
    %c64_357 = arith.constant 64 : index
    %177 = vector.load %arg14[%c0_355, %c0_356, %c64_357] : memref<1x8x384xf32, #tpu.memory_space<vmem>>, vector<1x8x256xf32>
    %c0_358 = arith.constant 0 : index
    %c192_359 = arith.constant 192 : index
    %c0_360 = arith.constant 0 : index
    %178 = vector.load %arg15[%c0_358, %c192_359, %c0_360] : memref<1x288x256xf32, #tpu.memory_space<vmem>>, vector<1x8x256xf32>
    tpu.vector_store %arg15[%c0_358, %c192_359, %c0_360], %177 {strides = array<i32>} : memref<1x288x256xf32, #tpu.memory_space<vmem>>, vector<1x8x256xf32>,
    %c0_361 = arith.constant 0 : index
    %c0_362 = arith.constant 0 : index
    %c65 = arith.constant 65 : index
    %179 = vector.load %arg14[%c0_361, %c0_362, %c65] : memref<1x8x384xf32, #tpu.memory_space<vmem>>, vector<1x8x256xf32>
    %c0_363 = arith.constant 0 : index
    %c200_364 = arith.constant 200 : index
    %c0_365 = arith.constant 0 : index
    %180 = vector.load %arg15[%c0_363, %c200_364, %c0_365] : memref<1x288x256xf32, #tpu.memory_space<vmem>>, vector<1x8x256xf32>
    tpu.vector_store %arg15[%c0_363, %c200_364, %c0_365], %179 {strides = array<i32>} : memref<1x288x256xf32, #tpu.memory_space<vmem>>, vector<1x8x256xf32>,
    %c0_366 = arith.constant 0 : index
    %c0_367 = arith.constant 0 : index
    %c66 = arith.constant 66 : index
    %181 = vector.load %arg14[%c0_366, %c0_367, %c66] : memref<1x8x384xf32, #tpu.memory_space<vmem>>, vector<1x8x256xf32>
    %c0_368 = arith.constant 0 : index
    %c208_369 = arith.constant 208 : index
    %c0_370 = arith.constant 0 : index
    %182 = vector.load %arg15[%c0_368, %c208_369, %c0_370] : memref<1x288x256xf32, #tpu.memory_space<vmem>>, vector<1x8x256xf32>
    tpu.vector_store %arg15[%c0_368, %c208_369, %c0_370], %181 {strides = array<i32>} : memref<1x288x256xf32, #tpu.memory_space<vmem>>, vector<1x8x256xf32>,
    %c0_371 = arith.constant 0 : index
    %c0_372 = arith.constant 0 : index
    %c67 = arith.constant 67 : index
    %183 = vector.load %arg14[%c0_371, %c0_372, %c67] : memref<1x8x384xf32, #tpu.memory_space<vmem>>, vector<1x8x256xf32>
    %c0_373 = arith.constant 0 : index
    %c216_374 = arith.constant 216 : index
    %c0_375 = arith.constant 0 : index
    %184 = vector.load %arg15[%c0_373, %c216_374, %c0_375] : memref<1x288x256xf32, #tpu.memory_space<vmem>>, vector<1x8x256xf32>
    tpu.vector_store %arg15[%c0_373, %c216_374, %c0_375], %183 {strides = array<i32>} : memref<1x288x256xf32, #tpu.memory_space<vmem>>, vector<1x8x256xf32>,
    %c0_376 = arith.constant 0 : index
    %c0_377 = arith.constant 0 : index
    %c68 = arith.constant 68 : index
    %185 = vector.load %arg14[%c0_376, %c0_377, %c68] : memref<1x8x384xf32, #tpu.memory_space<vmem>>, vector<1x8x256xf32>
    %c0_378 = arith.constant 0 : index
    %c224_379 = arith.constant 224 : index
    %c0_380 = arith.constant 0 : index
    %186 = vector.load %arg15[%c0_378, %c224_379, %c0_380] : memref<1x288x256xf32, #tpu.memory_space<vmem>>, vector<1x8x256xf32>
    tpu.vector_store %arg15[%c0_378, %c224_379, %c0_380], %185 {strides = array<i32>} : memref<1x288x256xf32, #tpu.memory_space<vmem>>, vector<1x8x256xf32>,
    %c0_381 = arith.constant 0 : index
    %c0_382 = arith.constant 0 : index
    %c69 = arith.constant 69 : index
    %187 = vector.load %arg14[%c0_381, %c0_382, %c69] : memref<1x8x384xf32, #tpu.memory_space<vmem>>, vector<1x8x256xf32>
    %c0_383 = arith.constant 0 : index
    %c232_384 = arith.constant 232 : index
    %c0_385 = arith.constant 0 : index
    %188 = vector.load %arg15[%c0_383, %c232_384, %c0_385] : memref<1x288x256xf32, #tpu.memory_space<vmem>>, vector<1x8x256xf32>
    tpu.vector_store %arg15[%c0_383, %c232_384, %c0_385], %187 {strides = array<i32>} : memref<1x288x256xf32, #tpu.memory_space<vmem>>, vector<1x8x256xf32>,
    %c0_386 = arith.constant 0 : index
    %c0_387 = arith.constant 0 : index
    %c80_388 = arith.constant 80 : index
    %189 = vector.load %arg14[%c0_386, %c0_387, %c80_388] : memref<1x8x384xf32, #tpu.memory_space<vmem>>, vector<1x8x256xf32>
    %c0_389 = arith.constant 0 : index
    %c240_390 = arith.constant 240 : index
    %c0_391 = arith.constant 0 : index
    %190 = vector.load %arg15[%c0_389, %c240_390, %c0_391] : memref<1x288x256xf32, #tpu.memory_space<vmem>>, vector<1x8x256xf32>
    tpu.vector_store %arg15[%c0_389, %c240_390, %c0_391], %189 {strides = array<i32>} : memref<1x288x256xf32, #tpu.memory_space<vmem>>, vector<1x8x256xf32>,
    %c0_392 = arith.constant 0 : index
    %c0_393 = arith.constant 0 : index
    %c81 = arith.constant 81 : index
    %191 = vector.load %arg14[%c0_392, %c0_393, %c81] : memref<1x8x384xf32, #tpu.memory_space<vmem>>, vector<1x8x256xf32>
    %c0_394 = arith.constant 0 : index
    %c248_395 = arith.constant 248 : index
    %c0_396 = arith.constant 0 : index
    %192 = vector.load %arg15[%c0_394, %c248_395, %c0_396] : memref<1x288x256xf32, #tpu.memory_space<vmem>>, vector<1x8x256xf32>
    tpu.vector_store %arg15[%c0_394, %c248_395, %c0_396], %191 {strides = array<i32>} : memref<1x288x256xf32, #tpu.memory_space<vmem>>, vector<1x8x256xf32>,
    %c0_397 = arith.constant 0 : index
    %c0_398 = arith.constant 0 : index
    %c82 = arith.constant 82 : index
    %193 = vector.load %arg14[%c0_397, %c0_398, %c82] : memref<1x8x384xf32, #tpu.memory_space<vmem>>, vector<1x8x256xf32>
    %c0_399 = arith.constant 0 : index
    %c256_400 = arith.constant 256 : index
    %c0_401 = arith.constant 0 : index
    %194 = vector.load %arg15[%c0_399, %c256_400, %c0_401] : memref<1x288x256xf32, #tpu.memory_space<vmem>>, vector<1x8x256xf32>
    tpu.vector_store %arg15[%c0_399, %c256_400, %c0_401], %193 {strides = array<i32>} : memref<1x288x256xf32, #tpu.memory_space<vmem>>, vector<1x8x256xf32>,
    %c0_402 = arith.constant 0 : index
    %c0_403 = arith.constant 0 : index
    %c83 = arith.constant 83 : index
    %195 = vector.load %arg14[%c0_402, %c0_403, %c83] : memref<1x8x384xf32, #tpu.memory_space<vmem>>, vector<1x8x256xf32>
    %c0_404 = arith.constant 0 : index
    %c264_405 = arith.constant 264 : index
    %c0_406 = arith.constant 0 : index
    %196 = vector.load %arg15[%c0_404, %c264_405, %c0_406] : memref<1x288x256xf32, #tpu.memory_space<vmem>>, vector<1x8x256xf32>
    tpu.vector_store %arg15[%c0_404, %c264_405, %c0_406], %195 {strides = array<i32>} : memref<1x288x256xf32, #tpu.memory_space<vmem>>, vector<1x8x256xf32>,
    %c0_407 = arith.constant 0 : index
    %c0_408 = arith.constant 0 : index
    %c84 = arith.constant 84 : index
    %197 = vector.load %arg14[%c0_407, %c0_408, %c84] : memref<1x8x384xf32, #tpu.memory_space<vmem>>, vector<1x8x256xf32>
    %c0_409 = arith.constant 0 : index
    %c272_410 = arith.constant 272 : index
    %c0_411 = arith.constant 0 : index
    %198 = vector.load %arg15[%c0_409, %c272_410, %c0_411] : memref<1x288x256xf32, #tpu.memory_space<vmem>>, vector<1x8x256xf32>
    tpu.vector_store %arg15[%c0_409, %c272_410, %c0_411], %197 {strides = array<i32>} : memref<1x288x256xf32, #tpu.memory_space<vmem>>, vector<1x8x256xf32>,
    %c0_412 = arith.constant 0 : index
    %c0_413 = arith.constant 0 : index
    %c85 = arith.constant 85 : index
    %199 = vector.load %arg14[%c0_412, %c0_413, %c85] : memref<1x8x384xf32, #tpu.memory_space<vmem>>, vector<1x8x256xf32>
    %c0_414 = arith.constant 0 : index
    %c280_415 = arith.constant 280 : index
    %c0_416 = arith.constant 0 : index
    %200 = vector.load %arg15[%c0_414, %c280_415, %c0_416] : memref<1x288x256xf32, #tpu.memory_space<vmem>>, vector<1x8x256xf32>
    tpu.vector_store %arg15[%c0_414, %c280_415, %c0_416], %199 {strides = array<i32>} : memref<1x288x256xf32, #tpu.memory_space<vmem>>, vector<1x8x256xf32>,
    %c0_417 = arith.constant 0 : index
    %c0_418 = arith.constant 0 : index
    %201 = vector.load %arg4[%c0_417, %c0_418] : memref<64x288xf32, #tpu.memory_space<vmem>>, vector<64x288xf32>
    %c0_419 = arith.constant 0 : index
    %c0_420 = arith.constant 0 : index
    %c0_421 = arith.constant 0 : index
    %202 = vector.load %arg15[%c0_419, %c0_420, %c0_421] : memref<1x288x256xf32, #tpu.memory_space<vmem>>, vector<1x288x256xf32>
    %203 = vector.shape_cast %202 : vector<1x288x256xf32> to vector<288x256xf32>
    %cst_422 = arith.constant dense<0.000000e+00> : vector<64x256xf32>
    %204 = tpu.matmul %201, %203, %cst_422 {dimension_numbers = #tpu.dot_dimension_numbers<[1], [0], [0], [1], [0, 0, 1, 1], [], []>} : vector<64x288xf32>, vector<288x256xf32>, vector<64x256xf32> -> vector<64x256xf32>
    %205 = vector.extract_strided_slice %204 {offsets = [0, 0], sizes = [16, 256], strides = [1, 1]} : vector<64x256xf32> to vector<16x256xf32>
    %206 = vector.extract_strided_slice %204 {offsets = [16, 0], sizes = [16, 256], strides = [1, 1]} : vector<64x256xf32> to vector<16x256xf32>
    %207 = arith.maximumf %205, %206 : vector<16x256xf32>
    %208 = vector.extract_strided_slice %204 {offsets = [32, 0], sizes = [16, 256], strides = [1, 1]} : vector<64x256xf32> to vector<16x256xf32>
    %209 = vector.extract_strided_slice %204 {offsets = [48, 0], sizes = [16, 256], strides = [1, 1]} : vector<64x256xf32> to vector<16x256xf32>
    %210 = arith.maximumf %208, %209 : vector<16x256xf32>
    %211 = arith.maximumf %207, %210 : vector<16x256xf32>
    %c0_423 = arith.constant 0 : index
    %c0_424 = arith.constant 0 : index
    %212 = vector.load %arg5[%c0_423, %c0_424] : memref<16x1xf32, #tpu.memory_space<vmem>>, vector<16x1xf32>
    %213 = vector.broadcast %212 : vector<16x1xf32> to vector<16x256xf32>
    %214 = arith.addf %211, %213 : vector<16x256xf32>
    %cst_425 = arith.constant 0.000000e+00 : f32
    %215 = vector.broadcast %cst_425 : f32 to vector<16x256xf32>
    %216 = arith.maximumf %214, %215 : vector<16x256xf32>
    %c0_426 = arith.constant 0 : index
    %c0_427 = arith.constant 0 : index
    %c0_428 = arith.constant 0 : index
    %217 = vector.load %arg16[%c0_426, %c0_427, %c0_428] : memref<1x16x256xf32, #tpu.memory_space<vmem>>, vector<1x16x256xf32>
    %218 = vector.shape_cast %217 : vector<1x16x256xf32> to vector<16x256xf32>
    %219 = vector.shape_cast %216 : vector<16x256xf32> to vector<1x16x256xf32>
    tpu.vector_store %arg16[%c0_426, %c0_427, %c0_428], %219 {strides = array<i32>} : memref<1x16x256xf32, #tpu.memory_space<vmem>>, vector<1x16x256xf32>,
    %c0_429 = arith.constant 0 : index
    %c0_430 = arith.constant 0 : index
    %c0_431 = arith.constant 0 : index
    %220 = vector.load %arg16[%c0_429, %c0_430, %c0_431] : memref<1x16x256xf32, #tpu.memory_space<vmem>>, vector<1x1x256xf32>
    %221 = vector.shape_cast %220 : vector<1x1x256xf32> to vector<1x256xf32>
    %c0_432 = arith.constant 0 : index
    %c0_433 = arith.constant 0 : index
    %c0_434 = arith.constant 0 : index
    %222 = vector.load %arg6[%c0_432, %c0_433, %c0_434] : memref<16x256x128xf32, #tpu.memory_space<vmem>>, vector<1x256x128xf32>
    %223 = vector.shape_cast %222 : vector<1x256x128xf32> to vector<256x128xf32>
    %cst_435 = arith.constant dense<0.000000e+00> : vector<1x128xf32>
    %224 = tpu.matmul %221, %223, %cst_435 {dimension_numbers = #tpu.dot_dimension_numbers<[1], [0], [0], [1], [0, 0, 1, 1], [], []>} : vector<1x256xf32>, vector<256x128xf32>, vector<1x128xf32> -> vector<1x128xf32>
    %c0_436 = arith.constant 0 : index
    %c1_437 = arith.constant 1 : index
    %c0_438 = arith.constant 0 : index
    %225 = vector.load %arg16[%c0_436, %c1_437, %c0_438] : memref<1x16x256xf32, #tpu.memory_space<vmem>>, vector<1x1x256xf32>
    %226 = vector.shape_cast %225 : vector<1x1x256xf32> to vector<1x256xf32>
    %c1_439 = arith.constant 1 : index
    %c0_440 = arith.constant 0 : index
    %c0_441 = arith.constant 0 : index
    %227 = vector.load %arg6[%c1_439, %c0_440, %c0_441] : memref<16x256x128xf32, #tpu.memory_space<vmem>>, vector<1x256x128xf32>
    %228 = vector.shape_cast %227 : vector<1x256x128xf32> to vector<256x128xf32>
    %cst_442 = arith.constant dense<0.000000e+00> : vector<1x128xf32>
    %229 = tpu.matmul %226, %228, %cst_442 {dimension_numbers = #tpu.dot_dimension_numbers<[1], [0], [0], [1], [0, 0, 1, 1], [], []>} : vector<1x256xf32>, vector<256x128xf32>, vector<1x128xf32> -> vector<1x128xf32>
    %230 = arith.addf %224, %229 : vector<1x128xf32>
    %c0_443 = arith.constant 0 : index
    %c2_444 = arith.constant 2 : index
    %c0_445 = arith.constant 0 : index
    %231 = vector.load %arg16[%c0_443, %c2_444, %c0_445] : memref<1x16x256xf32, #tpu.memory_space<vmem>>, vector<1x1x256xf32>
    %232 = vector.shape_cast %231 : vector<1x1x256xf32> to vector<1x256xf32>
    %c2_446 = arith.constant 2 : index
    %c0_447 = arith.constant 0 : index
    %c0_448 = arith.constant 0 : index
    %233 = vector.load %arg6[%c2_446, %c0_447, %c0_448] : memref<16x256x128xf32, #tpu.memory_space<vmem>>, vector<1x256x128xf32>
    %234 = vector.shape_cast %233 : vector<1x256x128xf32> to vector<256x128xf32>
    %cst_449 = arith.constant dense<0.000000e+00> : vector<1x128xf32>
    %235 = tpu.matmul %232, %234, %cst_449 {dimension_numbers = #tpu.dot_dimension_numbers<[1], [0], [0], [1], [0, 0, 1, 1], [], []>} : vector<1x256xf32>, vector<256x128xf32>, vector<1x128xf32> -> vector<1x128xf32>
    %236 = arith.addf %230, %235 : vector<1x128xf32>
    %c0_450 = arith.constant 0 : index
    %c3_451 = arith.constant 3 : index
    %c0_452 = arith.constant 0 : index
    %237 = vector.load %arg16[%c0_450, %c3_451, %c0_452] : memref<1x16x256xf32, #tpu.memory_space<vmem>>, vector<1x1x256xf32>
    %238 = vector.shape_cast %237 : vector<1x1x256xf32> to vector<1x256xf32>
    %c3_453 = arith.constant 3 : index
    %c0_454 = arith.constant 0 : index
    %c0_455 = arith.constant 0 : index
    %239 = vector.load %arg6[%c3_453, %c0_454, %c0_455] : memref<16x256x128xf32, #tpu.memory_space<vmem>>, vector<1x256x128xf32>
    %240 = vector.shape_cast %239 : vector<1x256x128xf32> to vector<256x128xf32>
    %cst_456 = arith.constant dense<0.000000e+00> : vector<1x128xf32>
    %241 = tpu.matmul %238, %240, %cst_456 {dimension_numbers = #tpu.dot_dimension_numbers<[1], [0], [0], [1], [0, 0, 1, 1], [], []>} : vector<1x256xf32>, vector<256x128xf32>, vector<1x128xf32> -> vector<1x128xf32>
    %242 = arith.addf %236, %241 : vector<1x128xf32>
    %c0_457 = arith.constant 0 : index
    %c4_458 = arith.constant 4 : index
    %c0_459 = arith.constant 0 : index
    %243 = vector.load %arg16[%c0_457, %c4_458, %c0_459] : memref<1x16x256xf32, #tpu.memory_space<vmem>>, vector<1x1x256xf32>
    %244 = vector.shape_cast %243 : vector<1x1x256xf32> to vector<1x256xf32>
    %c4_460 = arith.constant 4 : index
    %c0_461 = arith.constant 0 : index
    %c0_462 = arith.constant 0 : index
    %245 = vector.load %arg6[%c4_460, %c0_461, %c0_462] : memref<16x256x128xf32, #tpu.memory_space<vmem>>, vector<1x256x128xf32>
    %246 = vector.shape_cast %245 : vector<1x256x128xf32> to vector<256x128xf32>
    %cst_463 = arith.constant dense<0.000000e+00> : vector<1x128xf32>
    %247 = tpu.matmul %244, %246, %cst_463 {dimension_numbers = #tpu.dot_dimension_numbers<[1], [0], [0], [1], [0, 0, 1, 1], [], []>} : vector<1x256xf32>, vector<256x128xf32>, vector<1x128xf32> -> vector<1x128xf32>
    %248 = arith.addf %242, %247 : vector<1x128xf32>
    %c0_464 = arith.constant 0 : index
    %c5_465 = arith.constant 5 : index
    %c0_466 = arith.constant 0 : index
    %249 = vector.load %arg16[%c0_464, %c5_465, %c0_466] : memref<1x16x256xf32, #tpu.memory_space<vmem>>, vector<1x1x256xf32>
    %250 = vector.shape_cast %249 : vector<1x1x256xf32> to vector<1x256xf32>
    %c5_467 = arith.constant 5 : index
    %c0_468 = arith.constant 0 : index
    %c0_469 = arith.constant 0 : index
    %251 = vector.load %arg6[%c5_467, %c0_468, %c0_469] : memref<16x256x128xf32, #tpu.memory_space<vmem>>, vector<1x256x128xf32>
    %252 = vector.shape_cast %251 : vector<1x256x128xf32> to vector<256x128xf32>
    %cst_470 = arith.constant dense<0.000000e+00> : vector<1x128xf32>
    %253 = tpu.matmul %250, %252, %cst_470 {dimension_numbers = #tpu.dot_dimension_numbers<[1], [0], [0], [1], [0, 0, 1, 1], [], []>} : vector<1x256xf32>, vector<256x128xf32>, vector<1x128xf32> -> vector<1x128xf32>
    %254 = arith.addf %248, %253 : vector<1x128xf32>
    %c0_471 = arith.constant 0 : index
    %c6 = arith.constant 6 : index
    %c0_472 = arith.constant 0 : index
    %255 = vector.load %arg16[%c0_471, %c6, %c0_472] : memref<1x16x256xf32, #tpu.memory_space<vmem>>, vector<1x1x256xf32>
    %256 = vector.shape_cast %255 : vector<1x1x256xf32> to vector<1x256xf32>
    %c6_473 = arith.constant 6 : index
    %c0_474 = arith.constant 0 : index
    %c0_475 = arith.constant 0 : index
    %257 = vector.load %arg6[%c6_473, %c0_474, %c0_475] : memref<16x256x128xf32, #tpu.memory_space<vmem>>, vector<1x256x128xf32>
    %258 = vector.shape_cast %257 : vector<1x256x128xf32> to vector<256x128xf32>
    %cst_476 = arith.constant dense<0.000000e+00> : vector<1x128xf32>
    %259 = tpu.matmul %256, %258, %cst_476 {dimension_numbers = #tpu.dot_dimension_numbers<[1], [0], [0], [1], [0, 0, 1, 1], [], []>} : vector<1x256xf32>, vector<256x128xf32>, vector<1x128xf32> -> vector<1x128xf32>
    %260 = arith.addf %254, %259 : vector<1x128xf32>
    %c0_477 = arith.constant 0 : index
    %c7 = arith.constant 7 : index
    %c0_478 = arith.constant 0 : index
    %261 = vector.load %arg16[%c0_477, %c7, %c0_478] : memref<1x16x256xf32, #tpu.memory_space<vmem>>, vector<1x1x256xf32>
    %262 = vector.shape_cast %261 : vector<1x1x256xf32> to vector<1x256xf32>
    %c7_479 = arith.constant 7 : index
    %c0_480 = arith.constant 0 : index
    %c0_481 = arith.constant 0 : index
    %263 = vector.load %arg6[%c7_479, %c0_480, %c0_481] : memref<16x256x128xf32, #tpu.memory_space<vmem>>, vector<1x256x128xf32>
    %264 = vector.shape_cast %263 : vector<1x256x128xf32> to vector<256x128xf32>
    %cst_482 = arith.constant dense<0.000000e+00> : vector<1x128xf32>
    %265 = tpu.matmul %262, %264, %cst_482 {dimension_numbers = #tpu.dot_dimension_numbers<[1], [0], [0], [1], [0, 0, 1, 1], [], []>} : vector<1x256xf32>, vector<256x128xf32>, vector<1x128xf32> -> vector<1x128xf32>
    %266 = arith.addf %260, %265 : vector<1x128xf32>
    %c0_483 = arith.constant 0 : index
    %c8_484 = arith.constant 8 : index
    %c0_485 = arith.constant 0 : index
    %267 = vector.load %arg16[%c0_483, %c8_484, %c0_485] : memref<1x16x256xf32, #tpu.memory_space<vmem>>, vector<1x1x256xf32>
    %268 = vector.shape_cast %267 : vector<1x1x256xf32> to vector<1x256xf32>
    %c8_486 = arith.constant 8 : index
    %c0_487 = arith.constant 0 : index
    %c0_488 = arith.constant 0 : index
    %269 = vector.load %arg6[%c8_486, %c0_487, %c0_488] : memref<16x256x128xf32, #tpu.memory_space<vmem>>, vector<1x256x128xf32>
    %270 = vector.shape_cast %269 : vector<1x256x128xf32> to vector<256x128xf32>
    %cst_489 = arith.constant dense<0.000000e+00> : vector<1x128xf32>
    %271 = tpu.matmul %268, %270, %cst_489 {dimension_numbers = #tpu.dot_dimension_numbers<[1], [0], [0], [1], [0, 0, 1, 1], [], []>} : vector<1x256xf32>, vector<256x128xf32>, vector<1x128xf32> -> vector<1x128xf32>
    %272 = arith.addf %266, %271 : vector<1x128xf32>
    %c0_490 = arith.constant 0 : index
    %c9 = arith.constant 9 : index
    %c0_491 = arith.constant 0 : index
    %273 = vector.load %arg16[%c0_490, %c9, %c0_491] : memref<1x16x256xf32, #tpu.memory_space<vmem>>, vector<1x1x256xf32>
    %274 = vector.shape_cast %273 : vector<1x1x256xf32> to vector<1x256xf32>
    %c9_492 = arith.constant 9 : index
    %c0_493 = arith.constant 0 : index
    %c0_494 = arith.constant 0 : index
    %275 = vector.load %arg6[%c9_492, %c0_493, %c0_494] : memref<16x256x128xf32, #tpu.memory_space<vmem>>, vector<1x256x128xf32>
    %276 = vector.shape_cast %275 : vector<1x256x128xf32> to vector<256x128xf32>
    %cst_495 = arith.constant dense<0.000000e+00> : vector<1x128xf32>
    %277 = tpu.matmul %274, %276, %cst_495 {dimension_numbers = #tpu.dot_dimension_numbers<[1], [0], [0], [1], [0, 0, 1, 1], [], []>} : vector<1x256xf32>, vector<256x128xf32>, vector<1x128xf32> -> vector<1x128xf32>
    %278 = arith.addf %272, %277 : vector<1x128xf32>
    %c0_496 = arith.constant 0 : index
    %c10 = arith.constant 10 : index
    %c0_497 = arith.constant 0 : index
    %279 = vector.load %arg16[%c0_496, %c10, %c0_497] : memref<1x16x256xf32, #tpu.memory_space<vmem>>, vector<1x1x256xf32>
    %280 = vector.shape_cast %279 : vector<1x1x256xf32> to vector<1x256xf32>
    %c10_498 = arith.constant 10 : index
    %c0_499 = arith.constant 0 : index
    %c0_500 = arith.constant 0 : index
    %281 = vector.load %arg6[%c10_498, %c0_499, %c0_500] : memref<16x256x128xf32, #tpu.memory_space<vmem>>, vector<1x256x128xf32>
    %282 = vector.shape_cast %281 : vector<1x256x128xf32> to vector<256x128xf32>
    %cst_501 = arith.constant dense<0.000000e+00> : vector<1x128xf32>
    %283 = tpu.matmul %280, %282, %cst_501 {dimension_numbers = #tpu.dot_dimension_numbers<[1], [0], [0], [1], [0, 0, 1, 1], [], []>} : vector<1x256xf32>, vector<256x128xf32>, vector<1x128xf32> -> vector<1x128xf32>
    %284 = arith.addf %278, %283 : vector<1x128xf32>
    %c0_502 = arith.constant 0 : index
    %c11 = arith.constant 11 : index
    %c0_503 = arith.constant 0 : index
    %285 = vector.load %arg16[%c0_502, %c11, %c0_503] : memref<1x16x256xf32, #tpu.memory_space<vmem>>, vector<1x1x256xf32>
    %286 = vector.shape_cast %285 : vector<1x1x256xf32> to vector<1x256xf32>
    %c11_504 = arith.constant 11 : index
    %c0_505 = arith.constant 0 : index
    %c0_506 = arith.constant 0 : index
    %287 = vector.load %arg6[%c11_504, %c0_505, %c0_506] : memref<16x256x128xf32, #tpu.memory_space<vmem>>, vector<1x256x128xf32>
    %288 = vector.shape_cast %287 : vector<1x256x128xf32> to vector<256x128xf32>
    %cst_507 = arith.constant dense<0.000000e+00> : vector<1x128xf32>
    %289 = tpu.matmul %286, %288, %cst_507 {dimension_numbers = #tpu.dot_dimension_numbers<[1], [0], [0], [1], [0, 0, 1, 1], [], []>} : vector<1x256xf32>, vector<256x128xf32>, vector<1x128xf32> -> vector<1x128xf32>
    %290 = arith.addf %284, %289 : vector<1x128xf32>
    %c0_508 = arith.constant 0 : index
    %c12 = arith.constant 12 : index
    %c0_509 = arith.constant 0 : index
    %291 = vector.load %arg16[%c0_508, %c12, %c0_509] : memref<1x16x256xf32, #tpu.memory_space<vmem>>, vector<1x1x256xf32>
    %292 = vector.shape_cast %291 : vector<1x1x256xf32> to vector<1x256xf32>
    %c12_510 = arith.constant 12 : index
    %c0_511 = arith.constant 0 : index
    %c0_512 = arith.constant 0 : index
    %293 = vector.load %arg6[%c12_510, %c0_511, %c0_512] : memref<16x256x128xf32, #tpu.memory_space<vmem>>, vector<1x256x128xf32>
    %294 = vector.shape_cast %293 : vector<1x256x128xf32> to vector<256x128xf32>
    %cst_513 = arith.constant dense<0.000000e+00> : vector<1x128xf32>
    %295 = tpu.matmul %292, %294, %cst_513 {dimension_numbers = #tpu.dot_dimension_numbers<[1], [0], [0], [1], [0, 0, 1, 1], [], []>} : vector<1x256xf32>, vector<256x128xf32>, vector<1x128xf32> -> vector<1x128xf32>
    %296 = arith.addf %290, %295 : vector<1x128xf32>
    %c0_514 = arith.constant 0 : index
    %c13 = arith.constant 13 : index
    %c0_515 = arith.constant 0 : index
    %297 = vector.load %arg16[%c0_514, %c13, %c0_515] : memref<1x16x256xf32, #tpu.memory_space<vmem>>, vector<1x1x256xf32>
    %298 = vector.shape_cast %297 : vector<1x1x256xf32> to vector<1x256xf32>
    %c13_516 = arith.constant 13 : index
    %c0_517 = arith.constant 0 : index
    %c0_518 = arith.constant 0 : index
    %299 = vector.load %arg6[%c13_516, %c0_517, %c0_518] : memref<16x256x128xf32, #tpu.memory_space<vmem>>, vector<1x256x128xf32>
    %300 = vector.shape_cast %299 : vector<1x256x128xf32> to vector<256x128xf32>
    %cst_519 = arith.constant dense<0.000000e+00> : vector<1x128xf32>
    %301 = tpu.matmul %298, %300, %cst_519 {dimension_numbers = #tpu.dot_dimension_numbers<[1], [0], [0], [1], [0, 0, 1, 1], [], []>} : vector<1x256xf32>, vector<256x128xf32>, vector<1x128xf32> -> vector<1x128xf32>
    %302 = arith.addf %296, %301 : vector<1x128xf32>
    %c0_520 = arith.constant 0 : index
    %c14 = arith.constant 14 : index
    %c0_521 = arith.constant 0 : index
    %303 = vector.load %arg16[%c0_520, %c14, %c0_521] : memref<1x16x256xf32, #tpu.memory_space<vmem>>, vector<1x1x256xf32>
    %304 = vector.shape_cast %303 : vector<1x1x256xf32> to vector<1x256xf32>
    %c14_522 = arith.constant 14 : index
    %c0_523 = arith.constant 0 : index
    %c0_524 = arith.constant 0 : index
    %305 = vector.load %arg6[%c14_522, %c0_523, %c0_524] : memref<16x256x128xf32, #tpu.memory_space<vmem>>, vector<1x256x128xf32>
    %306 = vector.shape_cast %305 : vector<1x256x128xf32> to vector<256x128xf32>
    %cst_525 = arith.constant dense<0.000000e+00> : vector<1x128xf32>
    %307 = tpu.matmul %304, %306, %cst_525 {dimension_numbers = #tpu.dot_dimension_numbers<[1], [0], [0], [1], [0, 0, 1, 1], [], []>} : vector<1x256xf32>, vector<256x128xf32>, vector<1x128xf32> -> vector<1x128xf32>
    %308 = arith.addf %302, %307 : vector<1x128xf32>
    %c0_526 = arith.constant 0 : index
    %c15 = arith.constant 15 : index
    %c0_527 = arith.constant 0 : index
    %309 = vector.load %arg16[%c0_526, %c15, %c0_527] : memref<1x16x256xf32, #tpu.memory_space<vmem>>, vector<1x1x256xf32>
    %310 = vector.shape_cast %309 : vector<1x1x256xf32> to vector<1x256xf32>
    %c15_528 = arith.constant 15 : index
    %c0_529 = arith.constant 0 : index
    %c0_530 = arith.constant 0 : index
    %311 = vector.load %arg6[%c15_528, %c0_529, %c0_530] : memref<16x256x128xf32, #tpu.memory_space<vmem>>, vector<1x256x128xf32>
    %312 = vector.shape_cast %311 : vector<1x256x128xf32> to vector<256x128xf32>
    %cst_531 = arith.constant dense<0.000000e+00> : vector<1x128xf32>
    %313 = tpu.matmul %310, %312, %cst_531 {dimension_numbers = #tpu.dot_dimension_numbers<[1], [0], [0], [1], [0, 0, 1, 1], [], []>} : vector<1x256xf32>, vector<256x128xf32>, vector<1x128xf32> -> vector<1x128xf32>
    %314 = arith.addf %308, %313 : vector<1x128xf32>
    %c0_532 = arith.constant 0 : index
    %c0_533 = arith.constant 0 : index
    %315 = vector.load %arg7[%c0_532, %c0_533] : memref<1x128xf32, #tpu.memory_space<vmem>>, vector<1x128xf32>
    %316 = arith.addf %314, %315 : vector<1x128xf32>
    %cst_534 = arith.constant 0.000000e+00 : f32
    %317 = vector.broadcast %cst_534 : f32 to vector<1x128xf32>
    %318 = arith.maximumf %316, %317 : vector<1x128xf32>
    %c0_535 = arith.constant 0 : index
    %c0_536 = arith.constant 0 : index
    %319 = vector.load %arg8[%c0_535, %c0_536] : memref<128x128xf32, #tpu.memory_space<vmem>>, vector<128x128xf32>
    %cst_537 = arith.constant dense<0.000000e+00> : vector<1x128xf32>
    %320 = tpu.matmul %318, %319, %cst_537 {dimension_numbers = #tpu.dot_dimension_numbers<[1], [0], [0], [1], [0, 0, 1, 1], [], []>} : vector<1x128xf32>, vector<128x128xf32>, vector<1x128xf32> -> vector<1x128xf32>
    %c0_538 = arith.constant 0 : index
    %c0_539 = arith.constant 0 : index
    %321 = vector.load %arg9[%c0_538, %c0_539] : memref<1x128xf32, #tpu.memory_space<vmem>>, vector<1x128xf32>
    %322 = arith.addf %320, %321 : vector<1x128xf32>
    %cst_540 = arith.constant 0.000000e+00 : f32
    %323 = vector.broadcast %cst_540 : f32 to vector<1x128xf32>
    %324 = arith.maximumf %322, %323 : vector<1x128xf32>
    %c0_541 = arith.constant 0 : index
    %c0_542 = arith.constant 0 : index
    %325 = vector.load %arg10[%c0_541, %c0_542] : memref<128x128xf32, #tpu.memory_space<vmem>>, vector<128x128xf32>
    %cst_543 = arith.constant dense<0.000000e+00> : vector<1x128xf32>
    %326 = tpu.matmul %324, %325, %cst_543 {dimension_numbers = #tpu.dot_dimension_numbers<[1], [0], [0], [1], [0, 0, 1, 1], [], []>} : vector<1x128xf32>, vector<128x128xf32>, vector<1x128xf32> -> vector<1x128xf32>
    %c0_544 = arith.constant 0 : index
    %c0_545 = arith.constant 0 : index
    %327 = vector.load %arg11[%c0_544, %c0_545] : memref<1x128xf32, #tpu.memory_space<vmem>>, vector<1x128xf32>
    %328 = arith.addf %326, %327 : vector<1x128xf32>
    %c0_546 = arith.constant 0 : index
    %c0_547 = arith.constant 0 : index
    %c0_548 = arith.constant 0 : index
    %329 = vector.load %arg12[%c0_546, %c0_547, %c0_548] : memref<1x1x128xf32, #tpu.memory_space<vmem>>, vector<1x1x128xf32>
    %330 = vector.shape_cast %329 : vector<1x1x128xf32> to vector<1x128xf32>
    %331 = vector.shape_cast %328 : vector<1x128xf32> to vector<1x1x128xf32>
    tpu.vector_store %arg12[%c0_546, %c0_547, %c0_548], %331 {strides = array<i32>} : memref<1x1x128xf32, #tpu.memory_space<vmem>>, vector<1x1x128xf32>,
    return
  }
  func.func @transform_0(%arg0: i32) -> (i32, i32, i32, i32) {
    %c0_i32 = arith.constant 0 : i32
    %c0_i32_0 = arith.constant 0 : i32
    %c0_i32_1 = arith.constant 0 : i32
    %c0_i32_2 = arith.constant 0 : i32
    return %arg0, %c0_i32, %c0_i32_0, %c0_i32_1 : i32, i32, i32, i32
  }
  func.func @transform_1(%arg0: i32) -> (i32, i32) {
    %c0_i32 = arith.constant 0 : i32
    %c0_i32_0 = arith.constant 0 : i32
    %c0_i32_1 = arith.constant 0 : i32
    return %c0_i32, %c0_i32_0 : i32, i32
  }
  func.func @transform_2(%arg0: i32) -> (i32, i32) {
    %c0_i32 = arith.constant 0 : i32
    %c0_i32_0 = arith.constant 0 : i32
    %c0_i32_1 = arith.constant 0 : i32
    return %c0_i32, %c0_i32_0 : i32, i32
  }
  func.func @transform_3(%arg0: i32) -> (i32, i32) {
    %c0_i32 = arith.constant 0 : i32
    %c0_i32_0 = arith.constant 0 : i32
    %c0_i32_1 = arith.constant 0 : i32
    return %c0_i32, %c0_i32_0 : i32, i32
  }
  func.func @transform_4(%arg0: i32) -> (i32, i32) {
    %c0_i32 = arith.constant 0 : i32
    %c0_i32_0 = arith.constant 0 : i32
    %c0_i32_1 = arith.constant 0 : i32
    return %c0_i32, %c0_i32_0 : i32, i32
  }
  func.func @transform_5(%arg0: i32) -> (i32, i32, i32) {
    %c0_i32 = arith.constant 0 : i32
    %c0_i32_0 = arith.constant 0 : i32
    %c0_i32_1 = arith.constant 0 : i32
    %c0_i32_2 = arith.constant 0 : i32
    return %c0_i32, %c0_i32_0, %c0_i32_1 : i32, i32, i32
  }
  func.func @transform_6(%arg0: i32) -> (i32, i32) {
    %c0_i32 = arith.constant 0 : i32
    %c0_i32_0 = arith.constant 0 : i32
    %c0_i32_1 = arith.constant 0 : i32
    return %c0_i32, %c0_i32_0 : i32, i32
  }
  func.func @transform_7(%arg0: i32) -> (i32, i32) {
    %c0_i32 = arith.constant 0 : i32
    %c0_i32_0 = arith.constant 0 : i32
    %c0_i32_1 = arith.constant 0 : i32
    return %c0_i32, %c0_i32_0 : i32, i32
  }
  func.func @transform_8(%arg0: i32) -> (i32, i32) {
    %c0_i32 = arith.constant 0 : i32
    %c0_i32_0 = arith.constant 0 : i32
    %c0_i32_1 = arith.constant 0 : i32
    return %c0_i32, %c0_i32_0 : i32, i32
  }
  func.func @transform_9(%arg0: i32) -> (i32, i32) {
    %c0_i32 = arith.constant 0 : i32
    %c0_i32_0 = arith.constant 0 : i32
    %c0_i32_1 = arith.constant 0 : i32
    return %c0_i32, %c0_i32_0 : i32, i32
  }
  func.func @transform_10(%arg0: i32) -> (i32, i32) {
    %c0_i32 = arith.constant 0 : i32
    %c0_i32_0 = arith.constant 0 : i32
    %c0_i32_1 = arith.constant 0 : i32
    return %c0_i32, %c0_i32_0 : i32, i32
  }
  func.func @transform_11(%arg0: i32) -> (i32, i32, i32) {
    %c0_i32 = arith.constant 0 : i32
    %c0_i32_0 = arith.constant 0 : i32
    %c0_i32_1 = arith.constant 0 : i32
    return %arg0, %c0_i32, %c0_i32_0 : i32, i32, i32
  }
}

</mosaic_0001>

<llo_original>
// kernel: lenet_forward.1
$region0: #{lenet_forward.1}
  #allocation0 [shape = 'u32[]', space=smem, size = 0x4, offset = 0x4, fixed_abs, tag = 'smem constant byte address 0x4 - core index']
  #allocation1 [shape = 'u32[72,128]{1,0:T(1,128)}', space=vmem, size = 0x9000, scoped, tag = 'internal scratch']
  #allocation2 [shape = 'f32[1,288,256]{2,1,0:T(8,128)}', space=vmem, size = 0x48000, scoped, tag = 'scratch operand']
  #allocation3 [shape = 'f32[1,8,384]{2,1,0:T(8,128)}', space=vmem, size = 0x3000, scoped, tag = 'scratch operand']
  #allocation4 [shape = 'f32[1,288,256]{2,1,0:T(8,128)}', space=vmem, size = 0x48000, scoped, tag = 'scratch operand']
  #allocation5 [shape = 'f32[1,16,256]{2,1,0:T(8,128)}', space=vmem, size = 0x4000, scoped, tag = 'scratch operand']
  %s0 = inlined_call_operand.vmem [shape: f32[2,4,8,384], index: 0, kind: input, shape index: {}]
  %s1 = inlined_call_operand.vmem [shape: f32[32,288], index: 1, kind: input, shape index: {}]
  %s2 = inlined_call_operand.vmem [shape: f32[8,1], index: 2, kind: input, shape index: {}]
  %s3 = inlined_call_operand.vmem [shape: f32[64,288], index: 3, kind: input, shape index: {}]
  %s4 = inlined_call_operand.vmem [shape: f32[16,1], index: 4, kind: input, shape index: {}]
  %s5 = inlined_call_operand.vmem [shape: f32[16,256,128], index: 5, kind: input, shape index: {}]
  %s6 = inlined_call_operand.vmem [shape: f32[1,128], index: 6, kind: input, shape index: {}]
  %s7 = inlined_call_operand.vmem [shape: f32[128,128], index: 7, kind: input, shape index: {}]
  %s8 = inlined_call_operand.vmem [shape: f32[1,128], index: 8, kind: input, shape index: {}]
  %s9 = inlined_call_operand.vmem [shape: f32[128,128], index: 9, kind: input, shape index: {}]
  %s10 = inlined_call_operand.vmem [shape: f32[1,128], index: 10, kind: input, shape index: {}]
  %s11 = inlined_call_operand.hbm [shape: f32[2,1,128], index: 11, kind: output, shape index: {}]
  %s12 = sld [smem:[#allocation0]]
  $region77: #{lenet_forward.1} parent=0
    _
  %s14 = ssub.s32 1, %s12
  %s15 = scalar_select 0, %s14, %s12
  $region1: #{lenet_forward.1} parent=0
    #allocation6 [shape = 'u8[1024]{0}', space=vmem, size = 0x400, scoped, tag = 'output window, operand 0']
    #allocation7 [shape = 's32[2]{0}', space=sflag, size = 0x8, scoped, tag = 'scoped memory for lenet_forward.1']
    %16 = vsyncpa [#allocation7], 0
    %s17 = scalar_lea.sflag [#allocation7], 1
    %18 = vsyncpa %s17, 0
    loop: start=0, step=1, limit=4
    $region2: #{lenet_forward.1} parent=1 // loop_pre_header
      _
    $region3: #{lenet_forward.1} parent=1 // loop_header
      %s20 = sphi 0, %s24
      %p21 = scmp.ge.s32.totalorder %s20, 4
      %s30 = sphi 0, %s32
      %s33 = sphi 0, %s30
      %s34 = sphi 0, %s33
      %s50 = sphi 0, %s34
      %s54 = sphi 0, %s54
      %s56 = sphi 0, %s54
      %s57 = sphi 0, %s56
      %s71 = sphi 0, %s57
      %s75 = sphi 0, %s75
      %s77 = sphi 0, %s75
      %s78 = sphi 0, %s77
      %s92 = sphi 0, %s78
      %s96 = sphi 0, %s96
      %s98 = sphi 0, %s96
      %s99 = sphi 0, %s98
      %s113 = sphi 0, %s99
      %s117 = sphi 0, %s117
      %s119 = sphi 0, %s117
      %s120 = sphi 0, %s119
      %s134 = sphi 0, %s120
      %s138 = sphi 0, %s138
      %s140 = sphi 0, %s138
      %s141 = sphi 0, %s140
      %s155 = sphi 0, %s141
      %s159 = sphi 0, %s159
      %s161 = sphi 0, %s159
      %s162 = sphi 0, %s161
      %s176 = sphi 0, %s162
      %s180 = sphi 0, %s180
      %s182 = sphi 0, %s180
      %s183 = sphi 0, %s182
      %s197 = sphi 0, %s183
      %s201 = sphi 0, %s201
      %s203 = sphi 0, %s201
      %s204 = sphi 0, %s203
      %s218 = sphi 0, %s204
      %s222 = sphi 0, %s222
      %s224 = sphi 0, %s222
      %s225 = sphi 0, %s224
      %s239 = sphi 0, %s225
      %s243 = sphi 0, %s243
      %s245 = sphi 0, %s243
      %s246 = sphi 0, %s245
      %s260 = sphi 0, %s246
      %s266 = sphi 0, %s268
      %s269 = sphi 0, %s266
      %s270 = sphi 0, %s269
      %s286 = sphi 0, %s270
    $region4: #{lenet_forward.1} parent=1 // loop_header_branch
      %23 = sbr.rel (%p21) target = $region8
    $region5: #{lenet_forward.1} parent=1 // loop_body
      %s25 = ssub.s32 %s20, 1
      %s26 = ssub.s32 %s20, 2
      %s27 = sadd.s32 %s20, 1
      %s28 = ssub.s32 %s20, %s27
      %p29 = scmp.eq.s32.totalorder %s28, 0
      %s31 = sadd.s32 %s30, 1
      %s32 = scalar_select %p29, %s30, %s31
      %p35 = pneg %p29
      %p36 = scmp.eq.s32.totalorder %s20, 1
      %p37 = por %p35, %p36
      %p38 = scmp.ne.s32.totalorder %s30, %s33
      %p39 = scmp.eq.s32.totalorder %s20, 0
      %p40 = por %p38, %p39
      %p41 = scmp.ne.s32.totalorder %s30, %s33
      %p42 = scmp.eq.s32.totalorder %s25, 1
      %p43 = por %p41, %p42
      %p44 = scmp.ne.s32.totalorder %s33, %s34
      %p45 = scmp.eq.s32.totalorder %s25, 0
      %p46 = por %p44, %p45
      %p47 = scmp.ne.s32.totalorder %s33, %s34
      %p48 = scmp.eq.s32.totalorder %s26, 1
      %p49 = por %p47, %p48
      %p51 = scmp.ne.s32.totalorder %s34, %s50
      %p52 = scmp.eq.s32.totalorder %s26, 0
      %p53 = por %p51, %p52
      %s55 = sadd.s32 %s54, 1
      %p58 = scmp.eq.s32.totalorder %s20, 1
      %p59 = scmp.ne.s32.totalorder %s54, %s56
      %p60 = scmp.eq.s32.totalorder %s20, 0
      %p61 = por %p59, %p60
      %p62 = scmp.ne.s32.totalorder %s54, %s56
      %p63 = scmp.eq.s32.totalorder %s25, 1
      %p64 = por %p62, %p63
      %p65 = scmp.ne.s32.totalorder %s56, %s57
      %p66 = scmp.eq.s32.totalorder %s25, 0
      %p67 = por %p65, %p66
      %p68 = scmp.ne.s32.totalorder %s56, %s57
      %p69 = scmp.eq.s32.totalorder %s26, 1
      %p70 = por %p68, %p69
      %p72 = scmp.ne.s32.totalorder %s57, %s71
      %p73 = scmp.eq.s32.totalorder %s26, 0
      %p74 = por %p72, %p73
      %s76 = sadd.s32 %s75, 1
      %p79 = scmp.eq.s32.totalorder %s20, 1
      %p80 = scmp.ne.s32.totalorder %s75, %s77
      %p81 = scmp.eq.s32.totalorder %s20, 0
      %p82 = por %p80, %p81
      %p83 = scmp.ne.s32.totalorder %s75, %s77
      %p84 = scmp.eq.s32.totalorder %s25, 1
      %p85 = por %p83, %p84
      %p86 = scmp.ne.s32.totalorder %s77, %s78
      %p87 = scmp.eq.s32.totalorder %s25, 0
      %p88 = por %p86, %p87
      %p89 = scmp.ne.s32.totalorder %s77, %s78
      %p90 = scmp.eq.s32.totalorder %s26, 1
      %p91 = por %p89, %p90
      %p93 = scmp.ne.s32.totalorder %s78, %s92
      %p94 = scmp.eq.s32.totalorder %s26, 0
      %p95 = por %p93, %p94
      %s97 = sadd.s32 %s96, 1
      %p100 = scmp.eq.s32.totalorder %s20, 1
      %p101 = scmp.ne.s32.totalorder %s96, %s98
      %p102 = scmp.eq.s32.totalorder %s20, 0
      %p103 = por %p101, %p102
      %p104 = scmp.ne.s32.totalorder %s96, %s98
      %p105 = scmp.eq.s32.totalorder %s25, 1
      %p106 = por %p104, %p105
      %p107 = scmp.ne.s32.totalorder %s98, %s99
      %p108 = scmp.eq.s32.totalorder %s25, 0
      %p109 = por %p107, %p108
      %p110 = scmp.ne.s32.totalorder %s98, %s99
      %p111 = scmp.eq.s32.totalorder %s26, 1
      %p112 = por %p110, %p111
      %p114 = scmp.ne.s32.totalorder %s99, %s113
      %p115 = scmp.eq.s32.totalorder %s26, 0
      %p116 = por %p114, %p115
      %s118 = sadd.s32 %s117, 1
      %p121 = scmp.eq.s32.totalorder %s20, 1
      %p122 = scmp.ne.s32.totalorder %s117, %s119
      %p123 = scmp.eq.s32.totalorder %s20, 0
      %p124 = por %p122, %p123
      %p125 = scmp.ne.s32.totalorder %s117, %s119
      %p126 = scmp.eq.s32.totalorder %s25, 1
      %p127 = por %p125, %p126
      %p128 = scmp.ne.s32.totalorder %s119, %s120
      %p129 = scmp.eq.s32.totalorder %s25, 0
      %p130 = por %p128, %p129
      %p131 = scmp.ne.s32.totalorder %s119, %s120
      %p132 = scmp.eq.s32.totalorder %s26, 1
      %p133 = por %p131, %p132
      %p135 = scmp.ne.s32.totalorder %s120, %s134
      %p136 = scmp.eq.s32.totalorder %s26, 0
      %p137 = por %p135, %p136
      %s139 = sadd.s32 %s138, 1
      %p142 = scmp.eq.s32.totalorder %s20, 1
      %p143 = scmp.ne.s32.totalorder %s138, %s140
      %p144 = scmp.eq.s32.totalorder %s20, 0
      %p145 = por %p143, %p144
      %p146 = scmp.ne.s32.totalorder %s138, %s140
      %p147 = scmp.eq.s32.totalorder %s25, 1
      %p148 = por %p146, %p147
      %p149 = scmp.ne.s32.totalorder %s140, %s141
      %p150 = scmp.eq.s32.totalorder %s25, 0
      %p151 = por %p149, %p150
      %p152 = scmp.ne.s32.totalorder %s140, %s141
      %p153 = scmp.eq.s32.totalorder %s26, 1
      %p154 = por %p152, %p153
      %p156 = scmp.ne.s32.totalorder %s141, %s155
      %p157 = scmp.eq.s32.totalorder %s26, 0
      %p158 = por %p156, %p157
      %s160 = sadd.s32 %s159, 1
      %p163 = scmp.eq.s32.totalorder %s20, 1
      %p164 = scmp.ne.s32.totalorder %s159, %s161
      %p165 = scmp.eq.s32.totalorder %s20, 0
      %p166 = por %p164, %p165
      %p167 = scmp.ne.s32.totalorder %s159, %s161
      %p168 = scmp.eq.s32.totalorder %s25, 1
      %p169 = por %p167, %p168
      %p170 = scmp.ne.s32.totalorder %s161, %s162
      %p171 = scmp.eq.s32.totalorder %s25, 0
      %p172 = por %p170, %p171
      %p173 = scmp.ne.s32.totalorder %s161, %s162
      %p174 = scmp.eq.s32.totalorder %s26, 1
      %p175 = por %p173, %p174
      %p177 = scmp.ne.s32.totalorder %s162, %s176
      %p178 = scmp.eq.s32.totalorder %s26, 0
      %p179 = por %p177, %p178
      %s181 = sadd.s32 %s180, 1
      %p184 = scmp.eq.s32.totalorder %s20, 1
      %p185 = scmp.ne.s32.totalorder %s180, %s182
      %p186 = scmp.eq.s32.totalorder %s20, 0
      %p187 = por %p185, %p186
      %p188 = scmp.ne.s32.totalorder %s180, %s182
      %p189 = scmp.eq.s32.totalorder %s25, 1
      %p190 = por %p188, %p189
      %p191 = scmp.ne.s32.totalorder %s182, %s183
      %p192 = scmp.eq.s32.totalorder %s25, 0
      %p193 = por %p191, %p192
      %p194 = scmp.ne.s32.totalorder %s182, %s183
      %p195 = scmp.eq.s32.totalorder %s26, 1
      %p196 = por %p194, %p195
      %p198 = scmp.ne.s32.totalorder %s183, %s197
      %p199 = scmp.eq.s32.totalorder %s26, 0
      %p200 = por %p198, %p199
      %s202 = sadd.s32 %s201, 1
      %p205 = scmp.eq.s32.totalorder %s20, 1
      %p206 = scmp.ne.s32.totalorder %s201, %s203
      %p207 = scmp.eq.s32.totalorder %s20, 0
      %p208 = por %p206, %p207
      %p209 = scmp.ne.s32.totalorder %s201, %s203
      %p210 = scmp.eq.s32.totalorder %s25, 1
      %p211 = por %p209, %p210
      %p212 = scmp.ne.s32.totalorder %s203, %s204
      %p213 = scmp.eq.s32.totalorder %s25, 0
      %p214 = por %p212, %p213
      %p215 = scmp.ne.s32.totalorder %s203, %s204
      %p216 = scmp.eq.s32.totalorder %s26, 1
      %p217 = por %p215, %p216
      %p219 = scmp.ne.s32.totalorder %s204, %s218
      %p220 = scmp.eq.s32.totalorder %s26, 0
      %p221 = por %p219, %p220
      %s223 = sadd.s32 %s222, 1
      %p226 = scmp.eq.s32.totalorder %s20, 1
      %p227 = scmp.ne.s32.totalorder %s222, %s224
      %p228 = scmp.eq.s32.totalorder %s20, 0
      %p229 = por %p227, %p228
      %p230 = scmp.ne.s32.totalorder %s222, %s224
      %p231 = scmp.eq.s32.totalorder %s25, 1
      %p232 = por %p230, %p231
      %p233 = scmp.ne.s32.totalorder %s224, %s225
      %p234 = scmp.eq.s32.totalorder %s25, 0
      %p235 = por %p233, %p234
      %p236 = scmp.ne.s32.totalorder %s224, %s225
      %p237 = scmp.eq.s32.totalorder %s26, 1
      %p238 = por %p236, %p237
      %p240 = scmp.ne.s32.totalorder %s225, %s239
      %p241 = scmp.eq.s32.totalorder %s26, 0
      %p242 = por %p240, %p241
      %s244 = sadd.s32 %s243, 1
      %p247 = scmp.eq.s32.totalorder %s20, 1
      %p248 = scmp.ne.s32.totalorder %s243, %s245
      %p249 = scmp.eq.s32.totalorder %s20, 0
      %p250 = por %p248, %p249
      %p251 = scmp.ne.s32.totalorder %s243, %s245
      %p252 = scmp.eq.s32.totalorder %s25, 1
      %p253 = por %p251, %p252
      %p254 = scmp.ne.s32.totalorder %s245, %s246
      %p255 = scmp.eq.s32.totalorder %s25, 0
      %p256 = por %p254, %p255
      %p257 = scmp.ne.s32.totalorder %s245, %s246
      %p258 = scmp.eq.s32.totalorder %s26, 1
      %p259 = por %p257, %p258
      %p261 = scmp.ne.s32.totalorder %s246, %s260
      %p262 = scmp.eq.s32.totalorder %s26, 0
      %p263 = por %p261, %p262
      %s264 = ssub.s32 %s20, %s27
      %p265 = scmp.eq.s32.totalorder %s264, 0
      %s267 = sadd.s32 %s266, 1
      %s268 = scalar_select %p265, %s266, %s267
      %p271 = pneg %p265
      %p272 = scmp.eq.s32.totalorder %s20, 1
      %p273 = por %p271, %p272
      %p274 = scmp.ne.s32.totalorder %s266, %s269
      %p275 = scmp.eq.s32.totalorder %s20, 0
      %p276 = por %p274, %p275
      %p277 = scmp.ne.s32.totalorder %s266, %s269
      %p278 = scmp.eq.s32.totalorder %s25, 1
      %p279 = por %p277, %p278
      %p280 = scmp.ne.s32.totalorder %s269, %s270
      %p281 = scmp.eq.s32.totalorder %s25, 0
      %p282 = por %p280, %p281
      %p283 = scmp.ne.s32.totalorder %s269, %s270
      %p284 = scmp.eq.s32.totalorder %s26, 1
      %p285 = por %p283, %p284
      %p287 = scmp.ne.s32.totalorder %s270, %s286
      %p288 = scmp.eq.s32.totalorder %s26, 0
      %p289 = por %p287, %p288
      %p290 = scmp.le.s32.totalorder 1, %s20
      %p291 = scmp.lt.s32.totalorder %s20, 3
      %p292 = pnand %p290, %p291
      %p293 = pneg %p292
      // Predicated region
      $region9: #{lenet_forward.1} parent=5 // pred_check
        _
      $region10: #{lenet_forward.1} parent=5 // pred_check_branch
        %295 = sbr.rel (%p292) target = $region12
      $region11: #{lenet_forward.1} parent=5 // pred_region
        %s296 = ssub.s32 %s20, 1
        // Predicated region
        $region13: #{lenet_forward.1} parent=11 // pred_check
          %p297 = pneg %p67
        $region14: #{lenet_forward.1} parent=11 // pred_check_branch
          %299 = sbr.rel (%p297) target = $region16
        $region15: #{lenet_forward.1} parent=11 // pred_region
          _
        $region16: #{lenet_forward.1} parent=11 // pred_fallthru
          _
        // Predicated region
        $region17: #{lenet_forward.1} parent=11 // pred_check
          %p300 = pneg %p88
        $region18: #{lenet_forward.1} parent=11 // pred_check_branch
          %302 = sbr.rel (%p300) target = $region20
        $region19: #{lenet_forward.1} parent=11 // pred_region
          _
        $region20: #{lenet_forward.1} parent=11 // pred_fallthru
          _
        // Predicated region
        $region21: #{lenet_forward.1} parent=11 // pred_check
          %p303 = pneg %p109
        $region22: #{lenet_forward.1} parent=11 // pred_check_branch
          %305 = sbr.rel (%p303) target = $region24
        $region23: #{lenet_forward.1} parent=11 // pred_region
          _
        $region24: #{lenet_forward.1} parent=11 // pred_fallthru
          _
        // Predicated region
        $region25: #{lenet_forward.1} parent=11 // pred_check
          %p306 = pneg %p130
        $region26: #{lenet_forward.1} parent=11 // pred_check_branch
          %308 = sbr.rel (%p306) target = $region28
        $region27: #{lenet_forward.1} parent=11 // pred_region
          _
        $region28: #{lenet_forward.1} parent=11 // pred_fallthru
          _
        // Predicated region
        $region29: #{lenet_forward.1} parent=11 // pred_check
          %p309 = pneg %p151
        $region30: #{lenet_forward.1} parent=11 // pred_check_branch
          %311 = sbr.rel (%p309) target = $region32
        $region31: #{lenet_forward.1} parent=11 // pred_region
          _
        $region32: #{lenet_forward.1} parent=11 // pred_fallthru
          _
        // Predicated region
        $region33: #{lenet_forward.1} parent=11 // pred_check
          %p312 = pneg %p172
        $region34: #{lenet_forward.1} parent=11 // pred_check_branch
          %314 = sbr.rel (%p312) target = $region36
        $region35: #{lenet_forward.1} parent=11 // pred_region
          _
        $region36: #{lenet_forward.1} parent=11 // pred_fallthru
          _
        // Predicated region
        $region37: #{lenet_forward.1} parent=11 // pred_check
          %p315 = pneg %p193
        $region38: #{lenet_forward.1} parent=11 // pred_check_branch
          %317 = sbr.rel (%p315) target = $region40
        $region39: #{lenet_forward.1} parent=11 // pred_region
          _
        $region40: #{lenet_forward.1} parent=11 // pred_fallthru
          _
        // Predicated region
        $region41: #{lenet_forward.1} parent=11 // pred_check
          %p318 = pneg %p214
        $region42: #{lenet_forward.1} parent=11 // pred_check_branch
          %320 = sbr.rel (%p318) target = $region44
        $region43: #{lenet_forward.1} parent=11 // pred_region
          _
        $region44: #{lenet_forward.1} parent=11 // pred_fallthru
          _
        // Predicated region
        $region45: #{lenet_forward.1} parent=11 // pred_check
          %p321 = pneg %p235
        $region46: #{lenet_forward.1} parent=11 // pred_check_branch
          %323 = sbr.rel (%p321) target = $region48
        $region47: #{lenet_forward.1} parent=11 // pred_region
          _
        $region48: #{lenet_forward.1} parent=11 // pred_fallthru
          _
        // Predicated region
        $region49: #{lenet_forward.1} parent=11 // pred_check
          %p324 = pneg %p256
        $region50: #{lenet_forward.1} parent=11 // pred_check_branch
          %326 = sbr.rel (%p324) target = $region52
        $region51: #{lenet_forward.1} parent=11 // pred_region
          _
        $region52: #{lenet_forward.1} parent=11 // pred_fallthru
          _
      $region12: #{lenet_forward.1} parent=5 // pred_fallthru
        _
      %p327 = scmp.lt.s32.totalorder %s20, 2
      // Predicated region
      $region53: #{lenet_forward.1} parent=5 // pred_check
        %p328 = pneg %p327
      $region54: #{lenet_forward.1} parent=5 // pred_check_branch
        %330 = sbr.rel (%p328) target = $region56
      $region55: #{lenet_forward.1} parent=5 // pred_region
        // Predicated region
        $region57: #{lenet_forward.1} parent=55 // pred_check
          %p331 = pneg %p40
        $region58: #{lenet_forward.1} parent=55 // pred_check_branch
          %333 = sbr.rel (%p331) target = $region60
        $region59: #{lenet_forward.1} parent=55 // pred_region
          %p334 = scmp.lt.s32.totalorder %s20, 1
          %s335 = scalar_select %p334, %s20, 1
          %s336 = smul.addr %s335, 12
          %s337 = smul.addr %s336, 8
          %s338 = scalar_lea.vmem %s0, %s337
        $region60: #{lenet_forward.1} parent=55 // pred_fallthru
          _
      $region56: #{lenet_forward.1} parent=5 // pred_fallthru
        _
      %p339 = scmp.le.s32.totalorder 1, %s20
      %p340 = scmp.lt.s32.totalorder %s20, 3
      %p341 = pnand %p339, %p340
      %p342 = pneg %p341
      // Predicated region
      $region61: #{lenet_forward.1} parent=5 // pred_check
        _
      $region62: #{lenet_forward.1} parent=5 // pred_check_branch
        %344 = sbr.rel (%p341) target = $region64
      $region63: #{lenet_forward.1} parent=5 // pred_region
        %s345 = ssub.s32 %s20, 1
        %p346 = scmp.lt.s32.totalorder %s25, 1
        %s347 = scalar_select %p346, %s25, 1
        %s348 = smul.addr %s347, 12
        %s349 = smul.addr %s348, 8
        %s350 = scalar_lea.vmem %s0, %s349
        %p351 = pneg %p46
        %p352 = pneg %p43
        %p353 = pneg %p67
        %p354 = pneg %p64
        %p355 = pneg %p88
        %p356 = pneg %p85
        %p357 = pneg %p109
        %p358 = pneg %p106
        %p359 = pneg %p130
        %p360 = pneg %p127
        %p361 = pneg %p151
        %p362 = pneg %p148
        %p363 = pneg %p172
        %p364 = pneg %p169
        %p365 = pneg %p193
        %p366 = pneg %p190
        %p367 = pneg %p214
        %p368 = pneg %p211
        %p369 = pneg %p235
        %p370 = pneg %p232
        %p371 = pneg %p256
        %p372 = pneg %p253
        %p373 = pneg %p282
        %p374 = pneg %p279
        %s375 = sand.u32 %s269, 1
        %s376 = scalar_lea.sflag [#allocation7], %s375
        %s377 = sand.u32 %s269, 1
        %s378 = scalar_lea.vmem [#allocation6], %s377
        %p379 = scmp.lt.s32.totalorder %s25, 1
        %s380 = scalar_select %p379, %s25, 1
        %s381 = smul.addr %s380, 12
        %s382 = smul.addr %s381, 8
        %s383 = scalar_lea.vmem %s0, %s382
        %384 = vst [vmem:[#allocation3 + $0x10] sm:$0xff] 0.0
        %v385 = vld [vmem:[%s383] sm:$0xff]
        %v386 = vld [vmem:[%s383 + $0x8] sm:$0xff]
        %387 = vst [vmem:[#allocation2] sm:$0xff] %v385
        %388 = vst [vmem:[#allocation2 + $0x8] sm:$0xff] %v386
        %s389 = scalar_lea.vmem %s383, 24
        %v390 = vld [vmem:[%s389] sm:$0xff]
        %v391 = vld [vmem:[%s389 + $0x8] sm:$0xff]
        %392 = vst [vmem:[#allocation2 + $0x10] sm:$0xff] %v390
        %393 = vst [vmem:[#allocation2 + $0x18] sm:$0xff] %v391
        %v394 = vld [vmem:[%s383] sm:$0xff]
        %v395 = vld [vmem:[%s383 + $0x8] sm:$0xff]
        %v396 = vld [vmem:[%s383 + $0x10] sm:$0xff]
        %400 = vrot.lane.b32.xlu0 %v394, 127
        %v401 = vpop.permute.xlu0 %400
        %402 = vrot.lane.b32.xlu0 %v395, 127
        %v403 = vpop.permute.xlu0 %402
        %404 = vrot.lane.b32.xlu0 %v396, 127
        %v405 = vpop.permute.xlu0 %404
        %vm406 = vcmask 1039360
        %v407 = vsel %vm406, %v401, %v403
        %v408 = vsel %vm406, %v403, %v405
        %411 = vst [vmem:[#allocation2 + $0x20] sm:$0xff] %v407
        %412 = vst [vmem:[#allocation2 + $0x28] sm:$0xff] %v408
        %v413 = vld [vmem:[%s389] sm:$0xff]
        %v414 = vld [vmem:[%s389 + $0x8] sm:$0xff]
        %v415 = vld [vmem:[%s389 + $0x10] sm:$0xff]
        %419 = vrot.lane.b32.xlu0 %v413, 127
        %v420 = vpop.permute.xlu0 %419
        %421 = vrot.lane.b32.xlu0 %v414, 127
        %v422 = vpop.permute.xlu0 %421
        %423 = vrot.lane.b32.xlu0 %v415, 127
        %v424 = vpop.permute.xlu0 %423
        %v425 = vsel %vm406, %v420, %v422
        %v426 = vsel %vm406, %v422, %v424
        %429 = vst [vmem:[#allocation2 + $0x30] sm:$0xff] %v425
        %430 = vst [vmem:[#allocation2 + $0x38] sm:$0xff] %v426
        %v431 = vld [vmem:[%s383] sm:$0xff]
        %v432 = vld [vmem:[%s383 + $0x8] sm:$0xff]
        %v433 = vld [vmem:[%s383 + $0x10] sm:$0xff]
        %437 = vrot.lane.b32.xlu0 %v431, 126
        %v438 = vpop.permute.xlu0 %437
        %439 = vrot.lane.b32.xlu0 %v432, 126
        %v440 = vpop.permute.xlu0 %439
        %441 = vrot.lane.b32.xlu0 %v433, 126
        %v442 = vpop.permute.xlu0 %441
        %vm443 = vcmask 1031168
        %v444 = vsel %vm443, %v438, %v440
        %v445 = vsel %vm443, %v440, %v442
        %448 = vst [vmem:[#allocation2 + $0x40] sm:$0xff] %v444
        %449 = vst [vmem:[#allocation2 + $0x48] sm:$0xff] %v445
        %v450 = vld [vmem:[%s389] sm:$0xff]
        %v451 = vld [vmem:[%s389 + $0x8] sm:$0xff]
        %v452 = vld [vmem:[%s389 + $0x10] sm:$0xff]
        %456 = vrot.lane.b32.xlu0 %v450, 126
        %v457 = vpop.permute.xlu0 %456
        %458 = vrot.lane.b32.xlu0 %v451, 126
        %v459 = vpop.permute.xlu0 %458
        %460 = vrot.lane.b32.xlu0 %v452, 126
        %v461 = vpop.permute.xlu0 %460
        %v462 = vsel %vm443, %v457, %v459
        %v463 = vsel %vm443, %v459, %v461
        %466 = vst [vmem:[#allocation2 + $0x50] sm:$0xff] %v462
        %467 = vst [vmem:[#allocation2 + $0x58] sm:$0xff] %v463
        %s468 = scalar_lea.vmem %s383, 48
        %v469 = vld [vmem:[%s468] sm:$0xff]
        %v470 = vld [vmem:[%s468 + $0x8] sm:$0xff]
        %471 = vst [vmem:[#allocation2 + $0x60] sm:$0xff] %v469
        %472 = vst [vmem:[#allocation2 + $0x68] sm:$0xff] %v470
        %s473 = scalar_lea.vmem %s383, 72
        %v474 = vld [vmem:[%s473] sm:$0xff]
        %v475 = vld [vmem:[%s473 + $0x8] sm:$0xff]
        %476 = vst [vmem:[#allocation2 + $0x70] sm:$0xff] %v474
        %477 = vst [vmem:[#allocation2 + $0x78] sm:$0xff] %v475
        %v478 = vld [vmem:[%s468] sm:$0xff]
        %v479 = vld [vmem:[%s468 + $0x8] sm:$0xff]
        %v480 = vld [vmem:[%s468 + $0x10] sm:$0xff]
        %484 = vrot.lane.b32.xlu0 %v478, 127
        %v485 = vpop.permute.xlu0 %484
        %486 = vrot.lane.b32.xlu0 %v479, 127
        %v487 = vpop.permute.xlu0 %486
        %488 = vrot.lane.b32.xlu0 %v480, 127
        %v489 = vpop.permute.xlu0 %488
        %v490 = vsel %vm406, %v485, %v487
        %v491 = vsel %vm406, %v487, %v489
        %494 = vst [vmem:[#allocation2 + $0x80] sm:$0xff] %v490
        %495 = vst [vmem:[#allocation2 + $0x88] sm:$0xff] %v491
        %v496 = vld [vmem:[%s473] sm:$0xff]
        %v497 = vld [vmem:[%s473 + $0x8] sm:$0xff]
        %v498 = vld [vmem:[%s473 + $0x10] sm:$0xff]
        %502 = vrot.lane.b32.xlu0 %v496, 127
        %v503 = vpop.permute.xlu0 %502
        %504 = vrot.lane.b32.xlu0 %v497, 127
        %v505 = vpop.permute.xlu0 %504
        %506 = vrot.lane.b32.xlu0 %v498, 127
        %v507 = vpop.permute.xlu0 %506
        %v508 = vsel %vm406, %v503, %v505
        %v509 = vsel %vm406, %v505, %v507
        %512 = vst [vmem:[#allocation2 + $0x90] sm:$0xff] %v508
        %513 = vst [vmem:[#allocation2 + $0x98] sm:$0xff] %v509
        %v514 = vld [vmem:[%s468] sm:$0xff]
        %v515 = vld [vmem:[%s468 + $0x8] sm:$0xff]
        %v516 = vld [vmem:[%s468 + $0x10] sm:$0xff]
        %520 = vrot.lane.b32.xlu0 %v514, 126
        %v521 = vpop.permute.xlu0 %520
        %522 = vrot.lane.b32.xlu0 %v515, 126
        %v523 = vpop.permute.xlu0 %522
        %524 = vrot.lane.b32.xlu0 %v516, 126
        %v525 = vpop.permute.xlu0 %524
        %v526 = vsel %vm443, %v521, %v523
        %v527 = vsel %vm443, %v523, %v525
        %530 = vst [vmem:[#allocation2 + $0xa0] sm:$0xff] %v526
        %531 = vst [vmem:[#allocation2 + $0xa8] sm:$0xff] %v527
        %v532 = vld [vmem:[%s473] sm:$0xff]
        %v533 = vld [vmem:[%s473 + $0x8] sm:$0xff]
        %v534 = vld [vmem:[%s473 + $0x10] sm:$0xff]
        %538 = vrot.lane.b32.xlu0 %v532, 126
        %v539 = vpop.permute.xlu0 %538
        %540 = vrot.lane.b32.xlu0 %v533, 126
        %v541 = vpop.permute.xlu0 %540
        %542 = vrot.lane.b32.xlu0 %v534, 126
        %v543 = vpop.permute.xlu0 %542
        %v544 = vsel %vm443, %v539, %v541
        %v545 = vsel %vm443, %v541, %v543
        %548 = vst [vmem:[#allocation2 + $0xb0] sm:$0xff] %v544
        %549 = vst [vmem:[#allocation2 + $0xb8] sm:$0xff] %v545
        %v550 = vld [vmem:[%s383] sm:$0xff]
        %v551 = vld [vmem:[%s383 + $0x8] sm:$0xff]
        %v552 = vld [vmem:[%s383 + $0x10] sm:$0xff]
        %556 = vrot.lane.b32.xlu0 %v550, 112
        %v557 = vpop.permute.xlu0 %556
        %558 = vrot.lane.b32.xlu0 %v551, 112
        %v559 = vpop.permute.xlu0 %558
        %560 = vrot.lane.b32.xlu0 %v552, 112
        %v561 = vpop.permute.xlu0 %560
        %vm562 = vcmask 916480
        %v563 = vsel %vm562, %v557, %v559
        %v564 = vsel %vm562, %v559, %v561
        %567 = vst [vmem:[#allocation2 + $0xc0] sm:$0xff] %v563
        %568 = vst [vmem:[#allocation2 + $0xc8] sm:$0xff] %v564
        %v569 = vld [vmem:[%s389] sm:$0xff]
        %v570 = vld [vmem:[%s389 + $0x8] sm:$0xff]
        %v571 = vld [vmem:[%s389 + $0x10] sm:$0xff]
        %575 = vrot.lane.b32.xlu0 %v569, 112
        %v576 = vpop.permute.xlu0 %575
        %577 = vrot.lane.b32.xlu0 %v570, 112
        %v578 = vpop.permute.xlu0 %577
        %579 = vrot.lane.b32.xlu0 %v571, 112
        %v580 = vpop.permute.xlu0 %579
        %v581 = vsel %vm562, %v576, %v578
        %v582 = vsel %vm562, %v578, %v580
        %585 = vst [vmem:[#allocation2 + $0xd0] sm:$0xff] %v581
        %586 = vst [vmem:[#allocation2 + $0xd8] sm:$0xff] %v582
        %v587 = vld [vmem:[%s383] sm:$0xff]
        %v588 = vld [vmem:[%s383 + $0x8] sm:$0xff]
        %v589 = vld [vmem:[%s383 + $0x10] sm:$0xff]
        %593 = vrot.lane.b32.xlu0 %v587, 111
        %v594 = vpop.permute.xlu0 %593
        %595 = vrot.lane.b32.xlu0 %v588, 111
        %v596 = vpop.permute.xlu0 %595
        %597 = vrot.lane.b32.xlu0 %v589, 111
        %v598 = vpop.permute.xlu0 %597
        %vm599 = vcmask 908288
        %v600 = vsel %vm599, %v594, %v596
        %v601 = vsel %vm599, %v596, %v598
        %604 = vst [vmem:[#allocation2 + $0xe0] sm:$0xff] %v600
        %605 = vst [vmem:[#allocation2 + $0xe8] sm:$0xff] %v601
        %v606 = vld [vmem:[%s389] sm:$0xff]
        %v607 = vld [vmem:[%s389 + $0x8] sm:$0xff]
        %v608 = vld [vmem:[%s389 + $0x10] sm:$0xff]
        %612 = vrot.lane.b32.xlu0 %v606, 111
        %v613 = vpop.permute.xlu0 %612
        %614 = vrot.lane.b32.xlu0 %v607, 111
        %v615 = vpop.permute.xlu0 %614
        %616 = vrot.lane.b32.xlu0 %v608, 111
        %v617 = vpop.permute.xlu0 %616
        %v618 = vsel %vm599, %v613, %v615
        %v619 = vsel %vm599, %v615, %v617
        %622 = vst [vmem:[#allocation2 + $0xf0] sm:$0xff] %v618
        %623 = vst [vmem:[#allocation2 + $0xf8] sm:$0xff] %v619
        %v624 = vld [vmem:[%s383] sm:$0xff]
        %v625 = vld [vmem:[%s383 + $0x8] sm:$0xff]
        %v626 = vld [vmem:[%s383 + $0x10] sm:$0xff]
        %630 = vrot.lane.b32.xlu0 %v624, 110
        %v631 = vpop.permute.xlu0 %630
        %632 = vrot.lane.b32.xlu0 %v625, 110
        %v633 = vpop.permute.xlu0 %632
        %634 = vrot.lane.b32.xlu0 %v626, 110
        %v635 = vpop.permute.xlu0 %634
        %vm636 = vcmask 900096
        %v637 = vsel %vm636, %v631, %v633
        %v638 = vsel %vm636, %v633, %v635
        %641 = vst [vmem:[#allocation2 + $0x100] sm:$0xff] %v637
        %642 = vst [vmem:[#allocation2 + $0x108] sm:$0xff] %v638
        %v643 = vld [vmem:[%s389] sm:$0xff]
        %v644 = vld [vmem:[%s389 + $0x8] sm:$0xff]
        %v645 = vld [vmem:[%s389 + $0x10] sm:$0xff]
        %649 = vrot.lane.b32.xlu0 %v643, 110
        %v650 = vpop.permute.xlu0 %649
        %651 = vrot.lane.b32.xlu0 %v644, 110
        %v652 = vpop.permute.xlu0 %651
        %653 = vrot.lane.b32.xlu0 %v645, 110
        %v654 = vpop.permute.xlu0 %653
        %v655 = vsel %vm636, %v650, %v652
        %v656 = vsel %vm636, %v652, %v654
        %659 = vst [vmem:[#allocation2 + $0x110] sm:$0xff] %v655
        %660 = vst [vmem:[#allocation2 + $0x118] sm:$0xff] %v656
        %v661 = vld [vmem:[%s468] sm:$0xff]
        %v662 = vld [vmem:[%s468 + $0x8] sm:$0xff]
        %v663 = vld [vmem:[%s468 + $0x10] sm:$0xff]
        %667 = vrot.lane.b32.xlu0 %v661, 112
        %v668 = vpop.permute.xlu0 %667
        %669 = vrot.lane.b32.xlu0 %v662, 112
        %v670 = vpop.permute.xlu0 %669
        %671 = vrot.lane.b32.xlu0 %v663, 112
        %v672 = vpop.permute.xlu0 %671
        %v673 = vsel %vm562, %v668, %v670
        %v674 = vsel %vm562, %v670, %v672
        %677 = vst [vmem:[#allocation2 + $0x120] sm:$0xff] %v673
        %678 = vst [vmem:[#allocation2 + $0x128] sm:$0xff] %v674
        %v679 = vld [vmem:[%s473] sm:$0xff]
        %v680 = vld [vmem:[%s473 + $0x8] sm:$0xff]
        %v681 = vld [vmem:[%s473 + $0x10] sm:$0xff]
        %685 = vrot.lane.b32.xlu0 %v679, 112
        %v686 = vpop.permute.xlu0 %685
        %687 = vrot.lane.b32.xlu0 %v680, 112
        %v688 = vpop.permute.xlu0 %687
        %689 = vrot.lane.b32.xlu0 %v681, 112
        %v690 = vpop.permute.xlu0 %689
        %v691 = vsel %vm562, %v686, %v688
        %v692 = vsel %vm562, %v688, %v690
        %695 = vst [vmem:[#allocation2 + $0x130] sm:$0xff] %v691
        %696 = vst [vmem:[#allocation2 + $0x138] sm:$0xff] %v692
        %v697 = vld [vmem:[%s468] sm:$0xff]
        %v698 = vld [vmem:[%s468 + $0x8] sm:$0xff]
        %v699 = vld [vmem:[%s468 + $0x10] sm:$0xff]
        %703 = vrot.lane.b32.xlu0 %v697, 111
        %v704 = vpop.permute.xlu0 %703
        %705 = vrot.lane.b32.xlu0 %v698, 111
        %v706 = vpop.permute.xlu0 %705
        %707 = vrot.lane.b32.xlu0 %v699, 111
        %v708 = vpop.permute.xlu0 %707
        %v709 = vsel %vm599, %v704, %v706
        %v710 = vsel %vm599, %v706, %v708
        %713 = vst [vmem:[#allocation2 + $0x140] sm:$0xff] %v709
        %714 = vst [vmem:[#allocation2 + $0x148] sm:$0xff] %v710
        %v715 = vld [vmem:[%s473] sm:$0xff]
        %v716 = vld [vmem:[%s473 + $0x8] sm:$0xff]
        %v717 = vld [vmem:[%s473 + $0x10] sm:$0xff]
        %721 = vrot.lane.b32.xlu0 %v715, 111
        %v722 = vpop.permute.xlu0 %721
        %723 = vrot.lane.b32.xlu0 %v716, 111
        %v724 = vpop.permute.xlu0 %723
        %725 = vrot.lane.b32.xlu0 %v717, 111
        %v726 = vpop.permute.xlu0 %725
        %v727 = vsel %vm599, %v722, %v724
        %v728 = vsel %vm599, %v724, %v726
        %731 = vst [vmem:[#allocation2 + $0x150] sm:$0xff] %v727
        %732 = vst [vmem:[#allocation2 + $0x158] sm:$0xff] %v728
        %v733 = vld [vmem:[%s468] sm:$0xff]
        %v734 = vld [vmem:[%s468 + $0x8] sm:$0xff]
        %v735 = vld [vmem:[%s468 + $0x10] sm:$0xff]
        %739 = vrot.lane.b32.xlu0 %v733, 110
        %v740 = vpop.permute.xlu0 %739
        %741 = vrot.lane.b32.xlu0 %v734, 110
        %v742 = vpop.permute.xlu0 %741
        %743 = vrot.lane.b32.xlu0 %v735, 110
        %v744 = vpop.permute.xlu0 %743
        %v745 = vsel %vm636, %v740, %v742
        %v746 = vsel %vm636, %v742, %v744
        %749 = vst [vmem:[#allocation2 + $0x160] sm:$0xff] %v745
        %750 = vst [vmem:[#allocation2 + $0x168] sm:$0xff] %v746
        %v751 = vld [vmem:[%s473] sm:$0xff]
        %v752 = vld [vmem:[%s473 + $0x8] sm:$0xff]
        %v753 = vld [vmem:[%s473 + $0x10] sm:$0xff]
        %757 = vrot.lane.b32.xlu0 %v751, 110
        %v758 = vpop.permute.xlu0 %757
        %759 = vrot.lane.b32.xlu0 %v752, 110
        %v760 = vpop.permute.xlu0 %759
        %761 = vrot.lane.b32.xlu0 %v753, 110
        %v762 = vpop.permute.xlu0 %761
        %v763 = vsel %vm636, %v758, %v760
        %v764 = vsel %vm636, %v760, %v762
        %767 = vst [vmem:[#allocation2 + $0x170] sm:$0xff] %v763
        %768 = vst [vmem:[#allocation2 + $0x178] sm:$0xff] %v764
        %v769 = vld [vmem:[%s383] sm:$0xff]
        %v770 = vld [vmem:[%s383 + $0x8] sm:$0xff]
        %v771 = vld [vmem:[%s383 + $0x10] sm:$0xff]
        %775 = vrot.lane.b32.xlu0 %v769, 96
        %v776 = vpop.permute.xlu0 %775
        %777 = vrot.lane.b32.xlu0 %v770, 96
        %v778 = vpop.permute.xlu0 %777
        %779 = vrot.lane.b32.xlu0 %v771, 96
        %v780 = vpop.permute.xlu0 %779
        %vm781 = vcmask 785408
        %v782 = vsel %vm781, %v776, %v778
        %v783 = vsel %vm781, %v778, %v780
        %786 = vst [vmem:[#allocation2 + $0x180] sm:$0xff] %v782
        %787 = vst [vmem:[#allocation2 + $0x188] sm:$0xff] %v783
        %v788 = vld [vmem:[%s389] sm:$0xff]
        %v789 = vld [vmem:[%s389 + $0x8] sm:$0xff]
        %v790 = vld [vmem:[%s389 + $0x10] sm:$0xff]
        %794 = vrot.lane.b32.xlu0 %v788, 96
        %v795 = vpop.permute.xlu0 %794
        %796 = vrot.lane.b32.xlu0 %v789, 96
        %v797 = vpop.permute.xlu0 %796
        %798 = vrot.lane.b32.xlu0 %v790, 96
        %v799 = vpop.permute.xlu0 %798
        %v800 = vsel %vm781, %v795, %v797
        %v801 = vsel %vm781, %v797, %v799
        %804 = vst [vmem:[#allocation2 + $0x190] sm:$0xff] %v800
        %805 = vst [vmem:[#allocation2 + $0x198] sm:$0xff] %v801
        %v806 = vld [vmem:[%s383] sm:$0xff]
        %v807 = vld [vmem:[%s383 + $0x8] sm:$0xff]
        %v808 = vld [vmem:[%s383 + $0x10] sm:$0xff]
        %812 = vrot.lane.b32.xlu0 %v806, 95
        %v813 = vpop.permute.xlu0 %812
        %814 = vrot.lane.b32.xlu0 %v807, 95
        %v815 = vpop.permute.xlu0 %814
        %816 = vrot.lane.b32.xlu0 %v808, 95
        %v817 = vpop.permute.xlu0 %816
        %vm818 = vcmask 777216
        %v819 = vsel %vm818, %v813, %v815
        %v820 = vsel %vm818, %v815, %v817
        %823 = vst [vmem:[#allocation2 + $0x1a0] sm:$0xff] %v819
        %824 = vst [vmem:[#allocation2 + $0x1a8] sm:$0xff] %v820
        %v825 = vld [vmem:[%s389] sm:$0xff]
        %v826 = vld [vmem:[%s389 + $0x8] sm:$0xff]
        %v827 = vld [vmem:[%s389 + $0x10] sm:$0xff]
        %831 = vrot.lane.b32.xlu0 %v825, 95
        %v832 = vpop.permute.xlu0 %831
        %833 = vrot.lane.b32.xlu0 %v826, 95
        %v834 = vpop.permute.xlu0 %833
        %835 = vrot.lane.b32.xlu0 %v827, 95
        %v836 = vpop.permute.xlu0 %835
        %v837 = vsel %vm818, %v832, %v834
        %v838 = vsel %vm818, %v834, %v836
        %841 = vst [vmem:[#allocation2 + $0x1b0] sm:$0xff] %v837
        %842 = vst [vmem:[#allocation2 + $0x1b8] sm:$0xff] %v838
        %v843 = vld [vmem:[%s383] sm:$0xff]
        %v844 = vld [vmem:[%s383 + $0x8] sm:$0xff]
        %v845 = vld [vmem:[%s383 + $0x10] sm:$0xff]
        %849 = vrot.lane.b32.xlu0 %v843, 94
        %v850 = vpop.permute.xlu0 %849
        %851 = vrot.lane.b32.xlu0 %v844, 94
        %v852 = vpop.permute.xlu0 %851
        %853 = vrot.lane.b32.xlu0 %v845, 94
        %v854 = vpop.permute.xlu0 %853
        %vm855 = vcmask 769024
        %v856 = vsel %vm855, %v850, %v852
        %v857 = vsel %vm855, %v852, %v854
        %860 = vst [vmem:[#allocation2 + $0x1c0] sm:$0xff] %v856
        %861 = vst [vmem:[#allocation2 + $0x1c8] sm:$0xff] %v857
        %v862 = vld [vmem:[%s389] sm:$0xff]
        %v863 = vld [vmem:[%s389 + $0x8] sm:$0xff]
        %v864 = vld [vmem:[%s389 + $0x10] sm:$0xff]
        %868 = vrot.lane.b32.xlu0 %v862, 94
        %v869 = vpop.permute.xlu0 %868
        %870 = vrot.lane.b32.xlu0 %v863, 94
        %v871 = vpop.permute.xlu0 %870
        %872 = vrot.lane.b32.xlu0 %v864, 94
        %v873 = vpop.permute.xlu0 %872
        %v874 = vsel %vm855, %v869, %v871
        %v875 = vsel %vm855, %v871, %v873
        %878 = vst [vmem:[#allocation2 + $0x1d0] sm:$0xff] %v874
        %879 = vst [vmem:[#allocation2 + $0x1d8] sm:$0xff] %v875
        %v880 = vld [vmem:[%s468] sm:$0xff]
        %v881 = vld [vmem:[%s468 + $0x8] sm:$0xff]
        %v882 = vld [vmem:[%s468 + $0x10] sm:$0xff]
        %886 = vrot.lane.b32.xlu0 %v880, 96
        %v887 = vpop.permute.xlu0 %886
        %888 = vrot.lane.b32.xlu0 %v881, 96
        %v889 = vpop.permute.xlu0 %888
        %890 = vrot.lane.b32.xlu0 %v882, 96
        %v891 = vpop.permute.xlu0 %890
        %v892 = vsel %vm781, %v887, %v889
        %v893 = vsel %vm781, %v889, %v891
        %896 = vst [vmem:[#allocation2 + $0x1e0] sm:$0xff] %v892
        %897 = vst [vmem:[#allocation2 + $0x1e8] sm:$0xff] %v893
        %v898 = vld [vmem:[%s473] sm:$0xff]
        %v899 = vld [vmem:[%s473 + $0x8] sm:$0xff]
        %v900 = vld [vmem:[%s473 + $0x10] sm:$0xff]
        %904 = vrot.lane.b32.xlu0 %v898, 96
        %v905 = vpop.permute.xlu0 %904
        %906 = vrot.lane.b32.xlu0 %v899, 96
        %v907 = vpop.permute.xlu0 %906
        %908 = vrot.lane.b32.xlu0 %v900, 96
        %v909 = vpop.permute.xlu0 %908
        %v910 = vsel %vm781, %v905, %v907
        %v911 = vsel %vm781, %v907, %v909
        %914 = vst [vmem:[#allocation2 + $0x1f0] sm:$0xff] %v910
        %915 = vst [vmem:[#allocation2 + $0x1f8] sm:$0xff] %v911
        %v916 = vld [vmem:[%s468] sm:$0xff]
        %v917 = vld [vmem:[%s468 + $0x8] sm:$0xff]
        %v918 = vld [vmem:[%s468 + $0x10] sm:$0xff]
        %922 = vrot.lane.b32.xlu0 %v916, 95
        %v923 = vpop.permute.xlu0 %922
        %924 = vrot.lane.b32.xlu0 %v917, 95
        %v925 = vpop.permute.xlu0 %924
        %926 = vrot.lane.b32.xlu0 %v918, 95
        %v927 = vpop.permute.xlu0 %926
        %v928 = vsel %vm818, %v923, %v925
        %v929 = vsel %vm818, %v925, %v927
        %932 = vst [vmem:[#allocation2 + $0x200] sm:$0xff] %v928
        %933 = vst [vmem:[#allocation2 + $0x208] sm:$0xff] %v929
        %v934 = vld [vmem:[%s473] sm:$0xff]
        %v935 = vld [vmem:[%s473 + $0x8] sm:$0xff]
        %v936 = vld [vmem:[%s473 + $0x10] sm:$0xff]
        %940 = vrot.lane.b32.xlu0 %v934, 95
        %v941 = vpop.permute.xlu0 %940
        %942 = vrot.lane.b32.xlu0 %v935, 95
        %v943 = vpop.permute.xlu0 %942
        %944 = vrot.lane.b32.xlu0 %v936, 95
        %v945 = vpop.permute.xlu0 %944
        %v946 = vsel %vm818, %v941, %v943
        %v947 = vsel %vm818, %v943, %v945
        %950 = vst [vmem:[#allocation2 + $0x210] sm:$0xff] %v946
        %951 = vst [vmem:[#allocation2 + $0x218] sm:$0xff] %v947
        %v952 = vld [vmem:[%s468] sm:$0xff]
        %v953 = vld [vmem:[%s468 + $0x8] sm:$0xff]
        %v954 = vld [vmem:[%s468 + $0x10] sm:$0xff]
        %958 = vrot.lane.b32.xlu0 %v952, 94
        %v959 = vpop.permute.xlu0 %958
        %960 = vrot.lane.b32.xlu0 %v953, 94
        %v961 = vpop.permute.xlu0 %960
        %962 = vrot.lane.b32.xlu0 %v954, 94
        %v963 = vpop.permute.xlu0 %962
        %v964 = vsel %vm855, %v959, %v961
        %v965 = vsel %vm855, %v961, %v963
        %968 = vst [vmem:[#allocation2 + $0x220] sm:$0xff] %v964
        %969 = vst [vmem:[#allocation2 + $0x228] sm:$0xff] %v965
        %v970 = vld [vmem:[%s473] sm:$0xff]
        %v971 = vld [vmem:[%s473 + $0x8] sm:$0xff]
        %v972 = vld [vmem:[%s473 + $0x10] sm:$0xff]
        %976 = vrot.lane.b32.xlu0 %v970, 94
        %v977 = vpop.permute.xlu0 %976
        %978 = vrot.lane.b32.xlu0 %v971, 94
        %v979 = vpop.permute.xlu0 %978
        %980 = vrot.lane.b32.xlu0 %v972, 94
        %v981 = vpop.permute.xlu0 %980
        %v982 = vsel %vm855, %v977, %v979
        %v983 = vsel %vm855, %v979, %v981
        %986 = vst [vmem:[#allocation2 + $0x230] sm:$0xff] %v982
        %987 = vst [vmem:[#allocation2 + $0x238] sm:$0xff] %v983
        %v988 = vld [vmem:[%s1] sm:$0xff]
        %v989 = vld [vmem:[%s1 + $0x8] sm:$0xff]
        %v990 = vld [vmem:[%s1 + $0x10] sm:$0xff]
        %v991 = vld [vmem:[%s1 + $0x18] sm:$0xff]
        %v992 = vld [vmem:[%s1 + $0x20] sm:$0xff]
        %v993 = vld [vmem:[%s1 + $0x28] sm:$0xff]
        %v994 = vld [vmem:[%s1 + $0x30] sm:$0xff]
        %v995 = vld [vmem:[%s1 + $0x38] sm:$0xff]
        %v996 = vld [vmem:[%s1 + $0x40] sm:$0xff]
        %v997 = vld [vmem:[%s1 + $0x48] sm:$0xff]
        %v998 = vld [vmem:[%s1 + $0x50] sm:$0xff]
        %v999 = vld [vmem:[%s1 + $0x58] sm:$0xff]
        %v1000 = vld [vmem:[#allocation2] sm:$0xff]
        %v1001 = vld [vmem:[#allocation2 + $0x8] sm:$0xff]
        %v1002 = vld [vmem:[#allocation2 + $0x10] sm:$0xff]
        %v1003 = vld [vmem:[#allocation2 + $0x18] sm:$0xff]
        %v1004 = vld [vmem:[#allocation2 + $0x20] sm:$0xff]
        %v1005 = vld [vmem:[#allocation2 + $0x28] sm:$0xff]
        %v1006 = vld [vmem:[#allocation2 + $0x30] sm:$0xff]
        %v1007 = vld [vmem:[#allocation2 + $0x38] sm:$0xff]
        %v1008 = vld [vmem:[#allocation2 + $0x40] sm:$0xff]
        %v1009 = vld [vmem:[#allocation2 + $0x48] sm:$0xff]
        %v1010 = vld [vmem:[#allocation2 + $0x50] sm:$0xff]
        %v1011 = vld [vmem:[#allocation2 + $0x58] sm:$0xff]
        %v1012 = vld [vmem:[#allocation2 + $0x60] sm:$0xff]
        %v1013 = vld [vmem:[#allocation2 + $0x68] sm:$0xff]
        %v1014 = vld [vmem:[#allocation2 + $0x70] sm:$0xff]
        %v1015 = vld [vmem:[#allocation2 + $0x78] sm:$0xff]
        %v1016 = vld [vmem:[#allocation2 + $0x80] sm:$0xff]
        %v1017 = vld [vmem:[#allocation2 + $0x88] sm:$0xff]
        %v1018 = vld [vmem:[#allocation2 + $0x90] sm:$0xff]
        %v1019 = vld [vmem:[#allocation2 + $0x98] sm:$0xff]
        %v1020 = vld [vmem:[#allocation2 + $0xa0] sm:$0xff]
        %v1021 = vld [vmem:[#allocation2 + $0xa8] sm:$0xff]
        %v1022 = vld [vmem:[#allocation2 + $0xb0] sm:$0xff]
        %v1023 = vld [vmem:[#allocation2 + $0xb8] sm:$0xff]
        %v1024 = vld [vmem:[#allocation2 + $0xc0] sm:$0xff]
        %v1025 = vld [vmem:[#allocation2 + $0xc8] sm:$0xff]
        %v1026 = vld [vmem:[#allocation2 + $0xd0] sm:$0xff]
        %v1027 = vld [vmem:[#allocation2 + $0xd8] sm:$0xff]
        %v1028 = vld [vmem:[#allocation2 + $0xe0] sm:$0xff]
        %v1029 = vld [vmem:[#allocation2 + $0xe8] sm:$0xff]
        %v1030 = vld [vmem:[#allocation2 + $0xf0] sm:$0xff]
        %v1031 = vld [vmem:[#allocation2 + $0xf8] sm:$0xff]
        %v1032 = vld [vmem:[#allocation2 + $0x100] sm:$0xff]
        %v1033 = vld [vmem:[#allocation2 + $0x108] sm:$0xff]
        %v1034 = vld [vmem:[#allocation2 + $0x110] sm:$0xff]
        %v1035 = vld [vmem:[#allocation2 + $0x118] sm:$0xff]
        %v1036 = vld [vmem:[#allocation2 + $0x120] sm:$0xff]
        %v1037 = vld [vmem:[#allocation2 + $0x128] sm:$0xff]
        %v1038 = vld [vmem:[#allocation2 + $0x130] sm:$0xff]
        %v1039 = vld [vmem:[#allocation2 + $0x138] sm:$0xff]
        %v1040 = vld [vmem:[#allocation2 + $0x140] sm:$0xff]
        %v1041 = vld [vmem:[#allocation2 + $0x148] sm:$0xff]
        %v1042 = vld [vmem:[#allocation2 + $0x150] sm:$0xff]
        %v1043 = vld [vmem:[#allocation2 + $0x158] sm:$0xff]
        %v1044 = vld [vmem:[#allocation2 + $0x160] sm:$0xff]
        %v1045 = vld [vmem:[#allocation2 + $0x168] sm:$0xff]
        %v1046 = vld [vmem:[#allocation2 + $0x170] sm:$0xff]
        %v1047 = vld [vmem:[#allocation2 + $0x178] sm:$0xff]
        %v1048 = vld [vmem:[#allocation2 + $0x180] sm:$0xff]
        %v1049 = vld [vmem:[#allocation2 + $0x188] sm:$0xff]
        %v1050 = vld [vmem:[#allocation2 + $0x190] sm:$0xff]
        %v1051 = vld [vmem:[#allocation2 + $0x198] sm:$0xff]
        %v1052 = vld [vmem:[#allocation2 + $0x1a0] sm:$0xff]
        %v1053 = vld [vmem:[#allocation2 + $0x1a8] sm:$0xff]
        %v1054 = vld [vmem:[#allocation2 + $0x1b0] sm:$0xff]
        %v1055 = vld [vmem:[#allocation2 + $0x1b8] sm:$0xff]
        %v1056 = vld [vmem:[#allocation2 + $0x1c0] sm:$0xff]
        %v1057 = vld [vmem:[#allocation2 + $0x1c8] sm:$0xff]
        %v1058 = vld [vmem:[#allocation2 + $0x1d0] sm:$0xff]
        %v1059 = vld [vmem:[#allocation2 + $0x1d8] sm:$0xff]
        %v1060 = vld [vmem:[#allocation2 + $0x1e0] sm:$0xff]
        %v1061 = vld [vmem:[#allocation2 + $0x1e8] sm:$0xff]
        %v1062 = vld [vmem:[#allocation2 + $0x1f0] sm:$0xff]
        %v1063 = vld [vmem:[#allocation2 + $0x1f8] sm:$0xff]
        %v1064 = vld [vmem:[#allocation2 + $0x200] sm:$0xff]
        %v1065 = vld [vmem:[#allocation2 + $0x208] sm:$0xff]
        %v1066 = vld [vmem:[#allocation2 + $0x210] sm:$0xff]
        %v1067 = vld [vmem:[#allocation2 + $0x218] sm:$0xff]
        %v1068 = vld [vmem:[#allocation2 + $0x220] sm:$0xff]
        %v1069 = vld [vmem:[#allocation2 + $0x228] sm:$0xff]
        %v1070 = vld [vmem:[#allocation2 + $0x230] sm:$0xff]
        %v1071 = vld [vmem:[#allocation2 + $0x238] sm:$0xff]
        %vm1072 = vcmask 261120
        %v1074 = vsel %vm1072, %v990, 0
        %v1077 = vsel %vm1072, %v993, 0
        %v1080 = vsel %vm1072, %v996, 0
        %v1083 = vsel %vm1072, %v999, 0
        %1085 = vmatpush.msra.mxu0 %v1030
        %1086 = vmatpush.msra.mxu0 %v1028
        %1087 = vmatpush.msra.mxu0 %v1026
        %1088 = vmatpush.msra.mxu0 %v1024
        %1089 = vmatpush.msra.mxu0 %v1022
        %1090 = vmatpush.msra.mxu0 %v1020
        %1091 = vmatpush.msra.mxu0 %v1018
        %1092 = vmatpush.msra.mxu0 %v1016
        %1093 = vmatpush.msra.mxu0 %v1014
        %1094 = vmatpush.msra.mxu0 %v1012
        %1095 = vmatpush.msra.mxu0 %v1010
        %1096 = vmatpush.msra.mxu0 %v1008
        %1097 = vmatpush.msra.mxu0 %v1006
        %1098 = vmatpush.msra.mxu0 %v1004
        %1099 = vmatpush.msra.mxu0 %v1002
        %1100 = vmatpush.msra.mxu0 %v1000
        %1101 = vmatmul.f32.gmra.mxu0 %v988
        %v1102 = vpop.f32.mrf.mxu0
        %v1103 = vadd.f32 0.0, %v1102
        %1104 = vmatmul.f32.gmra.mxu0 %v991
        %v1105 = vpop.f32.mrf.mxu0
        %v1106 = vadd.f32 0.0, %v1105
        %1107 = vmatmul.f32.gmra.mxu0 %v994
        %v1108 = vpop.f32.mrf.mxu0
        %v1109 = vadd.f32 0.0, %v1108
        %1110 = vmatmul.f32.gmra.mxu0 %v997
        %v1111 = vpop.f32.mrf.mxu0
        %v1112 = vadd.f32 0.0, %v1111
        %1113 = vdwg.mxu0
        %1114 = vmatpush.msra.mxu0 %v1062
        %1115 = vmatpush.msra.mxu0 %v1060
        %1116 = vmatpush.msra.mxu0 %v1058
        %1117 = vmatpush.msra.mxu0 %v1056
        %1118 = vmatpush.msra.mxu0 %v1054
        %1119 = vmatpush.msra.mxu0 %v1052
        %1120 = vmatpush.msra.mxu0 %v1050
        %1121 = vmatpush.msra.mxu0 %v1048
        %1122 = vmatpush.msra.mxu0 %v1046
        %1123 = vmatpush.msra.mxu0 %v1044
        %1124 = vmatpush.msra.mxu0 %v1042
        %1125 = vmatpush.msra.mxu0 %v1040
        %1126 = vmatpush.msra.mxu0 %v1038
        %1127 = vmatpush.msra.mxu0 %v1036
        %1128 = vmatpush.msra.mxu0 %v1034
        %1129 = vmatpush.msra.mxu0 %v1032
        %1130 = vmatmul.f32.gmra.mxu0 %v989
        %v1131 = vpop.f32.mrf.mxu0
        %v1132 = vadd.f32 %v1103, %v1131
        %1133 = vmatmul.f32.gmra.mxu0 %v992
        %v1134 = vpop.f32.mrf.mxu0
        %v1135 = vadd.f32 %v1106, %v1134
        %1136 = vmatmul.f32.gmra.mxu0 %v995
        %v1137 = vpop.f32.mrf.mxu0
        %v1138 = vadd.f32 %v1109, %v1137
        %1139 = vmatmul.f32.gmra.mxu0 %v998
        %v1140 = vpop.f32.mrf.mxu0
        %v1141 = vadd.f32 %v1112, %v1140
        %1142 = vdwg.mxu0
        %1143 = vmatpush.msra.mxu0 0.0
        %1144 = vmatpush.msra.mxu0 0.0
        %1145 = vmatpush.msra.mxu0 0.0
        %1146 = vmatpush.msra.mxu0 0.0
        %1147 = vmatpush.msra.mxu0 0.0
        %1148 = vmatpush.msra.mxu0 0.0
        %1149 = vmatpush.msra.mxu0 0.0
        %1150 = vmatpush.msra.mxu0 0.0
        %1151 = vmatpush.msra.mxu0 0.0
        %1152 = vmatpush.msra.mxu0 0.0
        %1153 = vmatpush.msra.mxu0 0.0
        %1154 = vmatpush.msra.mxu0 0.0
        %1155 = vmatpush.msra.mxu0 %v1070
        %1156 = vmatpush.msra.mxu0 %v1068
        %1157 = vmatpush.msra.mxu0 %v1066
        %1158 = vmatpush.msra.mxu0 %v1064
        %1159 = vmatmul.f32.gmra.mxu0 %v1074
        %v1160 = vpop.f32.mrf.mxu0
        %v1161 = vadd.f32 %v1132, %v1160
        %1162 = vmatmul.f32.gmra.mxu0 %v1077
        %v1163 = vpop.f32.mrf.mxu0
        %v1164 = vadd.f32 %v1135, %v1163
        %1165 = vmatmul.f32.gmra.mxu0 %v1080
        %v1166 = vpop.f32.mrf.mxu0
        %v1167 = vadd.f32 %v1138, %v1166
        %1168 = vmatmul.f32.gmra.mxu0 %v1083
        %v1169 = vpop.f32.mrf.mxu0
        %v1170 = vadd.f32 %v1141, %v1169
        %1171 = vdwg.mxu0
        %1172 = vmatpush.msra.mxu0 %v1031
        %1173 = vmatpush.msra.mxu0 %v1029
        %1174 = vmatpush.msra.mxu0 %v1027
        %1175 = vmatpush.msra.mxu0 %v1025
        %1176 = vmatpush.msra.mxu0 %v1023
        %1177 = vmatpush.msra.mxu0 %v1021
        %1178 = vmatpush.msra.mxu0 %v1019
        %1179 = vmatpush.msra.mxu0 %v1017
        %1180 = vmatpush.msra.mxu0 %v1015
        %1181 = vmatpush.msra.mxu0 %v1013
        %1182 = vmatpush.msra.mxu0 %v1011
        %1183 = vmatpush.msra.mxu0 %v1009
        %1184 = vmatpush.msra.mxu0 %v1007
        %1185 = vmatpush.msra.mxu0 %v1005
        %1186 = vmatpush.msra.mxu0 %v1003
        %1187 = vmatpush.msra.mxu0 %v1001
        %1188 = vmatmul.f32.gmra.mxu0 %v988
        %v1189 = vpop.f32.mrf.mxu0
        %v1190 = vadd.f32 0.0, %v1189
        %1191 = vmatmul.f32.gmra.mxu0 %v991
        %v1192 = vpop.f32.mrf.mxu0
        %v1193 = vadd.f32 0.0, %v1192
        %1194 = vmatmul.f32.gmra.mxu0 %v994
        %v1195 = vpop.f32.mrf.mxu0
        %v1196 = vadd.f32 0.0, %v1195
        %1197 = vmatmul.f32.gmra.mxu0 %v997
        %v1198 = vpop.f32.mrf.mxu0
        %v1199 = vadd.f32 0.0, %v1198
        %1200 = vdwg.mxu0
        %1201 = vmatpush.msra.mxu0 %v1063
        %1202 = vmatpush.msra.mxu0 %v1061
        %1203 = vmatpush.msra.mxu0 %v1059
        %1204 = vmatpush.msra.mxu0 %v1057
        %1205 = vmatpush.msra.mxu0 %v1055
        %1206 = vmatpush.msra.mxu0 %v1053
        %1207 = vmatpush.msra.mxu0 %v1051
        %1208 = vmatpush.msra.mxu0 %v1049
        %1209 = vmatpush.msra.mxu0 %v1047
        %1210 = vmatpush.msra.mxu0 %v1045
        %1211 = vmatpush.msra.mxu0 %v1043
        %1212 = vmatpush.msra.mxu0 %v1041
        %1213 = vmatpush.msra.mxu0 %v1039
        %1214 = vmatpush.msra.mxu0 %v1037
        %1215 = vmatpush.msra.mxu0 %v1035
        %1216 = vmatpush.msra.mxu0 %v1033
        %1217 = vmatmul.f32.gmra.mxu0 %v989
        %v1218 = vpop.f32.mrf.mxu0
        %v1219 = vadd.f32 %v1190, %v1218
        %1220 = vmatmul.f32.gmra.mxu0 %v992
        %v1221 = vpop.f32.mrf.mxu0
        %v1222 = vadd.f32 %v1193, %v1221
        %1223 = vmatmul.f32.gmra.mxu0 %v995
        %v1224 = vpop.f32.mrf.mxu0
        %v1225 = vadd.f32 %v1196, %v1224
        %1226 = vmatmul.f32.gmra.mxu0 %v998
        %v1227 = vpop.f32.mrf.mxu0
        %v1228 = vadd.f32 %v1199, %v1227
        %1229 = vdwg.mxu0
        %1230 = vmatpush.msra.mxu0 0.0
        %1231 = vmatpush.msra.mxu0 0.0
        %1232 = vmatpush.msra.mxu0 0.0
        %1233 = vmatpush.msra.mxu0 0.0
        %1234 = vmatpush.msra.mxu0 0.0
        %1235 = vmatpush.msra.mxu0 0.0
        %1236 = vmatpush.msra.mxu0 0.0
        %1237 = vmatpush.msra.mxu0 0.0
        %1238 = vmatpush.msra.mxu0 0.0
        %1239 = vmatpush.msra.mxu0 0.0
        %1240 = vmatpush.msra.mxu0 0.0
        %1241 = vmatpush.msra.mxu0 0.0
        %1242 = vmatpush.msra.mxu0 %v1071
        %1243 = vmatpush.msra.mxu0 %v1069
        %1244 = vmatpush.msra.mxu0 %v1067
        %1245 = vmatpush.msra.mxu0 %v1065
        %1246 = vmatmul.f32.gmra.mxu0 %v1074
        %v1247 = vpop.f32.mrf.mxu0
        %v1248 = vadd.f32 %v1219, %v1247
        %1249 = vmatmul.f32.gmra.mxu0 %v1077
        %v1250 = vpop.f32.mrf.mxu0
        %v1251 = vadd.f32 %v1222, %v1250
        %1252 = vmatmul.f32.gmra.mxu0 %v1080
        %v1253 = vpop.f32.mrf.mxu0
        %v1254 = vadd.f32 %v1225, %v1253
        %1255 = vmatmul.f32.gmra.mxu0 %v1083
        %v1256 = vpop.f32.mrf.mxu0
        %v1257 = vadd.f32 %v1228, %v1256
        %1258 = vdwg.mxu0
        %v1259 = vmax.f32 %v1161, %v1164
        %v1260 = vmax.f32 %v1248, %v1251
        %v1261 = vmax.f32 %v1167, %v1170
        %v1262 = vmax.f32 %v1254, %v1257
        %v1263 = vmax.f32 %v1259, %v1261
        %v1264 = vmax.f32 %v1260, %v1262
        %v1265 = vld [vmem:[%s2] sm:$0xff]
        %1267 = vset.pattern.permute.xlu0 0
        %1268 = vperm.xlu0 %1267, %v1265
        %v1269 = vpop.permute.xlu0 %1268
        %v1271 = vadd.f32 %v1263, %v1269
        %v1272 = vadd.f32 %v1264, %v1269
        %v1273 = vmax.f32 %v1271, 0.0
        %v1274 = vmax.f32 %v1272, 0.0
        %1275 = vst [vmem:[#allocation3] sm:$0xff] %v1273
        %1276 = vst [vmem:[#allocation3 + $0x8] sm:$0xff] %v1274
        %v1277 = vld [vmem:[#allocation3] sm:$0xff]
        %v1278 = vld [vmem:[#allocation3 + $0x8] sm:$0xff]
        %1279 = vst [vmem:[#allocation4] sm:$0xff] %v1277
        %1280 = vst [vmem:[#allocation4 + $0x8] sm:$0xff] %v1278
        %v1281 = vld [vmem:[#allocation3] sm:$0xff]
        %v1282 = vld [vmem:[#allocation3 + $0x8] sm:$0xff]
        %v1283 = vld [vmem:[#allocation3 + $0x10] sm:$0xff]
        %1287 = vrot.lane.b32.xlu0 %v1281, 127
        %v1288 = vpop.permute.xlu0 %1287
        %1289 = vrot.lane.b32.xlu0 %v1282, 127
        %v1290 = vpop.permute.xlu0 %1289
        %1291 = vrot.lane.b32.xlu0 %v1283, 127
        %v1292 = vpop.permute.xlu0 %1291
        %v1293 = vsel %vm406, %v1288, %v1290
        %v1294 = vsel %vm406, %v1290, %v1292
        %1297 = vst [vmem:[#allocation4 + $0x10] sm:$0xff] %v1293
        %1298 = vst [vmem:[#allocation4 + $0x18] sm:$0xff] %v1294
        %v1299 = vld [vmem:[#allocation3] sm:$0xff]
        %v1300 = vld [vmem:[#allocation3 + $0x8] sm:$0xff]
        %v1301 = vld [vmem:[#allocation3 + $0x10] sm:$0xff]
        %1305 = vrot.lane.b32.xlu0 %v1299, 126
        %v1306 = vpop.permute.xlu0 %1305
        %1307 = vrot.lane.b32.xlu0 %v1300, 126
        %v1308 = vpop.permute.xlu0 %1307
        %1309 = vrot.lane.b32.xlu0 %v1301, 126
        %v1310 = vpop.permute.xlu0 %1309
        %v1311 = vsel %vm443, %v1306, %v1308
        %v1312 = vsel %vm443, %v1308, %v1310
        %1315 = vst [vmem:[#allocation4 + $0x20] sm:$0xff] %v1311
        %1316 = vst [vmem:[#allocation4 + $0x28] sm:$0xff] %v1312
        %v1317 = vld [vmem:[#allocation3] sm:$0xff]
        %v1318 = vld [vmem:[#allocation3 + $0x8] sm:$0xff]
        %v1319 = vld [vmem:[#allocation3 + $0x10] sm:$0xff]
        %1323 = vrot.lane.b32.xlu0 %v1317, 125
        %v1324 = vpop.permute.xlu0 %1323
        %1325 = vrot.lane.b32.xlu0 %v1318, 125
        %v1326 = vpop.permute.xlu0 %1325
        %1327 = vrot.lane.b32.xlu0 %v1319, 125
        %v1328 = vpop.permute.xlu0 %1327
        %vm1329 = vcmask 1022976
        %v1330 = vsel %vm1329, %v1324, %v1326
        %v1331 = vsel %vm1329, %v1326, %v1328
        %1334 = vst [vmem:[#allocation4 + $0x30] sm:$0xff] %v1330
        %1335 = vst [vmem:[#allocation4 + $0x38] sm:$0xff] %v1331
        %v1336 = vld [vmem:[#allocation3] sm:$0xff]
        %v1337 = vld [vmem:[#allocation3 + $0x8] sm:$0xff]
        %v1338 = vld [vmem:[#allocation3 + $0x10] sm:$0xff]
        %1342 = vrot.lane.b32.xlu0 %v1336, 124
        %v1343 = vpop.permute.xlu0 %1342
        %1344 = vrot.lane.b32.xlu0 %v1337, 124
        %v1345 = vpop.permute.xlu0 %1344
        %1346 = vrot.lane.b32.xlu0 %v1338, 124
        %v1347 = vpop.permute.xlu0 %1346
        %vm1348 = vcmask 1014784
        %v1349 = vsel %vm1348, %v1343, %v1345
        %v1350 = vsel %vm1348, %v1345, %v1347
        %1353 = vst [vmem:[#allocation4 + $0x40] sm:$0xff] %v1349
        %1354 = vst [vmem:[#allocation4 + $0x48] sm:$0xff] %v1350
        %v1355 = vld [vmem:[#allocation3] sm:$0xff]
        %v1356 = vld [vmem:[#allocation3 + $0x8] sm:$0xff]
        %v1357 = vld [vmem:[#allocation3 + $0x10] sm:$0xff]
        %1361 = vrot.lane.b32.xlu0 %v1355, 123
        %v1362 = vpop.permute.xlu0 %1361
        %1363 = vrot.lane.b32.xlu0 %v1356, 123
        %v1364 = vpop.permute.xlu0 %1363
        %1365 = vrot.lane.b32.xlu0 %v1357, 123
        %v1366 = vpop.permute.xlu0 %1365
        %vm1367 = vcmask 1006592
        %v1368 = vsel %vm1367, %v1362, %v1364
        %v1369 = vsel %vm1367, %v1364, %v1366
        %1372 = vst [vmem:[#allocation4 + $0x50] sm:$0xff] %v1368
        %1373 = vst [vmem:[#allocation4 + $0x58] sm:$0xff] %v1369
        %v1374 = vld [vmem:[#allocation3] sm:$0xff]
        %v1375 = vld [vmem:[#allocation3 + $0x8] sm:$0xff]
        %v1376 = vld [vmem:[#allocation3 + $0x10] sm:$0xff]
        %1380 = vrot.lane.b32.xlu0 %v1374, 112
        %v1381 = vpop.permute.xlu0 %1380
        %1382 = vrot.lane.b32.xlu0 %v1375, 112
        %v1383 = vpop.permute.xlu0 %1382
        %1384 = vrot.lane.b32.xlu0 %v1376, 112
        %v1385 = vpop.permute.xlu0 %1384
        %v1386 = vsel %vm562, %v1381, %v1383
        %v1387 = vsel %vm562, %v1383, %v1385
        %1390 = vst [vmem:[#allocation4 + $0x60] sm:$0xff] %v1386
        %1391 = vst [vmem:[#allocation4 + $0x68] sm:$0xff] %v1387
        %v1392 = vld [vmem:[#allocation3] sm:$0xff]
        %v1393 = vld [vmem:[#allocation3 + $0x8] sm:$0xff]
        %v1394 = vld [vmem:[#allocation3 + $0x10] sm:$0xff]
        %1398 = vrot.lane.b32.xlu0 %v1392, 111
        %v1399 = vpop.permute.xlu0 %1398
        %1400 = vrot.lane.b32.xlu0 %v1393, 111
        %v1401 = vpop.permute.xlu0 %1400
        %1402 = vrot.lane.b32.xlu0 %v1394, 111
        %v1403 = vpop.permute.xlu0 %1402
        %v1404 = vsel %vm599, %v1399, %v1401
        %v1405 = vsel %vm599, %v1401, %v1403
        %1408 = vst [vmem:[#allocation4 + $0x70] sm:$0xff] %v1404
        %1409 = vst [vmem:[#allocation4 + $0x78] sm:$0xff] %v1405
        %v1410 = vld [vmem:[#allocation3] sm:$0xff]
        %v1411 = vld [vmem:[#allocation3 + $0x8] sm:$0xff]
        %v1412 = vld [vmem:[#allocation3 + $0x10] sm:$0xff]
        %1416 = vrot.lane.b32.xlu0 %v1410, 110
        %v1417 = vpop.permute.xlu0 %1416
        %1418 = vrot.lane.b32.xlu0 %v1411, 110
        %v1419 = vpop.permute.xlu0 %1418
        %1420 = vrot.lane.b32.xlu0 %v1412, 110
        %v1421 = vpop.permute.xlu0 %1420
        %v1422 = vsel %vm636, %v1417, %v1419
        %v1423 = vsel %vm636, %v1419, %v1421
        %1426 = vst [vmem:[#allocation4 + $0x80] sm:$0xff] %v1422
        %1427 = vst [vmem:[#allocation4 + $0x88] sm:$0xff] %v1423
        %v1428 = vld [vmem:[#allocation3] sm:$0xff]
        %v1429 = vld [vmem:[#allocation3 + $0x8] sm:$0xff]
        %v1430 = vld [vmem:[#allocation3 + $0x10] sm:$0xff]
        %1434 = vrot.lane.b32.xlu0 %v1428, 109
        %v1435 = vpop.permute.xlu0 %1434
        %1436 = vrot.lane.b32.xlu0 %v1429, 109
        %v1437 = vpop.permute.xlu0 %1436
        %1438 = vrot.lane.b32.xlu0 %v1430, 109
        %v1439 = vpop.permute.xlu0 %1438
        %vm1440 = vcmask 891904
        %v1441 = vsel %vm1440, %v1435, %v1437
        %v1442 = vsel %vm1440, %v1437, %v1439
        %1445 = vst [vmem:[#allocation4 + $0x90] sm:$0xff] %v1441
        %1446 = vst [vmem:[#allocation4 + $0x98] sm:$0xff] %v1442
        %v1447 = vld [vmem:[#allocation3] sm:$0xff]
        %v1448 = vld [vmem:[#allocation3 + $0x8] sm:$0xff]
        %v1449 = vld [vmem:[#allocation3 + $0x10] sm:$0xff]
        %1453 = vrot.lane.b32.xlu0 %v1447, 108
        %v1454 = vpop.permute.xlu0 %1453
        %1455 = vrot.lane.b32.xlu0 %v1448, 108
        %v1456 = vpop.permute.xlu0 %1455
        %1457 = vrot.lane.b32.xlu0 %v1449, 108
        %v1458 = vpop.permute.xlu0 %1457
        %vm1459 = vcmask 883712
        %v1460 = vsel %vm1459, %v1454, %v1456
        %v1461 = vsel %vm1459, %v1456, %v1458
        %1464 = vst [vmem:[#allocation4 + $0xa0] sm:$0xff] %v1460
        %1465 = vst [vmem:[#allocation4 + $0xa8] sm:$0xff] %v1461
        %v1466 = vld [vmem:[#allocation3] sm:$0xff]
        %v1467 = vld [vmem:[#allocation3 + $0x8] sm:$0xff]
        %v1468 = vld [vmem:[#allocation3 + $0x10] sm:$0xff]
        %1472 = vrot.lane.b32.xlu0 %v1466, 107
        %v1473 = vpop.permute.xlu0 %1472
        %1474 = vrot.lane.b32.xlu0 %v1467, 107
        %v1475 = vpop.permute.xlu0 %1474
        %1476 = vrot.lane.b32.xlu0 %v1468, 107
        %v1477 = vpop.permute.xlu0 %1476
        %vm1478 = vcmask 875520
        %v1479 = vsel %vm1478, %v1473, %v1475
        %v1480 = vsel %vm1478, %v1475, %v1477
        %1483 = vst [vmem:[#allocation4 + $0xb0] sm:$0xff] %v1479
        %1484 = vst [vmem:[#allocation4 + $0xb8] sm:$0xff] %v1480
        %v1485 = vld [vmem:[#allocation3] sm:$0xff]
        %v1486 = vld [vmem:[#allocation3 + $0x8] sm:$0xff]
        %v1487 = vld [vmem:[#allocation3 + $0x10] sm:$0xff]
        %1491 = vrot.lane.b32.xlu0 %v1485, 96
        %v1492 = vpop.permute.xlu0 %1491
        %1493 = vrot.lane.b32.xlu0 %v1486, 96
        %v1494 = vpop.permute.xlu0 %1493
        %1495 = vrot.lane.b32.xlu0 %v1487, 96
        %v1496 = vpop.permute.xlu0 %1495
        %v1497 = vsel %vm781, %v1492, %v1494
        %v1498 = vsel %vm781, %v1494, %v1496
        %1501 = vst [vmem:[#allocation4 + $0xc0] sm:$0xff] %v1497
        %1502 = vst [vmem:[#allocation4 + $0xc8] sm:$0xff] %v1498
        %v1503 = vld [vmem:[#allocation3] sm:$0xff]
        %v1504 = vld [vmem:[#allocation3 + $0x8] sm:$0xff]
        %v1505 = vld [vmem:[#allocation3 + $0x10] sm:$0xff]
        %1509 = vrot.lane.b32.xlu0 %v1503, 95
        %v1510 = vpop.permute.xlu0 %1509
        %1511 = vrot.lane.b32.xlu0 %v1504, 95
        %v1512 = vpop.permute.xlu0 %1511
        %1513 = vrot.lane.b32.xlu0 %v1505, 95
        %v1514 = vpop.permute.xlu0 %1513
        %v1515 = vsel %vm818, %v1510, %v1512
        %v1516 = vsel %vm818, %v1512, %v1514
        %1519 = vst [vmem:[#allocation4 + $0xd0] sm:$0xff] %v1515
        %1520 = vst [vmem:[#allocation4 + $0xd8] sm:$0xff] %v1516
        %v1521 = vld [vmem:[#allocation3] sm:$0xff]
        %v1522 = vld [vmem:[#allocation3 + $0x8] sm:$0xff]
        %v1523 = vld [vmem:[#allocation3 + $0x10] sm:$0xff]
        %1527 = vrot.lane.b32.xlu0 %v1521, 94
        %v1528 = vpop.permute.xlu0 %1527
        %1529 = vrot.lane.b32.xlu0 %v1522, 94
        %v1530 = vpop.permute.xlu0 %1529
        %1531 = vrot.lane.b32.xlu0 %v1523, 94
        %v1532 = vpop.permute.xlu0 %1531
        %v1533 = vsel %vm855, %v1528, %v1530
        %v1534 = vsel %vm855, %v1530, %v1532
        %1537 = vst [vmem:[#allocation4 + $0xe0] sm:$0xff] %v1533
        %1538 = vst [vmem:[#allocation4 + $0xe8] sm:$0xff] %v1534
        %v1539 = vld [vmem:[#allocation3] sm:$0xff]
        %v1540 = vld [vmem:[#allocation3 + $0x8] sm:$0xff]
        %v1541 = vld [vmem:[#allocation3 + $0x10] sm:$0xff]
        %1545 = vrot.lane.b32.xlu0 %v1539, 93
        %v1546 = vpop.permute.xlu0 %1545
        %1547 = vrot.lane.b32.xlu0 %v1540, 93
        %v1548 = vpop.permute.xlu0 %1547
        %1549 = vrot.lane.b32.xlu0 %v1541, 93
        %v1550 = vpop.permute.xlu0 %1549
        %vm1551 = vcmask 760832
        %v1552 = vsel %vm1551, %v1546, %v1548
        %v1553 = vsel %vm1551, %v1548, %v1550
        %1556 = vst [vmem:[#allocation4 + $0xf0] sm:$0xff] %v1552
        %1557 = vst [vmem:[#allocation4 + $0xf8] sm:$0xff] %v1553
        %v1558 = vld [vmem:[#allocation3] sm:$0xff]
        %v1559 = vld [vmem:[#allocation3 + $0x8] sm:$0xff]
        %v1560 = vld [vmem:[#allocation3 + $0x10] sm:$0xff]
        %1564 = vrot.lane.b32.xlu0 %v1558, 92
        %v1565 = vpop.permute.xlu0 %1564
        %1566 = vrot.lane.b32.xlu0 %v1559, 92
        %v1567 = vpop.permute.xlu0 %1566
        %1568 = vrot.lane.b32.xlu0 %v1560, 92
        %v1569 = vpop.permute.xlu0 %1568
        %vm1570 = vcmask 752640
        %v1571 = vsel %vm1570, %v1565, %v1567
        %v1572 = vsel %vm1570, %v1567, %v1569
        %1575 = vst [vmem:[#allocation4 + $0x100] sm:$0xff] %v1571
        %1576 = vst [vmem:[#allocation4 + $0x108] sm:$0xff] %v1572
        %v1577 = vld [vmem:[#allocation3] sm:$0xff]
        %v1578 = vld [vmem:[#allocation3 + $0x8] sm:$0xff]
        %v1579 = vld [vmem:[#allocation3 + $0x10] sm:$0xff]
        %1583 = vrot.lane.b32.xlu0 %v1577, 91
        %v1584 = vpop.permute.xlu0 %1583
        %1585 = vrot.lane.b32.xlu0 %v1578, 91
        %v1586 = vpop.permute.xlu0 %1585
        %1587 = vrot.lane.b32.xlu0 %v1579, 91
        %v1588 = vpop.permute.xlu0 %1587
        %vm1589 = vcmask 744448
        %v1590 = vsel %vm1589, %v1584, %v1586
        %v1591 = vsel %vm1589, %v1586, %v1588
        %1594 = vst [vmem:[#allocation4 + $0x110] sm:$0xff] %v1590
        %1595 = vst [vmem:[#allocation4 + $0x118] sm:$0xff] %v1591
        %v1596 = vld [vmem:[#allocation3] sm:$0xff]
        %v1597 = vld [vmem:[#allocation3 + $0x8] sm:$0xff]
        %v1598 = vld [vmem:[#allocation3 + $0x10] sm:$0xff]
        %1602 = vrot.lane.b32.xlu0 %v1596, 80
        %v1603 = vpop.permute.xlu0 %1602
        %1604 = vrot.lane.b32.xlu0 %v1597, 80
        %v1605 = vpop.permute.xlu0 %1604
        %1606 = vrot.lane.b32.xlu0 %v1598, 80
        %v1607 = vpop.permute.xlu0 %1606
        %vm1608 = vcmask 654336
        %v1609 = vsel %vm1608, %v1603, %v1605
        %v1610 = vsel %vm1608, %v1605, %v1607
        %1613 = vst [vmem:[#allocation4 + $0x120] sm:$0xff] %v1609
        %1614 = vst [vmem:[#allocation4 + $0x128] sm:$0xff] %v1610
        %v1615 = vld [vmem:[#allocation3] sm:$0xff]
        %v1616 = vld [vmem:[#allocation3 + $0x8] sm:$0xff]
        %v1617 = vld [vmem:[#allocation3 + $0x10] sm:$0xff]
        %1621 = vrot.lane.b32.xlu0 %v1615, 79
        %v1622 = vpop.permute.xlu0 %1621
        %1623 = vrot.lane.b32.xlu0 %v1616, 79
        %v1624 = vpop.permute.xlu0 %1623
        %1625 = vrot.lane.b32.xlu0 %v1617, 79
        %v1626 = vpop.permute.xlu0 %1625
        %vm1627 = vcmask 646144
        %v1628 = vsel %vm1627, %v1622, %v1624
        %v1629 = vsel %vm1627, %v1624, %v1626
        %1632 = vst [vmem:[#allocation4 + $0x130] sm:$0xff] %v1628
        %1633 = vst [vmem:[#allocation4 + $0x138] sm:$0xff] %v1629
        %v1634 = vld [vmem:[#allocation3] sm:$0xff]
        %v1635 = vld [vmem:[#allocation3 + $0x8] sm:$0xff]
        %v1636 = vld [vmem:[#allocation3 + $0x10] sm:$0xff]
        %1640 = vrot.lane.b32.xlu0 %v1634, 78
        %v1641 = vpop.permute.xlu0 %1640
        %1642 = vrot.lane.b32.xlu0 %v1635, 78
        %v1643 = vpop.permute.xlu0 %1642
        %1644 = vrot.lane.b32.xlu0 %v1636, 78
        %v1645 = vpop.permute.xlu0 %1644
        %vm1646 = vcmask 637952
        %v1647 = vsel %vm1646, %v1641, %v1643
        %v1648 = vsel %vm1646, %v1643, %v1645
        %1651 = vst [vmem:[#allocation4 + $0x140] sm:$0xff] %v1647
        %1652 = vst [vmem:[#allocation4 + $0x148] sm:$0xff] %v1648
        %v1653 = vld [vmem:[#allocation3] sm:$0xff]
        %v1654 = vld [vmem:[#allocation3 + $0x8] sm:$0xff]
        %v1655 = vld [vmem:[#allocation3 + $0x10] sm:$0xff]
        %1659 = vrot.lane.b32.xlu0 %v1653, 77
        %v1660 = vpop.permute.xlu0 %1659
        %1661 = vrot.lane.b32.xlu0 %v1654, 77
        %v1662 = vpop.permute.xlu0 %1661
        %1663 = vrot.lane.b32.xlu0 %v1655, 77
        %v1664 = vpop.permute.xlu0 %1663
        %vm1665 = vcmask 629760
        %v1666 = vsel %vm1665, %v1660, %v1662
        %v1667 = vsel %vm1665, %v1662, %v1664
        %1670 = vst [vmem:[#allocation4 + $0x150] sm:$0xff] %v1666
        %1671 = vst [vmem:[#allocation4 + $0x158] sm:$0xff] %v1667
        %v1672 = vld [vmem:[#allocation3] sm:$0xff]
        %v1673 = vld [vmem:[#allocation3 + $0x8] sm:$0xff]
        %v1674 = vld [vmem:[#allocation3 + $0x10] sm:$0xff]
        %1678 = vrot.lane.b32.xlu0 %v1672, 76
        %v1679 = vpop.permute.xlu0 %1678
        %1680 = vrot.lane.b32.xlu0 %v1673, 76
        %v1681 = vpop.permute.xlu0 %1680
        %1682 = vrot.lane.b32.xlu0 %v1674, 76
        %v1683 = vpop.permute.xlu0 %1682
        %vm1684 = vcmask 621568
        %v1685 = vsel %vm1684, %v1679, %v1681
        %v1686 = vsel %vm1684, %v1681, %v1683
        %1689 = vst [vmem:[#allocation4 + $0x160] sm:$0xff] %v1685
        %1690 = vst [vmem:[#allocation4 + $0x168] sm:$0xff] %v1686
        %v1691 = vld [vmem:[#allocation3] sm:$0xff]
        %v1692 = vld [vmem:[#allocation3 + $0x8] sm:$0xff]
        %v1693 = vld [vmem:[#allocation3 + $0x10] sm:$0xff]
        %1697 = vrot.lane.b32.xlu0 %v1691, 75
        %v1698 = vpop.permute.xlu0 %1697
        %1699 = vrot.lane.b32.xlu0 %v1692, 75
        %v1700 = vpop.permute.xlu0 %1699
        %1701 = vrot.lane.b32.xlu0 %v1693, 75
        %v1702 = vpop.permute.xlu0 %1701
        %vm1703 = vcmask 613376
        %v1704 = vsel %vm1703, %v1698, %v1700
        %v1705 = vsel %vm1703, %v1700, %v1702
        %1708 = vst [vmem:[#allocation4 + $0x170] sm:$0xff] %v1704
        %1709 = vst [vmem:[#allocation4 + $0x178] sm:$0xff] %v1705
        %v1710 = vld [vmem:[#allocation3] sm:$0xff]
        %v1711 = vld [vmem:[#allocation3 + $0x8] sm:$0xff]
        %v1712 = vld [vmem:[#allocation3 + $0x10] sm:$0xff]
        %1716 = vrot.lane.b32.xlu0 %v1710, 64
        %v1717 = vpop.permute.xlu0 %1716
        %1718 = vrot.lane.b32.xlu0 %v1711, 64
        %v1719 = vpop.permute.xlu0 %1718
        %1720 = vrot.lane.b32.xlu0 %v1712, 64
        %v1721 = vpop.permute.xlu0 %1720
        %vm1722 = vcmask 523264
        %v1723 = vsel %vm1722, %v1717, %v1719
        %v1724 = vsel %vm1722, %v1719, %v1721
        %1727 = vst [vmem:[#allocation4 + $0x180] sm:$0xff] %v1723
        %1728 = vst [vmem:[#allocation4 + $0x188] sm:$0xff] %v1724
        %v1729 = vld [vmem:[#allocation3] sm:$0xff]
        %v1730 = vld [vmem:[#allocation3 + $0x8] sm:$0xff]
        %v1731 = vld [vmem:[#allocation3 + $0x10] sm:$0xff]
        %1735 = vrot.lane.b32.xlu0 %v1729, 63
        %v1736 = vpop.permute.xlu0 %1735
        %1737 = vrot.lane.b32.xlu0 %v1730, 63
        %v1738 = vpop.permute.xlu0 %1737
        %1739 = vrot.lane.b32.xlu0 %v1731, 63
        %v1740 = vpop.permute.xlu0 %1739
        %vm1741 = vcmask 515072
        %v1742 = vsel %vm1741, %v1736, %v1738
        %v1743 = vsel %vm1741, %v1738, %v1740
        %1746 = vst [vmem:[#allocation4 + $0x190] sm:$0xff] %v1742
        %1747 = vst [vmem:[#allocation4 + $0x198] sm:$0xff] %v1743
        %v1748 = vld [vmem:[#allocation3] sm:$0xff]
        %v1749 = vld [vmem:[#allocation3 + $0x8] sm:$0xff]
        %v1750 = vld [vmem:[#allocation3 + $0x10] sm:$0xff]
        %1754 = vrot.lane.b32.xlu0 %v1748, 62
        %v1755 = vpop.permute.xlu0 %1754
        %1756 = vrot.lane.b32.xlu0 %v1749, 62
        %v1757 = vpop.permute.xlu0 %1756
        %1758 = vrot.lane.b32.xlu0 %v1750, 62
        %v1759 = vpop.permute.xlu0 %1758
        %vm1760 = vcmask 506880
        %v1761 = vsel %vm1760, %v1755, %v1757
        %v1762 = vsel %vm1760, %v1757, %v1759
        %1765 = vst [vmem:[#allocation4 + $0x1a0] sm:$0xff] %v1761
        %1766 = vst [vmem:[#allocation4 + $0x1a8] sm:$0xff] %v1762
        %v1767 = vld [vmem:[#allocation3] sm:$0xff]
        %v1768 = vld [vmem:[#allocation3 + $0x8] sm:$0xff]
        %v1769 = vld [vmem:[#allocation3 + $0x10] sm:$0xff]
        %1773 = vrot.lane.b32.xlu0 %v1767, 61
        %v1774 = vpop.permute.xlu0 %1773
        %1775 = vrot.lane.b32.xlu0 %v1768, 61
        %v1776 = vpop.permute.xlu0 %1775
        %1777 = vrot.lane.b32.xlu0 %v1769, 61
        %v1778 = vpop.permute.xlu0 %1777
        %vm1779 = vcmask 498688
        %v1780 = vsel %vm1779, %v1774, %v1776
        %v1781 = vsel %vm1779, %v1776, %v1778
        %1784 = vst [vmem:[#allocation4 + $0x1b0] sm:$0xff] %v1780
        %1785 = vst [vmem:[#allocation4 + $0x1b8] sm:$0xff] %v1781
        %v1786 = vld [vmem:[#allocation3] sm:$0xff]
        %v1787 = vld [vmem:[#allocation3 + $0x8] sm:$0xff]
        %v1788 = vld [vmem:[#allocation3 + $0x10] sm:$0xff]
        %1792 = vrot.lane.b32.xlu0 %v1786, 60
        %v1793 = vpop.permute.xlu0 %1792
        %1794 = vrot.lane.b32.xlu0 %v1787, 60
        %v1795 = vpop.permute.xlu0 %1794
        %1796 = vrot.lane.b32.xlu0 %v1788, 60
        %v1797 = vpop.permute.xlu0 %1796
        %vm1798 = vcmask 490496
        %v1799 = vsel %vm1798, %v1793, %v1795
        %v1800 = vsel %vm1798, %v1795, %v1797
        %1803 = vst [vmem:[#allocation4 + $0x1c0] sm:$0xff] %v1799
        %1804 = vst [vmem:[#allocation4 + $0x1c8] sm:$0xff] %v1800
        %v1805 = vld [vmem:[#allocation3] sm:$0xff]
        %v1806 = vld [vmem:[#allocation3 + $0x8] sm:$0xff]
        %v1807 = vld [vmem:[#allocation3 + $0x10] sm:$0xff]
        %1811 = vrot.lane.b32.xlu0 %v1805, 59
        %v1812 = vpop.permute.xlu0 %1811
        %1813 = vrot.lane.b32.xlu0 %v1806, 59
        %v1814 = vpop.permute.xlu0 %1813
        %1815 = vrot.lane.b32.xlu0 %v1807, 59
        %v1816 = vpop.permute.xlu0 %1815
        %vm1817 = vcmask 482304
        %v1818 = vsel %vm1817, %v1812, %v1814
        %v1819 = vsel %vm1817, %v1814, %v1816
        %1822 = vst [vmem:[#allocation4 + $0x1d0] sm:$0xff] %v1818
        %1823 = vst [vmem:[#allocation4 + $0x1d8] sm:$0xff] %v1819
        %v1824 = vld [vmem:[#allocation3] sm:$0xff]
        %v1825 = vld [vmem:[#allocation3 + $0x8] sm:$0xff]
        %v1826 = vld [vmem:[#allocation3 + $0x10] sm:$0xff]
        %1830 = vrot.lane.b32.xlu0 %v1824, 48
        %v1831 = vpop.permute.xlu0 %1830
        %1832 = vrot.lane.b32.xlu0 %v1825, 48
        %v1833 = vpop.permute.xlu0 %1832
        %1834 = vrot.lane.b32.xlu0 %v1826, 48
        %v1835 = vpop.permute.xlu0 %1834
        %vm1836 = vcmask 392192
        %v1837 = vsel %vm1836, %v1831, %v1833
        %v1838 = vsel %vm1836, %v1833, %v1835
        %1841 = vst [vmem:[#allocation4 + $0x1e0] sm:$0xff] %v1837
        %1842 = vst [vmem:[#allocation4 + $0x1e8] sm:$0xff] %v1838
        %v1843 = vld [vmem:[#allocation3] sm:$0xff]
        %v1844 = vld [vmem:[#allocation3 + $0x8] sm:$0xff]
        %v1845 = vld [vmem:[#allocation3 + $0x10] sm:$0xff]
        %1849 = vrot.lane.b32.xlu0 %v1843, 47
        %v1850 = vpop.permute.xlu0 %1849
        %1851 = vrot.lane.b32.xlu0 %v1844, 47
        %v1852 = vpop.permute.xlu0 %1851
        %1853 = vrot.lane.b32.xlu0 %v1845, 47
        %v1854 = vpop.permute.xlu0 %1853
        %vm1855 = vcmask 384000
        %v1856 = vsel %vm1855, %v1850, %v1852
        %v1857 = vsel %vm1855, %v1852, %v1854
        %1860 = vst [vmem:[#allocation4 + $0x1f0] sm:$0xff] %v1856
        %1861 = vst [vmem:[#allocation4 + $0x1f8] sm:$0xff] %v1857
        %v1862 = vld [vmem:[#allocation3] sm:$0xff]
        %v1863 = vld [vmem:[#allocation3 + $0x8] sm:$0xff]
        %v1864 = vld [vmem:[#allocation3 + $0x10] sm:$0xff]
        %1868 = vrot.lane.b32.xlu0 %v1862, 46
        %v1869 = vpop.permute.xlu0 %1868
        %1870 = vrot.lane.b32.xlu0 %v1863, 46
        %v1871 = vpop.permute.xlu0 %1870
        %1872 = vrot.lane.b32.xlu0 %v1864, 46
        %v1873 = vpop.permute.xlu0 %1872
        %vm1874 = vcmask 375808
        %v1875 = vsel %vm1874, %v1869, %v1871
        %v1876 = vsel %vm1874, %v1871, %v1873
        %1879 = vst [vmem:[#allocation4 + $0x200] sm:$0xff] %v1875
        %1880 = vst [vmem:[#allocation4 + $0x208] sm:$0xff] %v1876
        %v1881 = vld [vmem:[#allocation3] sm:$0xff]
        %v1882 = vld [vmem:[#allocation3 + $0x8] sm:$0xff]
        %v1883 = vld [vmem:[#allocation3 + $0x10] sm:$0xff]
        %1887 = vrot.lane.b32.xlu0 %v1881, 45
        %v1888 = vpop.permute.xlu0 %1887
        %1889 = vrot.lane.b32.xlu0 %v1882, 45
        %v1890 = vpop.permute.xlu0 %1889
        %1891 = vrot.lane.b32.xlu0 %v1883, 45
        %v1892 = vpop.permute.xlu0 %1891
        %vm1893 = vcmask 367616
        %v1894 = vsel %vm1893, %v1888, %v1890
        %v1895 = vsel %vm1893, %v1890, %v1892
        %1898 = vst [vmem:[#allocation4 + $0x210] sm:$0xff] %v1894
        %1899 = vst [vmem:[#allocation4 + $0x218] sm:$0xff] %v1895
        %v1900 = vld [vmem:[#allocation3] sm:$0xff]
        %v1901 = vld [vmem:[#allocation3 + $0x8] sm:$0xff]
        %v1902 = vld [vmem:[#allocation3 + $0x10] sm:$0xff]
        %1906 = vrot.lane.b32.xlu0 %v1900, 44
        %v1907 = vpop.permute.xlu0 %1906
        %1908 = vrot.lane.b32.xlu0 %v1901, 44
        %v1909 = vpop.permute.xlu0 %1908
        %1910 = vrot.lane.b32.xlu0 %v1902, 44
        %v1911 = vpop.permute.xlu0 %1910
        %vm1912 = vcmask 359424
        %v1913 = vsel %vm1912, %v1907, %v1909
        %v1914 = vsel %vm1912, %v1909, %v1911
        %1917 = vst [vmem:[#allocation4 + $0x220] sm:$0xff] %v1913
        %1918 = vst [vmem:[#allocation4 + $0x228] sm:$0xff] %v1914
        %v1919 = vld [vmem:[#allocation3] sm:$0xff]
        %v1920 = vld [vmem:[#allocation3 + $0x8] sm:$0xff]
        %v1921 = vld [vmem:[#allocation3 + $0x10] sm:$0xff]
        %1925 = vrot.lane.b32.xlu0 %v1919, 43
        %v1926 = vpop.permute.xlu0 %1925
        %1927 = vrot.lane.b32.xlu0 %v1920, 43
        %v1928 = vpop.permute.xlu0 %1927
        %1929 = vrot.lane.b32.xlu0 %v1921, 43
        %v1930 = vpop.permute.xlu0 %1929
        %vm1931 = vcmask 351232
        %v1932 = vsel %vm1931, %v1926, %v1928
        %v1933 = vsel %vm1931, %v1928, %v1930
        %1936 = vst [vmem:[#allocation4 + $0x230] sm:$0xff] %v1932
        %1937 = vst [vmem:[#allocation4 + $0x238] sm:$0xff] %v1933
        %v1938 = vld [vmem:[%s3] sm:$0xff]
        %v1939 = vld [vmem:[%s3 + $0x8] sm:$0xff]
        %v1940 = vld [vmem:[%s3 + $0x10] sm:$0xff]
        %v1941 = vld [vmem:[%s3 + $0x18] sm:$0xff]
        %v1942 = vld [vmem:[%s3 + $0x20] sm:$0xff]
        %v1943 = vld [vmem:[%s3 + $0x28] sm:$0xff]
        %v1944 = vld [vmem:[%s3 + $0x30] sm:$0xff]
        %v1945 = vld [vmem:[%s3 + $0x38] sm:$0xff]
        %v1946 = vld [vmem:[%s3 + $0x40] sm:$0xff]
        %v1947 = vld [vmem:[%s3 + $0x48] sm:$0xff]
        %v1948 = vld [vmem:[%s3 + $0x50] sm:$0xff]
        %v1949 = vld [vmem:[%s3 + $0x58] sm:$0xff]
        %v1950 = vld [vmem:[%s3 + $0x60] sm:$0xff]
        %v1951 = vld [vmem:[%s3 + $0x68] sm:$0xff]
        %v1952 = vld [vmem:[%s3 + $0x70] sm:$0xff]
        %v1953 = vld [vmem:[%s3 + $0x78] sm:$0xff]
        %v1954 = vld [vmem:[%s3 + $0x80] sm:$0xff]
        %v1955 = vld [vmem:[%s3 + $0x88] sm:$0xff]
        %v1956 = vld [vmem:[%s3 + $0x90] sm:$0xff]
        %v1957 = vld [vmem:[%s3 + $0x98] sm:$0xff]
        %v1958 = vld [vmem:[%s3 + $0xa0] sm:$0xff]
        %v1959 = vld [vmem:[%s3 + $0xa8] sm:$0xff]
        %v1960 = vld [vmem:[%s3 + $0xb0] sm:$0xff]
        %v1961 = vld [vmem:[%s3 + $0xb8] sm:$0xff]
        %v1962 = vld [vmem:[#allocation4] sm:$0xff]
        %v1963 = vld [vmem:[#allocation4 + $0x8] sm:$0xff]
        %v1964 = vld [vmem:[#allocation4 + $0x10] sm:$0xff]
        %v1965 = vld [vmem:[#allocation4 + $0x18] sm:$0xff]
        %v1966 = vld [vmem:[#allocation4 + $0x20] sm:$0xff]
        %v1967 = vld [vmem:[#allocation4 + $0x28] sm:$0xff]
        %v1968 = vld [vmem:[#allocation4 + $0x30] sm:$0xff]
        %v1969 = vld [vmem:[#allocation4 + $0x38] sm:$0xff]
        %v1970 = vld [vmem:[#allocation4 + $0x40] sm:$0xff]
        %v1971 = vld [vmem:[#allocation4 + $0x48] sm:$0xff]
        %v1972 = vld [vmem:[#allocation4 + $0x50] sm:$0xff]
        %v1973 = vld [vmem:[#allocation4 + $0x58] sm:$0xff]
        %v1974 = vld [vmem:[#allocation4 + $0x60] sm:$0xff]
        %v1975 = vld [vmem:[#allocation4 + $0x68] sm:$0xff]
        %v1976 = vld [vmem:[#allocation4 + $0x70] sm:$0xff]
        %v1977 = vld [vmem:[#allocation4 + $0x78] sm:$0xff]
        %v1978 = vld [vmem:[#allocation4 + $0x80] sm:$0xff]
        %v1979 = vld [vmem:[#allocation4 + $0x88] sm:$0xff]
        %v1980 = vld [vmem:[#allocation4 + $0x90] sm:$0xff]
        %v1981 = vld [vmem:[#allocation4 + $0x98] sm:$0xff]
        %v1982 = vld [vmem:[#allocation4 + $0xa0] sm:$0xff]
        %v1983 = vld [vmem:[#allocation4 + $0xa8] sm:$0xff]
        %v1984 = vld [vmem:[#allocation4 + $0xb0] sm:$0xff]
        %v1985 = vld [vmem:[#allocation4 + $0xb8] sm:$0xff]
        %v1986 = vld [vmem:[#allocation4 + $0xc0] sm:$0xff]
        %v1987 = vld [vmem:[#allocation4 + $0xc8] sm:$0xff]
        %v1988 = vld [vmem:[#allocation4 + $0xd0] sm:$0xff]
        %v1989 = vld [vmem:[#allocation4 + $0xd8] sm:$0xff]
        %v1990 = vld [vmem:[#allocation4 + $0xe0] sm:$0xff]
        %v1991 = vld [vmem:[#allocation4 + $0xe8] sm:$0xff]
        %v1992 = vld [vmem:[#allocation4 + $0xf0] sm:$0xff]
        %v1993 = vld [vmem:[#allocation4 + $0xf8] sm:$0xff]
        %v1994 = vld [vmem:[#allocation4 + $0x100] sm:$0xff]
        %v1995 = vld [vmem:[#allocation4 + $0x108] sm:$0xff]
        %v1996 = vld [vmem:[#allocation4 + $0x110] sm:$0xff]
        %v1997 = vld [vmem:[#allocation4 + $0x118] sm:$0xff]
        %v1998 = vld [vmem:[#allocation4 + $0x120] sm:$0xff]
        %v1999 = vld [vmem:[#allocation4 + $0x128] sm:$0xff]
        %v2000 = vld [vmem:[#allocation4 + $0x130] sm:$0xff]
        %v2001 = vld [vmem:[#allocation4 + $0x138] sm:$0xff]
        %v2002 = vld [vmem:[#allocation4 + $0x140] sm:$0xff]
        %v2003 = vld [vmem:[#allocation4 + $0x148] sm:$0xff]
        %v2004 = vld [vmem:[#allocation4 + $0x150] sm:$0xff]
        %v2005 = vld [vmem:[#allocation4 + $0x158] sm:$0xff]
        %v2006 = vld [vmem:[#allocation4 + $0x160] sm:$0xff]
        %v2007 = vld [vmem:[#allocation4 + $0x168] sm:$0xff]
        %v2008 = vld [vmem:[#allocation4 + $0x170] sm:$0xff]
        %v2009 = vld [vmem:[#allocation4 + $0x178] sm:$0xff]
        %v2010 = vld [vmem:[#allocation4 + $0x180] sm:$0xff]
        %v2011 = vld [vmem:[#allocation4 + $0x188] sm:$0xff]
        %v2012 = vld [vmem:[#allocation4 + $0x190] sm:$0xff]
        %v2013 = vld [vmem:[#allocation4 + $0x198] sm:$0xff]
        %v2014 = vld [vmem:[#allocation4 + $0x1a0] sm:$0xff]
        %v2015 = vld [vmem:[#allocation4 + $0x1a8] sm:$0xff]
        %v2016 = vld [vmem:[#allocation4 + $0x1b0] sm:$0xff]
        %v2017 = vld [vmem:[#allocation4 + $0x1b8] sm:$0xff]
        %v2018 = vld [vmem:[#allocation4 + $0x1c0] sm:$0xff]
        %v2019 = vld [vmem:[#allocation4 + $0x1c8] sm:$0xff]
        %v2020 = vld [vmem:[#allocation4 + $0x1d0] sm:$0xff]
        %v2021 = vld [vmem:[#allocation4 + $0x1d8] sm:$0xff]
        %v2022 = vld [vmem:[#allocation4 + $0x1e0] sm:$0xff]
        %v2023 = vld [vmem:[#allocation4 + $0x1e8] sm:$0xff]
        %v2024 = vld [vmem:[#allocation4 + $0x1f0] sm:$0xff]
        %v2025 = vld [vmem:[#allocation4 + $0x1f8] sm:$0xff]
        %v2026 = vld [vmem:[#allocation4 + $0x200] sm:$0xff]
        %v2027 = vld [vmem:[#allocation4 + $0x208] sm:$0xff]
        %v2028 = vld [vmem:[#allocation4 + $0x210] sm:$0xff]
        %v2029 = vld [vmem:[#allocation4 + $0x218] sm:$0xff]
        %v2030 = vld [vmem:[#allocation4 + $0x220] sm:$0xff]
        %v2031 = vld [vmem:[#allocation4 + $0x228] sm:$0xff]
        %v2032 = vld [vmem:[#allocation4 + $0x230] sm:$0xff]
        %v2033 = vld [vmem:[#allocation4 + $0x238] sm:$0xff]
        %v2035 = vsel %vm1072, %v1940, 0
        %v2038 = vsel %vm1072, %v1943, 0
        %v2041 = vsel %vm1072, %v1946, 0
        %v2044 = vsel %vm1072, %v1949, 0
        %v2047 = vsel %vm1072, %v1952, 0
        %v2050 = vsel %vm1072, %v1955, 0
        %v2053 = vsel %vm1072, %v1958, 0
        %v2056 = vsel %vm1072, %v1961, 0
        %2058 = vmatpush.msra.mxu0 %v1992
        %2059 = vmatpush.msra.mxu0 %v1990
        %2060 = vmatpush.msra.mxu0 %v1988
        %2061 = vmatpush.msra.mxu0 %v1986
        %2062 = vmatpush.msra.mxu0 %v1984
        %2063 = vmatpush.msra.mxu0 %v1982
        %2064 = vmatpush.msra.mxu0 %v1980
        %2065 = vmatpush.msra.mxu0 %v1978
        %2066 = vmatpush.msra.mxu0 %v1976
        %2067 = vmatpush.msra.mxu0 %v1974
        %2068 = vmatpush.msra.mxu0 %v1972
        %2069 = vmatpush.msra.mxu0 %v1970
        %2070 = vmatpush.msra.mxu0 %v1968
        %2071 = vmatpush.msra.mxu0 %v1966
        %2072 = vmatpush.msra.mxu0 %v1964
        %2073 = vmatpush.msra.mxu0 %v1962
        %2074 = vmatmul.f32.gmra.mxu0 %v1938
        %v2075 = vpop.f32.mrf.mxu0
        %v2076 = vadd.f32 0.0, %v2075
        %2077 = vmatmul.f32.gmra.mxu0 %v1941
        %v2078 = vpop.f32.mrf.mxu0
        %v2079 = vadd.f32 0.0, %v2078
        %2080 = vmatmul.f32.gmra.mxu0 %v1944
        %v2081 = vpop.f32.mrf.mxu0
        %v2082 = vadd.f32 0.0, %v2081
        %2083 = vmatmul.f32.gmra.mxu0 %v1947
        %v2084 = vpop.f32.mrf.mxu0
        %v2085 = vadd.f32 0.0, %v2084
        %2086 = vmatmul.f32.gmra.mxu0 %v1950
        %v2087 = vpop.f32.mrf.mxu0
        %v2088 = vadd.f32 0.0, %v2087
        %2089 = vmatmul.f32.gmra.mxu0 %v1953
        %v2090 = vpop.f32.mrf.mxu0
        %v2091 = vadd.f32 0.0, %v2090
        %2092 = vmatmul.f32.gmra.mxu0 %v1956
        %v2093 = vpop.f32.mrf.mxu0
        %v2094 = vadd.f32 0.0, %v2093
        %2095 = vmatmul.f32.gmra.mxu0 %v1959
        %v2096 = vpop.f32.mrf.mxu0
        %v2097 = vadd.f32 0.0, %v2096
        %2098 = vdwg.mxu0
        %2099 = vmatpush.msra.mxu0 %v2024
        %2100 = vmatpush.msra.mxu0 %v2022
        %2101 = vmatpush.msra.mxu0 %v2020
        %2102 = vmatpush.msra.mxu0 %v2018
        %2103 = vmatpush.msra.mxu0 %v2016
        %2104 = vmatpush.msra.mxu0 %v2014
        %2105 = vmatpush.msra.mxu0 %v2012
        %2106 = vmatpush.msra.mxu0 %v2010
        %2107 = vmatpush.msra.mxu0 %v2008
        %2108 = vmatpush.msra.mxu0 %v2006
        %2109 = vmatpush.msra.mxu0 %v2004
        %2110 = vmatpush.msra.mxu0 %v2002
        %2111 = vmatpush.msra.mxu0 %v2000
        %2112 = vmatpush.msra.mxu0 %v1998
        %2113 = vmatpush.msra.mxu0 %v1996
        %2114 = vmatpush.msra.mxu0 %v1994
        %2115 = vmatmul.f32.gmra.mxu0 %v1939
        %v2116 = vpop.f32.mrf.mxu0
        %v2117 = vadd.f32 %v2076, %v2116
        %2118 = vmatmul.f32.gmra.mxu0 %v1942
        %v2119 = vpop.f32.mrf.mxu0
        %v2120 = vadd.f32 %v2079, %v2119
        %2121 = vmatmul.f32.gmra.mxu0 %v1945
        %v2122 = vpop.f32.mrf.mxu0
        %v2123 = vadd.f32 %v2082, %v2122
        %2124 = vmatmul.f32.gmra.mxu0 %v1948
        %v2125 = vpop.f32.mrf.mxu0
        %v2126 = vadd.f32 %v2085, %v2125
        %2127 = vmatmul.f32.gmra.mxu0 %v1951
        %v2128 = vpop.f32.mrf.mxu0
        %v2129 = vadd.f32 %v2088, %v2128
        %2130 = vmatmul.f32.gmra.mxu0 %v1954
        %v2131 = vpop.f32.mrf.mxu0
        %v2132 = vadd.f32 %v2091, %v2131
        %2133 = vmatmul.f32.gmra.mxu0 %v1957
        %v2134 = vpop.f32.mrf.mxu0
        %v2135 = vadd.f32 %v2094, %v2134
        %2136 = vmatmul.f32.gmra.mxu0 %v1960
        %v2137 = vpop.f32.mrf.mxu0
        %v2138 = vadd.f32 %v2097, %v2137
        %2139 = vdwg.mxu0
        %2140 = vmatpush.msra.mxu0 0.0
        %2141 = vmatpush.msra.mxu0 0.0
        %2142 = vmatpush.msra.mxu0 0.0
        %2143 = vmatpush.msra.mxu0 0.0
        %2144 = vmatpush.msra.mxu0 0.0
        %2145 = vmatpush.msra.mxu0 0.0
        %2146 = vmatpush.msra.mxu0 0.0
        %2147 = vmatpush.msra.mxu0 0.0
        %2148 = vmatpush.msra.mxu0 0.0
        %2149 = vmatpush.msra.mxu0 0.0
        %2150 = vmatpush.msra.mxu0 0.0
        %2151 = vmatpush.msra.mxu0 0.0
        %2152 = vmatpush.msra.mxu0 %v2032
        %2153 = vmatpush.msra.mxu0 %v2030
        %2154 = vmatpush.msra.mxu0 %v2028
        %2155 = vmatpush.msra.mxu0 %v2026
        %2156 = vmatmul.f32.gmra.mxu0 %v2035
        %v2157 = vpop.f32.mrf.mxu0
        %v2158 = vadd.f32 %v2117, %v2157
        %2159 = vmatmul.f32.gmra.mxu0 %v2038
        %v2160 = vpop.f32.mrf.mxu0
        %v2161 = vadd.f32 %v2120, %v2160
        %2162 = vmatmul.f32.gmra.mxu0 %v2041
        %v2163 = vpop.f32.mrf.mxu0
        %v2164 = vadd.f32 %v2123, %v2163
        %2165 = vmatmul.f32.gmra.mxu0 %v2044
        %v2166 = vpop.f32.mrf.mxu0
        %v2167 = vadd.f32 %v2126, %v2166
        %2168 = vmatmul.f32.gmra.mxu0 %v2047
        %v2169 = vpop.f32.mrf.mxu0
        %v2170 = vadd.f32 %v2129, %v2169
        %2171 = vmatmul.f32.gmra.mxu0 %v2050
        %v2172 = vpop.f32.mrf.mxu0
        %v2173 = vadd.f32 %v2132, %v2172
        %2174 = vmatmul.f32.gmra.mxu0 %v2053
        %v2175 = vpop.f32.mrf.mxu0
        %v2176 = vadd.f32 %v2135, %v2175
        %2177 = vmatmul.f32.gmra.mxu0 %v2056
        %v2178 = vpop.f32.mrf.mxu0
        %v2179 = vadd.f32 %v2138, %v2178
        %2180 = vdwg.mxu0
        %2181 = vmatpush.msra.mxu0 %v1993
        %2182 = vmatpush.msra.mxu0 %v1991
        %2183 = vmatpush.msra.mxu0 %v1989
        %2184 = vmatpush.msra.mxu0 %v1987
        %2185 = vmatpush.msra.mxu0 %v1985
        %2186 = vmatpush.msra.mxu0 %v1983
        %2187 = vmatpush.msra.mxu0 %v1981
        %2188 = vmatpush.msra.mxu0 %v1979
        %2189 = vmatpush.msra.mxu0 %v1977
        %2190 = vmatpush.msra.mxu0 %v1975
        %2191 = vmatpush.msra.mxu0 %v1973
        %2192 = vmatpush.msra.mxu0 %v1971
        %2193 = vmatpush.msra.mxu0 %v1969
        %2194 = vmatpush.msra.mxu0 %v1967
        %2195 = vmatpush.msra.mxu0 %v1965
        %2196 = vmatpush.msra.mxu0 %v1963
        %2197 = vmatmul.f32.gmra.mxu0 %v1938
        %v2198 = vpop.f32.mrf.mxu0
        %v2199 = vadd.f32 0.0, %v2198
        %2200 = vmatmul.f32.gmra.mxu0 %v1941
        %v2201 = vpop.f32.mrf.mxu0
        %v2202 = vadd.f32 0.0, %v2201
        %2203 = vmatmul.f32.gmra.mxu0 %v1944
        %v2204 = vpop.f32.mrf.mxu0
        %v2205 = vadd.f32 0.0, %v2204
        %2206 = vmatmul.f32.gmra.mxu0 %v1947
        %v2207 = vpop.f32.mrf.mxu0
        %v2208 = vadd.f32 0.0, %v2207
        %2209 = vmatmul.f32.gmra.mxu0 %v1950
        %v2210 = vpop.f32.mrf.mxu0
        %v2211 = vadd.f32 0.0, %v2210
        %2212 = vmatmul.f32.gmra.mxu0 %v1953
        %v2213 = vpop.f32.mrf.mxu0
        %v2214 = vadd.f32 0.0, %v2213
        %2215 = vmatmul.f32.gmra.mxu0 %v1956
        %v2216 = vpop.f32.mrf.mxu0
        %v2217 = vadd.f32 0.0, %v2216
        %2218 = vmatmul.f32.gmra.mxu0 %v1959
        %v2219 = vpop.f32.mrf.mxu0
        %v2220 = vadd.f32 0.0, %v2219
        %2221 = vdwg.mxu0
        %2222 = vmatpush.msra.mxu0 %v2025
        %2223 = vmatpush.msra.mxu0 %v2023
        %2224 = vmatpush.msra.mxu0 %v2021
        %2225 = vmatpush.msra.mxu0 %v2019
        %2226 = vmatpush.msra.mxu0 %v2017
        %2227 = vmatpush.msra.mxu0 %v2015
        %2228 = vmatpush.msra.mxu0 %v2013
        %2229 = vmatpush.msra.mxu0 %v2011
        %2230 = vmatpush.msra.mxu0 %v2009
        %2231 = vmatpush.msra.mxu0 %v2007
        %2232 = vmatpush.msra.mxu0 %v2005
        %2233 = vmatpush.msra.mxu0 %v2003
        %2234 = vmatpush.msra.mxu0 %v2001
        %2235 = vmatpush.msra.mxu0 %v1999
        %2236 = vmatpush.msra.mxu0 %v1997
        %2237 = vmatpush.msra.mxu0 %v1995
        %2238 = vmatmul.f32.gmra.mxu0 %v1939
        %v2239 = vpop.f32.mrf.mxu0
        %v2240 = vadd.f32 %v2199, %v2239
        %2241 = vmatmul.f32.gmra.mxu0 %v1942
        %v2242 = vpop.f32.mrf.mxu0
        %v2243 = vadd.f32 %v2202, %v2242
        %2244 = vmatmul.f32.gmra.mxu0 %v1945
        %v2245 = vpop.f32.mrf.mxu0
        %v2246 = vadd.f32 %v2205, %v2245
        %2247 = vmatmul.f32.gmra.mxu0 %v1948
        %v2248 = vpop.f32.mrf.mxu0
        %v2249 = vadd.f32 %v2208, %v2248
        %2250 = vmatmul.f32.gmra.mxu0 %v1951
        %v2251 = vpop.f32.mrf.mxu0
        %v2252 = vadd.f32 %v2211, %v2251
        %2253 = vmatmul.f32.gmra.mxu0 %v1954
        %v2254 = vpop.f32.mrf.mxu0
        %v2255 = vadd.f32 %v2214, %v2254
        %2256 = vmatmul.f32.gmra.mxu0 %v1957
        %v2257 = vpop.f32.mrf.mxu0
        %v2258 = vadd.f32 %v2217, %v2257
        %2259 = vmatmul.f32.gmra.mxu0 %v1960
        %v2260 = vpop.f32.mrf.mxu0
        %v2261 = vadd.f32 %v2220, %v2260
        %2262 = vdwg.mxu0
        %2263 = vmatpush.msra.mxu0 0.0
        %2264 = vmatpush.msra.mxu0 0.0
        %2265 = vmatpush.msra.mxu0 0.0
        %2266 = vmatpush.msra.mxu0 0.0
        %2267 = vmatpush.msra.mxu0 0.0
        %2268 = vmatpush.msra.mxu0 0.0
        %2269 = vmatpush.msra.mxu0 0.0
        %2270 = vmatpush.msra.mxu0 0.0
        %2271 = vmatpush.msra.mxu0 0.0
        %2272 = vmatpush.msra.mxu0 0.0
        %2273 = vmatpush.msra.mxu0 0.0
        %2274 = vmatpush.msra.mxu0 0.0
        %2275 = vmatpush.msra.mxu0 %v2033
        %2276 = vmatpush.msra.mxu0 %v2031
        %2277 = vmatpush.msra.mxu0 %v2029
        %2278 = vmatpush.msra.mxu0 %v2027
        %2279 = vmatmul.f32.gmra.mxu0 %v2035
        %v2280 = vpop.f32.mrf.mxu0
        %v2281 = vadd.f32 %v2240, %v2280
        %2282 = vmatmul.f32.gmra.mxu0 %v2038
        %v2283 = vpop.f32.mrf.mxu0
        %v2284 = vadd.f32 %v2243, %v2283
        %2285 = vmatmul.f32.gmra.mxu0 %v2041
        %v2286 = vpop.f32.mrf.mxu0
        %v2287 = vadd.f32 %v2246, %v2286
        %2288 = vmatmul.f32.gmra.mxu0 %v2044
        %v2289 = vpop.f32.mrf.mxu0
        %v2290 = vadd.f32 %v2249, %v2289
        %2291 = vmatmul.f32.gmra.mxu0 %v2047
        %v2292 = vpop.f32.mrf.mxu0
        %v2293 = vadd.f32 %v2252, %v2292
        %2294 = vmatmul.f32.gmra.mxu0 %v2050
        %v2295 = vpop.f32.mrf.mxu0
        %v2296 = vadd.f32 %v2255, %v2295
        %2297 = vmatmul.f32.gmra.mxu0 %v2053
        %v2298 = vpop.f32.mrf.mxu0
        %v2299 = vadd.f32 %v2258, %v2298
        %2300 = vmatmul.f32.gmra.mxu0 %v2056
        %v2301 = vpop.f32.mrf.mxu0
        %v2302 = vadd.f32 %v2261, %v2301
        %2303 = vdwg.mxu0
        %v2304 = vmax.f32 %v2158, %v2164
        %v2305 = vmax.f32 %v2281, %v2287
        %v2306 = vmax.f32 %v2161, %v2167
        %v2307 = vmax.f32 %v2284, %v2290
        %v2308 = vmax.f32 %v2170, %v2176
        %v2309 = vmax.f32 %v2293, %v2299
        %v2310 = vmax.f32 %v2173, %v2179
        %v2311 = vmax.f32 %v2296, %v2302
        %v2312 = vmax.f32 %v2304, %v2308
        %v2313 = vmax.f32 %v2305, %v2309
        %v2314 = vmax.f32 %v2306, %v2310
        %v2315 = vmax.f32 %v2307, %v2311
        %v2316 = vld [vmem:[%s4] sm:$0xff]
        %v2317 = vld [vmem:[%s4 + $0x8] sm:$0xff]
        %2319 = vset.pattern.permute.xlu0 0
        %2320 = vperm.xlu0 %2319, %v2316
        %v2321 = vpop.permute.xlu0 %2320
        %2324 = vset.pattern.permute.xlu0 0
        %2325 = vperm.xlu0 %2324, %v2317
        %v2326 = vpop.permute.xlu0 %2325
        %v2328 = vadd.f32 %v2312, %v2321
        %v2329 = vadd.f32 %v2313, %v2321
        %v2330 = vadd.f32 %v2314, %v2326
        %v2331 = vadd.f32 %v2315, %v2326
        %v2332 = vmax.f32 %v2328, 0.0
        %v2333 = vmax.f32 %v2329, 0.0
        %v2334 = vmax.f32 %v2330, 0.0
        %v2335 = vmax.f32 %v2331, 0.0
        %2336 = vst [vmem:[#allocation5] sm:$0xff] %v2332
        %2337 = vst [vmem:[#allocation5 + $0x8] sm:$0xff] %v2333
        %2338 = vst [vmem:[#allocation5 + $0x10] sm:$0xff] %v2334
        %2339 = vst [vmem:[#allocation5 + $0x18] sm:$0xff] %v2335
        %v2340 = vld [vmem:[#allocation5] ss:$8 sm:$0x3]
        %v2341 = vld [vmem:[%s5] sm:$0xff]
        %v2342 = vld [vmem:[%s5 + $0x8] sm:$0xff]
        %v2343 = vld [vmem:[%s5 + $0x10] sm:$0xff]
        %v2344 = vld [vmem:[%s5 + $0x18] sm:$0xff]
        %v2345 = vld [vmem:[%s5 + $0x20] sm:$0xff]
        %v2346 = vld [vmem:[%s5 + $0x28] sm:$0xff]
        %v2347 = vld [vmem:[%s5 + $0x30] sm:$0xff]
        %v2348 = vld [vmem:[%s5 + $0x38] sm:$0xff]
        %v2349 = vld [vmem:[%s5 + $0x40] sm:$0xff]
        %v2350 = vld [vmem:[%s5 + $0x48] sm:$0xff]
        %v2351 = vld [vmem:[%s5 + $0x50] sm:$0xff]
        %v2352 = vld [vmem:[%s5 + $0x58] sm:$0xff]
        %v2353 = vld [vmem:[%s5 + $0x60] sm:$0xff]
        %v2354 = vld [vmem:[%s5 + $0x68] sm:$0xff]
        %v2355 = vld [vmem:[%s5 + $0x70] sm:$0xff]
        %v2356 = vld [vmem:[%s5 + $0x78] sm:$0xff]
        %v2357 = vld [vmem:[%s5 + $0x80] sm:$0xff]
        %v2358 = vld [vmem:[%s5 + $0x88] sm:$0xff]
        %v2359 = vld [vmem:[%s5 + $0x90] sm:$0xff]
        %v2360 = vld [vmem:[%s5 + $0x98] sm:$0xff]
        %v2361 = vld [vmem:[%s5 + $0xa0] sm:$0xff]
        %v2362 = vld [vmem:[%s5 + $0xa8] sm:$0xff]
        %v2363 = vld [vmem:[%s5 + $0xb0] sm:$0xff]
        %v2364 = vld [vmem:[%s5 + $0xb8] sm:$0xff]
        %v2365 = vld [vmem:[%s5 + $0xc0] sm:$0xff]
        %v2366 = vld [vmem:[%s5 + $0xc8] sm:$0xff]
        %v2367 = vld [vmem:[%s5 + $0xd0] sm:$0xff]
        %v2368 = vld [vmem:[%s5 + $0xd8] sm:$0xff]
        %v2369 = vld [vmem:[%s5 + $0xe0] sm:$0xff]
        %v2370 = vld [vmem:[%s5 + $0xe8] sm:$0xff]
        %v2371 = vld [vmem:[%s5 + $0xf0] sm:$0xff]
        %v2372 = vld [vmem:[%s5 + $0xf8] sm:$0xff]
        %s2373 = scalar_lea.vmem [#allocation5], 1
        %v2374 = vld [vmem:[%s2373] ss:$8 sm:$0x3]
        %s2375 = scalar_lea.vmem %s5, 256
        %v2376 = vld [vmem:[%s2375] sm:$0xff]
        %v2377 = vld [vmem:[%s2375 + $0x8] sm:$0xff]
        %v2378 = vld [vmem:[%s2375 + $0x10] sm:$0xff]
        %v2379 = vld [vmem:[%s2375 + $0x18] sm:$0xff]
        %v2380 = vld [vmem:[%s2375 + $0x20] sm:$0xff]
        %v2381 = vld [vmem:[%s2375 + $0x28] sm:$0xff]
        %v2382 = vld [vmem:[%s2375 + $0x30] sm:$0xff]
        %v2383 = vld [vmem:[%s2375 + $0x38] sm:$0xff]
        %v2384 = vld [vmem:[%s2375 + $0x40] sm:$0xff]
        %v2385 = vld [vmem:[%s2375 + $0x48] sm:$0xff]
        %v2386 = vld [vmem:[%s2375 + $0x50] sm:$0xff]
        %v2387 = vld [vmem:[%s2375 + $0x58] sm:$0xff]
        %v2388 = vld [vmem:[%s2375 + $0x60] sm:$0xff]
        %v2389 = vld [vmem:[%s2375 + $0x68] sm:$0xff]
        %v2390 = vld [vmem:[%s2375 + $0x70] sm:$0xff]
        %v2391 = vld [vmem:[%s2375 + $0x78] sm:$0xff]
        %v2392 = vld [vmem:[%s2375 + $0x80] sm:$0xff]
        %v2393 = vld [vmem:[%s2375 + $0x88] sm:$0xff]
        %v2394 = vld [vmem:[%s2375 + $0x90] sm:$0xff]
        %v2395 = vld [vmem:[%s2375 + $0x98] sm:$0xff]
        %v2396 = vld [vmem:[%s2375 + $0xa0] sm:$0xff]
        %v2397 = vld [vmem:[%s2375 + $0xa8] sm:$0xff]
        %v2398 = vld [vmem:[%s2375 + $0xb0] sm:$0xff]
        %v2399 = vld [vmem:[%s2375 + $0xb8] sm:$0xff]
        %v2400 = vld [vmem:[%s2375 + $0xc0] sm:$0xff]
        %v2401 = vld [vmem:[%s2375 + $0xc8] sm:$0xff]
        %v2402 = vld [vmem:[%s2375 + $0xd0] sm:$0xff]
        %v2403 = vld [vmem:[%s2375 + $0xd8] sm:$0xff]
        %v2404 = vld [vmem:[%s2375 + $0xe0] sm:$0xff]
        %v2405 = vld [vmem:[%s2375 + $0xe8] sm:$0xff]
        %v2406 = vld [vmem:[%s2375 + $0xf0] sm:$0xff]
        %v2407 = vld [vmem:[%s2375 + $0xf8] sm:$0xff]
        %v2409 = vperm.slane %v2374, 0
        %v2410 = vperm.slane %v2374, 1
        %2413 = vmatpush.msra.mxu0 %v2391
        %2414 = vmatpush.msra.mxu0 %v2390
        %2415 = vmatpush.msra.mxu0 %v2389
        %2416 = vmatpush.msra.mxu0 %v2388
        %2417 = vmatpush.msra.mxu0 %v2387
        %2418 = vmatpush.msra.mxu0 %v2386
        %2419 = vmatpush.msra.mxu0 %v2385
        %2420 = vmatpush.msra.mxu0 %v2384
        %2421 = vmatpush.msra.mxu0 %v2383
        %2422 = vmatpush.msra.mxu0 %v2382
        %2423 = vmatpush.msra.mxu0 %v2381
        %2424 = vmatpush.msra.mxu0 %v2380
        %2425 = vmatpush.msra.mxu0 %v2379
        %2426 = vmatpush.msra.mxu0 %v2378
        %2427 = vmatpush.msra.mxu0 %v2377
        %2428 = vmatpush.msra.mxu0 %v2376
        %2429 = vmatmul.f32.gmra.mxu0 %v2409
        %v2430 = vpop.f32.mrf.mxu0
        %v2431 = vadd.f32 0.0, %v2430
        %2432 = vdwg.mxu0
        %2433 = vmatpush.msra.mxu0 %v2407
        %2434 = vmatpush.msra.mxu0 %v2406
        %2435 = vmatpush.msra.mxu0 %v2405
        %2436 = vmatpush.msra.mxu0 %v2404
        %2437 = vmatpush.msra.mxu0 %v2403
        %2438 = vmatpush.msra.mxu0 %v2402
        %2439 = vmatpush.msra.mxu0 %v2401
        %2440 = vmatpush.msra.mxu0 %v2400
        %2441 = vmatpush.msra.mxu0 %v2399
        %2442 = vmatpush.msra.mxu0 %v2398
        %2443 = vmatpush.msra.mxu0 %v2397
        %2444 = vmatpush.msra.mxu0 %v2396
        %2445 = vmatpush.msra.mxu0 %v2395
        %2446 = vmatpush.msra.mxu0 %v2394
        %2447 = vmatpush.msra.mxu0 %v2393
        %2448 = vmatpush.msra.mxu0 %v2392
        %2449 = vmatmul.f32.gmra.mxu0 %v2410
        %v2450 = vpop.f32.mrf.mxu0
        %v2451 = vadd.f32 %v2431, %v2450
        %2452 = vdwg.mxu0
        %v2454 = vperm.slane %v2340, 0
        %v2455 = vperm.slane %v2340, 1
        %2458 = vmatpush.msra.mxu0 %v2356
        %2459 = vmatpush.msra.mxu0 %v2355
        %2460 = vmatpush.msra.mxu0 %v2354
        %2461 = vmatpush.msra.mxu0 %v2353
        %2462 = vmatpush.msra.mxu0 %v2352
        %2463 = vmatpush.msra.mxu0 %v2351
        %2464 = vmatpush.msra.mxu0 %v2350
        %2465 = vmatpush.msra.mxu0 %v2349
        %2466 = vmatpush.msra.mxu0 %v2348
        %2467 = vmatpush.msra.mxu0 %v2347
        %2468 = vmatpush.msra.mxu0 %v2346
        %2469 = vmatpush.msra.mxu0 %v2345
        %2470 = vmatpush.msra.mxu0 %v2344
        %2471 = vmatpush.msra.mxu0 %v2343
        %2472 = vmatpush.msra.mxu0 %v2342
        %2473 = vmatpush.msra.mxu0 %v2341
        %2474 = vmatmul.f32.gmra.mxu0 %v2454
        %v2475 = vpop.f32.mrf.mxu0
        %v2476 = vadd.f32 %v2451, %v2475
        %2477 = vdwg.mxu0
        %2478 = vmatpush.msra.mxu0 %v2372
        %2479 = vmatpush.msra.mxu0 %v2371
        %2480 = vmatpush.msra.mxu0 %v2370
        %2481 = vmatpush.msra.mxu0 %v2369
        %2482 = vmatpush.msra.mxu0 %v2368
        %2483 = vmatpush.msra.mxu0 %v2367
        %2484 = vmatpush.msra.mxu0 %v2366
        %2485 = vmatpush.msra.mxu0 %v2365
        %2486 = vmatpush.msra.mxu0 %v2364
        %2487 = vmatpush.msra.mxu0 %v2363
        %2488 = vmatpush.msra.mxu0 %v2362
        %2489 = vmatpush.msra.mxu0 %v2361
        %2490 = vmatpush.msra.mxu0 %v2360
        %2491 = vmatpush.msra.mxu0 %v2359
        %2492 = vmatpush.msra.mxu0 %v2358
        %2493 = vmatpush.msra.mxu0 %v2357
        %2494 = vmatmul.f32.gmra.mxu0 %v2455
        %v2495 = vpop.f32.mrf.mxu0
        %v2496 = vadd.f32 %v2476, %v2495
        %2497 = vdwg.mxu0
        %s2498 = scalar_lea.vmem [#allocation5], 2
        %v2499 = vld [vmem:[%s2498] ss:$8 sm:$0x3]
        %s2500 = scalar_lea.vmem %s5, 512
        %v2501 = vld [vmem:[%s2500] sm:$0xff]
        %v2502 = vld [vmem:[%s2500 + $0x8] sm:$0xff]
        %v2503 = vld [vmem:[%s2500 + $0x10] sm:$0xff]
        %v2504 = vld [vmem:[%s2500 + $0x18] sm:$0xff]
        %v2505 = vld [vmem:[%s2500 + $0x20] sm:$0xff]
        %v2506 = vld [vmem:[%s2500 + $0x28] sm:$0xff]
        %v2507 = vld [vmem:[%s2500 + $0x30] sm:$0xff]
        %v2508 = vld [vmem:[%s2500 + $0x38] sm:$0xff]
        %v2509 = vld [vmem:[%s2500 + $0x40] sm:$0xff]
        %v2510 = vld [vmem:[%s2500 + $0x48] sm:$0xff]
        %v2511 = vld [vmem:[%s2500 + $0x50] sm:$0xff]
        %v2512 = vld [vmem:[%s2500 + $0x58] sm:$0xff]
        %v2513 = vld [vmem:[%s2500 + $0x60] sm:$0xff]
        %v2514 = vld [vmem:[%s2500 + $0x68] sm:$0xff]
        %v2515 = vld [vmem:[%s2500 + $0x70] sm:$0xff]
        %v2516 = vld [vmem:[%s2500 + $0x78] sm:$0xff]
        %v2517 = vld [vmem:[%s2500 + $0x80] sm:$0xff]
        %v2518 = vld [vmem:[%s2500 + $0x88] sm:$0xff]
        %v2519 = vld [vmem:[%s2500 + $0x90] sm:$0xff]
        %v2520 = vld [vmem:[%s2500 + $0x98] sm:$0xff]
        %v2521 = vld [vmem:[%s2500 + $0xa0] sm:$0xff]
        %v2522 = vld [vmem:[%s2500 + $0xa8] sm:$0xff]
        %v2523 = vld [vmem:[%s2500 + $0xb0] sm:$0xff]
        %v2524 = vld [vmem:[%s2500 + $0xb8] sm:$0xff]
        %v2525 = vld [vmem:[%s2500 + $0xc0] sm:$0xff]
        %v2526 = vld [vmem:[%s2500 + $0xc8] sm:$0xff]
        %v2527 = vld [vmem:[%s2500 + $0xd0] sm:$0xff]
        %v2528 = vld [vmem:[%s2500 + $0xd8] sm:$0xff]
        %v2529 = vld [vmem:[%s2500 + $0xe0] sm:$0xff]
        %v2530 = vld [vmem:[%s2500 + $0xe8] sm:$0xff]
        %v2531 = vld [vmem:[%s2500 + $0xf0] sm:$0xff]
        %v2532 = vld [vmem:[%s2500 + $0xf8] sm:$0xff]
        %v2534 = vperm.slane %v2499, 0
        %v2535 = vperm.slane %v2499, 1
        %2538 = vmatpush.msra.mxu0 %v2516
        %2539 = vmatpush.msra.mxu0 %v2515
        %2540 = vmatpush.msra.mxu0 %v2514
        %2541 = vmatpush.msra.mxu0 %v2513
        %2542 = vmatpush.msra.mxu0 %v2512
        %2543 = vmatpush.msra.mxu0 %v2511
        %2544 = vmatpush.msra.mxu0 %v2510
        %2545 = vmatpush.msra.mxu0 %v2509
        %2546 = vmatpush.msra.mxu0 %v2508
        %2547 = vmatpush.msra.mxu0 %v2507
        %2548 = vmatpush.msra.mxu0 %v2506
        %2549 = vmatpush.msra.mxu0 %v2505
        %2550 = vmatpush.msra.mxu0 %v2504
        %2551 = vmatpush.msra.mxu0 %v2503
        %2552 = vmatpush.msra.mxu0 %v2502
        %2553 = vmatpush.msra.mxu0 %v2501
        %2554 = vmatmul.f32.gmra.mxu0 %v2534
        %v2555 = vpop.f32.mrf.mxu0
        %v2556 = vadd.f32 0.0, %v2555
        %2557 = vdwg.mxu0
        %2558 = vmatpush.msra.mxu0 %v2532
        %2559 = vmatpush.msra.mxu0 %v2531
        %2560 = vmatpush.msra.mxu0 %v2530
        %2561 = vmatpush.msra.mxu0 %v2529
        %2562 = vmatpush.msra.mxu0 %v2528
        %2563 = vmatpush.msra.mxu0 %v2527
        %2564 = vmatpush.msra.mxu0 %v2526
        %2565 = vmatpush.msra.mxu0 %v2525
        %2566 = vmatpush.msra.mxu0 %v2524
        %2567 = vmatpush.msra.mxu0 %v2523
        %2568 = vmatpush.msra.mxu0 %v2522
        %2569 = vmatpush.msra.mxu0 %v2521
        %2570 = vmatpush.msra.mxu0 %v2520
        %2571 = vmatpush.msra.mxu0 %v2519
        %2572 = vmatpush.msra.mxu0 %v2518
        %2573 = vmatpush.msra.mxu0 %v2517
        %2574 = vmatmul.f32.gmra.mxu0 %v2535
        %v2575 = vpop.f32.mrf.mxu0
        %v2576 = vadd.f32 %v2556, %v2575
        %2577 = vdwg.mxu0
        %v2578 = vadd.f32 %v2496, %v2576
        %s2579 = scalar_lea.vmem [#allocation5], 3
        %v2580 = vld [vmem:[%s2579] ss:$8 sm:$0x3]
        %s2581 = scalar_lea.vmem %s5, 768
        %v2582 = vld [vmem:[%s2581] sm:$0xff]
        %v2583 = vld [vmem:[%s2581 + $0x8] sm:$0xff]
        %v2584 = vld [vmem:[%s2581 + $0x10] sm:$0xff]
        %v2585 = vld [vmem:[%s2581 + $0x18] sm:$0xff]
        %v2586 = vld [vmem:[%s2581 + $0x20] sm:$0xff]
        %v2587 = vld [vmem:[%s2581 + $0x28] sm:$0xff]
        %v2588 = vld [vmem:[%s2581 + $0x30] sm:$0xff]
        %v2589 = vld [vmem:[%s2581 + $0x38] sm:$0xff]
        %v2590 = vld [vmem:[%s2581 + $0x40] sm:$0xff]
        %v2591 = vld [vmem:[%s2581 + $0x48] sm:$0xff]
        %v2592 = vld [vmem:[%s2581 + $0x50] sm:$0xff]
        %v2593 = vld [vmem:[%s2581 + $0x58] sm:$0xff]
        %v2594 = vld [vmem:[%s2581 + $0x60] sm:$0xff]
        %v2595 = vld [vmem:[%s2581 + $0x68] sm:$0xff]
        %v2596 = vld [vmem:[%s2581 + $0x70] sm:$0xff]
        %v2597 = vld [vmem:[%s2581 + $0x78] sm:$0xff]
        %v2598 = vld [vmem:[%s2581 + $0x80] sm:$0xff]
        %v2599 = vld [vmem:[%s2581 + $0x88] sm:$0xff]
        %v2600 = vld [vmem:[%s2581 + $0x90] sm:$0xff]
        %v2601 = vld [vmem:[%s2581 + $0x98] sm:$0xff]
        %v2602 = vld [vmem:[%s2581 + $0xa0] sm:$0xff]
        %v2603 = vld [vmem:[%s2581 + $0xa8] sm:$0xff]
        %v2604 = vld [vmem:[%s2581 + $0xb0] sm:$0xff]
        %v2605 = vld [vmem:[%s2581 + $0xb8] sm:$0xff]
        %v2606 = vld [vmem:[%s2581 + $0xc0] sm:$0xff]
        %v2607 = vld [vmem:[%s2581 + $0xc8] sm:$0xff]
        %v2608 = vld [vmem:[%s2581 + $0xd0] sm:$0xff]
        %v2609 = vld [vmem:[%s2581 + $0xd8] sm:$0xff]
        %v2610 = vld [vmem:[%s2581 + $0xe0] sm:$0xff]
        %v2611 = vld [vmem:[%s2581 + $0xe8] sm:$0xff]
        %v2612 = vld [vmem:[%s2581 + $0xf0] sm:$0xff]
        %v2613 = vld [vmem:[%s2581 + $0xf8] sm:$0xff]
        %v2615 = vperm.slane %v2580, 0
        %v2616 = vperm.slane %v2580, 1
        %2619 = vmatpush.msra.mxu0 %v2597
        %2620 = vmatpush.msra.mxu0 %v2596
        %2621 = vmatpush.msra.mxu0 %v2595
        %2622 = vmatpush.msra.mxu0 %v2594
        %2623 = vmatpush.msra.mxu0 %v2593
        %2624 = vmatpush.msra.mxu0 %v2592
        %2625 = vmatpush.msra.mxu0 %v2591
        %2626 = vmatpush.msra.mxu0 %v2590
        %2627 = vmatpush.msra.mxu0 %v2589
        %2628 = vmatpush.msra.mxu0 %v2588
        %2629 = vmatpush.msra.mxu0 %v2587
        %2630 = vmatpush.msra.mxu0 %v2586
        %2631 = vmatpush.msra.mxu0 %v2585
        %2632 = vmatpush.msra.mxu0 %v2584
        %2633 = vmatpush.msra.mxu0 %v2583
        %2634 = vmatpush.msra.mxu0 %v2582
        %2635 = vmatmul.f32.gmra.mxu0 %v2615
        %v2636 = vpop.f32.mrf.mxu0
        %v2637 = vadd.f32 0.0, %v2636
        %2638 = vdwg.mxu0
        %2639 = vmatpush.msra.mxu0 %v2613
        %2640 = vmatpush.msra.mxu0 %v2612
        %2641 = vmatpush.msra.mxu0 %v2611
        %2642 = vmatpush.msra.mxu0 %v2610
        %2643 = vmatpush.msra.mxu0 %v2609
        %2644 = vmatpush.msra.mxu0 %v2608
        %2645 = vmatpush.msra.mxu0 %v2607
        %2646 = vmatpush.msra.mxu0 %v2606
        %2647 = vmatpush.msra.mxu0 %v2605
        %2648 = vmatpush.msra.mxu0 %v2604
        %2649 = vmatpush.msra.mxu0 %v2603
        %2650 = vmatpush.msra.mxu0 %v2602
        %2651 = vmatpush.msra.mxu0 %v2601
        %2652 = vmatpush.msra.mxu0 %v2600
        %2653 = vmatpush.msra.mxu0 %v2599
        %2654 = vmatpush.msra.mxu0 %v2598
        %2655 = vmatmul.f32.gmra.mxu0 %v2616
        %v2656 = vpop.f32.mrf.mxu0
        %v2657 = vadd.f32 %v2637, %v2656
        %2658 = vdwg.mxu0
        %v2659 = vadd.f32 %v2578, %v2657
        %s2660 = scalar_lea.vmem [#allocation5], 4
        %v2661 = vld [vmem:[%s2660] ss:$8 sm:$0x3]
        %s2662 = scalar_lea.vmem %s5, 1024
        %v2663 = vld [vmem:[%s2662] sm:$0xff]
        %v2664 = vld [vmem:[%s2662 + $0x8] sm:$0xff]
        %v2665 = vld [vmem:[%s2662 + $0x10] sm:$0xff]
        %v2666 = vld [vmem:[%s2662 + $0x18] sm:$0xff]
        %v2667 = vld [vmem:[%s2662 + $0x20] sm:$0xff]
        %v2668 = vld [vmem:[%s2662 + $0x28] sm:$0xff]
        %v2669 = vld [vmem:[%s2662 + $0x30] sm:$0xff]
        %v2670 = vld [vmem:[%s2662 + $0x38] sm:$0xff]
        %v2671 = vld [vmem:[%s2662 + $0x40] sm:$0xff]
        %v2672 = vld [vmem:[%s2662 + $0x48] sm:$0xff]
        %v2673 = vld [vmem:[%s2662 + $0x50] sm:$0xff]
        %v2674 = vld [vmem:[%s2662 + $0x58] sm:$0xff]
        %v2675 = vld [vmem:[%s2662 + $0x60] sm:$0xff]
        %v2676 = vld [vmem:[%s2662 + $0x68] sm:$0xff]
        %v2677 = vld [vmem:[%s2662 + $0x70] sm:$0xff]
        %v2678 = vld [vmem:[%s2662 + $0x78] sm:$0xff]
        %v2679 = vld [vmem:[%s2662 + $0x80] sm:$0xff]
        %v2680 = vld [vmem:[%s2662 + $0x88] sm:$0xff]
        %v2681 = vld [vmem:[%s2662 + $0x90] sm:$0xff]
        %v2682 = vld [vmem:[%s2662 + $0x98] sm:$0xff]
        %v2683 = vld [vmem:[%s2662 + $0xa0] sm:$0xff]
        %v2684 = vld [vmem:[%s2662 + $0xa8] sm:$0xff]
        %v2685 = vld [vmem:[%s2662 + $0xb0] sm:$0xff]
        %v2686 = vld [vmem:[%s2662 + $0xb8] sm:$0xff]
        %v2687 = vld [vmem:[%s2662 + $0xc0] sm:$0xff]
        %v2688 = vld [vmem:[%s2662 + $0xc8] sm:$0xff]
        %v2689 = vld [vmem:[%s2662 + $0xd0] sm:$0xff]
        %v2690 = vld [vmem:[%s2662 + $0xd8] sm:$0xff]
        %v2691 = vld [vmem:[%s2662 + $0xe0] sm:$0xff]
        %v2692 = vld [vmem:[%s2662 + $0xe8] sm:$0xff]
        %v2693 = vld [vmem:[%s2662 + $0xf0] sm:$0xff]
        %v2694 = vld [vmem:[%s2662 + $0xf8] sm:$0xff]
        %v2696 = vperm.slane %v2661, 0
        %v2697 = vperm.slane %v2661, 1
        %2700 = vmatpush.msra.mxu0 %v2678
        %2701 = vmatpush.msra.mxu0 %v2677
        %2702 = vmatpush.msra.mxu0 %v2676
        %2703 = vmatpush.msra.mxu0 %v2675
        %2704 = vmatpush.msra.mxu0 %v2674
        %2705 = vmatpush.msra.mxu0 %v2673
        %2706 = vmatpush.msra.mxu0 %v2672
        %2707 = vmatpush.msra.mxu0 %v2671
        %2708 = vmatpush.msra.mxu0 %v2670
        %2709 = vmatpush.msra.mxu0 %v2669
        %2710 = vmatpush.msra.mxu0 %v2668
        %2711 = vmatpush.msra.mxu0 %v2667
        %2712 = vmatpush.msra.mxu0 %v2666
        %2713 = vmatpush.msra.mxu0 %v2665
        %2714 = vmatpush.msra.mxu0 %v2664
        %2715 = vmatpush.msra.mxu0 %v2663
        %2716 = vmatmul.f32.gmra.mxu0 %v2696
        %v2717 = vpop.f32.mrf.mxu0
        %v2718 = vadd.f32 0.0, %v2717
        %2719 = vdwg.mxu0
        %2720 = vmatpush.msra.mxu0 %v2694
        %2721 = vmatpush.msra.mxu0 %v2693
        %2722 = vmatpush.msra.mxu0 %v2692
        %2723 = vmatpush.msra.mxu0 %v2691
        %2724 = vmatpush.msra.mxu0 %v2690
        %2725 = vmatpush.msra.mxu0 %v2689
        %2726 = vmatpush.msra.mxu0 %v2688
        %2727 = vmatpush.msra.mxu0 %v2687
        %2728 = vmatpush.msra.mxu0 %v2686
        %2729 = vmatpush.msra.mxu0 %v2685
        %2730 = vmatpush.msra.mxu0 %v2684
        %2731 = vmatpush.msra.mxu0 %v2683
        %2732 = vmatpush.msra.mxu0 %v2682
        %2733 = vmatpush.msra.mxu0 %v2681
        %2734 = vmatpush.msra.mxu0 %v2680
        %2735 = vmatpush.msra.mxu0 %v2679
        %2736 = vmatmul.f32.gmra.mxu0 %v2697
        %v2737 = vpop.f32.mrf.mxu0
        %v2738 = vadd.f32 %v2718, %v2737
        %2739 = vdwg.mxu0
        %v2740 = vadd.f32 %v2659, %v2738
        %s2741 = scalar_lea.vmem [#allocation5], 5
        %v2742 = vld [vmem:[%s2741] ss:$8 sm:$0x3]
        %s2743 = scalar_lea.vmem %s5, 1280
        %v2744 = vld [vmem:[%s2743] sm:$0xff]
        %v2745 = vld [vmem:[%s2743 + $0x8] sm:$0xff]
        %v2746 = vld [vmem:[%s2743 + $0x10] sm:$0xff]
        %v2747 = vld [vmem:[%s2743 + $0x18] sm:$0xff]
        %v2748 = vld [vmem:[%s2743 + $0x20] sm:$0xff]
        %v2749 = vld [vmem:[%s2743 + $0x28] sm:$0xff]
        %v2750 = vld [vmem:[%s2743 + $0x30] sm:$0xff]
        %v2751 = vld [vmem:[%s2743 + $0x38] sm:$0xff]
        %v2752 = vld [vmem:[%s2743 + $0x40] sm:$0xff]
        %v2753 = vld [vmem:[%s2743 + $0x48] sm:$0xff]
        %v2754 = vld [vmem:[%s2743 + $0x50] sm:$0xff]
        %v2755 = vld [vmem:[%s2743 + $0x58] sm:$0xff]
        %v2756 = vld [vmem:[%s2743 + $0x60] sm:$0xff]
        %v2757 = vld [vmem:[%s2743 + $0x68] sm:$0xff]
        %v2758 = vld [vmem:[%s2743 + $0x70] sm:$0xff]
        %v2759 = vld [vmem:[%s2743 + $0x78] sm:$0xff]
        %v2760 = vld [vmem:[%s2743 + $0x80] sm:$0xff]
        %v2761 = vld [vmem:[%s2743 + $0x88] sm:$0xff]
        %v2762 = vld [vmem:[%s2743 + $0x90] sm:$0xff]
        %v2763 = vld [vmem:[%s2743 + $0x98] sm:$0xff]
        %v2764 = vld [vmem:[%s2743 + $0xa0] sm:$0xff]
        %v2765 = vld [vmem:[%s2743 + $0xa8] sm:$0xff]
        %v2766 = vld [vmem:[%s2743 + $0xb0] sm:$0xff]
        %v2767 = vld [vmem:[%s2743 + $0xb8] sm:$0xff]
        %v2768 = vld [vmem:[%s2743 + $0xc0] sm:$0xff]
        %v2769 = vld [vmem:[%s2743 + $0xc8] sm:$0xff]
        %v2770 = vld [vmem:[%s2743 + $0xd0] sm:$0xff]
        %v2771 = vld [vmem:[%s2743 + $0xd8] sm:$0xff]
        %v2772 = vld [vmem:[%s2743 + $0xe0] sm:$0xff]
        %v2773 = vld [vmem:[%s2743 + $0xe8] sm:$0xff]
        %v2774 = vld [vmem:[%s2743 + $0xf0] sm:$0xff]
        %v2775 = vld [vmem:[%s2743 + $0xf8] sm:$0xff]
        %v2777 = vperm.slane %v2742, 0
        %v2778 = vperm.slane %v2742, 1
        %2781 = vmatpush.msra.mxu0 %v2759
        %2782 = vmatpush.msra.mxu0 %v2758
        %2783 = vmatpush.msra.mxu0 %v2757
        %2784 = vmatpush.msra.mxu0 %v2756
        %2785 = vmatpush.msra.mxu0 %v2755
        %2786 = vmatpush.msra.mxu0 %v2754
        %2787 = vmatpush.msra.mxu0 %v2753
        %2788 = vmatpush.msra.mxu0 %v2752
        %2789 = vmatpush.msra.mxu0 %v2751
        %2790 = vmatpush.msra.mxu0 %v2750
        %2791 = vmatpush.msra.mxu0 %v2749
        %2792 = vmatpush.msra.mxu0 %v2748
        %2793 = vmatpush.msra.mxu0 %v2747
        %2794 = vmatpush.msra.mxu0 %v2746
        %2795 = vmatpush.msra.mxu0 %v2745
        %2796 = vmatpush.msra.mxu0 %v2744
        %2797 = vmatmul.f32.gmra.mxu0 %v2777
        %v2798 = vpop.f32.mrf.mxu0
        %v2799 = vadd.f32 0.0, %v2798
        %2800 = vdwg.mxu0
        %2801 = vmatpush.msra.mxu0 %v2775
        %2802 = vmatpush.msra.mxu0 %v2774
        %2803 = vmatpush.msra.mxu0 %v2773
        %2804 = vmatpush.msra.mxu0 %v2772
        %2805 = vmatpush.msra.mxu0 %v2771
        %2806 = vmatpush.msra.mxu0 %v2770
        %2807 = vmatpush.msra.mxu0 %v2769
        %2808 = vmatpush.msra.mxu0 %v2768
        %2809 = vmatpush.msra.mxu0 %v2767
        %2810 = vmatpush.msra.mxu0 %v2766
        %2811 = vmatpush.msra.mxu0 %v2765
        %2812 = vmatpush.msra.mxu0 %v2764
        %2813 = vmatpush.msra.mxu0 %v2763
        %2814 = vmatpush.msra.mxu0 %v2762
        %2815 = vmatpush.msra.mxu0 %v2761
        %2816 = vmatpush.msra.mxu0 %v2760
        %2817 = vmatmul.f32.gmra.mxu0 %v2778
        %v2818 = vpop.f32.mrf.mxu0
        %v2819 = vadd.f32 %v2799, %v2818
        %2820 = vdwg.mxu0
        %v2821 = vadd.f32 %v2740, %v2819
        %s2822 = scalar_lea.vmem [#allocation5], 6
        %v2823 = vld [vmem:[%s2822] ss:$8 sm:$0x3]
        %s2824 = scalar_lea.vmem %s5, 1536
        %v2825 = vld [vmem:[%s2824] sm:$0xff]
        %v2826 = vld [vmem:[%s2824 + $0x8] sm:$0xff]
        %v2827 = vld [vmem:[%s2824 + $0x10] sm:$0xff]
        %v2828 = vld [vmem:[%s2824 + $0x18] sm:$0xff]
        %v2829 = vld [vmem:[%s2824 + $0x20] sm:$0xff]
        %v2830 = vld [vmem:[%s2824 + $0x28] sm:$0xff]
        %v2831 = vld [vmem:[%s2824 + $0x30] sm:$0xff]
        %v2832 = vld [vmem:[%s2824 + $0x38] sm:$0xff]
        %v2833 = vld [vmem:[%s2824 + $0x40] sm:$0xff]
        %v2834 = vld [vmem:[%s2824 + $0x48] sm:$0xff]
        %v2835 = vld [vmem:[%s2824 + $0x50] sm:$0xff]
        %v2836 = vld [vmem:[%s2824 + $0x58] sm:$0xff]
        %v2837 = vld [vmem:[%s2824 + $0x60] sm:$0xff]
        %v2838 = vld [vmem:[%s2824 + $0x68] sm:$0xff]
        %v2839 = vld [vmem:[%s2824 + $0x70] sm:$0xff]
        %v2840 = vld [vmem:[%s2824 + $0x78] sm:$0xff]
        %v2841 = vld [vmem:[%s2824 + $0x80] sm:$0xff]
        %v2842 = vld [vmem:[%s2824 + $0x88] sm:$0xff]
        %v2843 = vld [vmem:[%s2824 + $0x90] sm:$0xff]
        %v2844 = vld [vmem:[%s2824 + $0x98] sm:$0xff]
        %v2845 = vld [vmem:[%s2824 + $0xa0] sm:$0xff]
        %v2846 = vld [vmem:[%s2824 + $0xa8] sm:$0xff]
        %v2847 = vld [vmem:[%s2824 + $0xb0] sm:$0xff]
        %v2848 = vld [vmem:[%s2824 + $0xb8] sm:$0xff]
        %v2849 = vld [vmem:[%s2824 + $0xc0] sm:$0xff]
        %v2850 = vld [vmem:[%s2824 + $0xc8] sm:$0xff]
        %v2851 = vld [vmem:[%s2824 + $0xd0] sm:$0xff]
        %v2852 = vld [vmem:[%s2824 + $0xd8] sm:$0xff]
        %v2853 = vld [vmem:[%s2824 + $0xe0] sm:$0xff]
        %v2854 = vld [vmem:[%s2824 + $0xe8] sm:$0xff]
        %v2855 = vld [vmem:[%s2824 + $0xf0] sm:$0xff]
        %v2856 = vld [vmem:[%s2824 + $0xf8] sm:$0xff]
        %v2858 = vperm.slane %v2823, 0
        %v2859 = vperm.slane %v2823, 1
        %2862 = vmatpush.msra.mxu0 %v2840
        %2863 = vmatpush.msra.mxu0 %v2839
        %2864 = vmatpush.msra.mxu0 %v2838
        %2865 = vmatpush.msra.mxu0 %v2837
        %2866 = vmatpush.msra.mxu0 %v2836
        %2867 = vmatpush.msra.mxu0 %v2835
        %2868 = vmatpush.msra.mxu0 %v2834
        %2869 = vmatpush.msra.mxu0 %v2833
        %2870 = vmatpush.msra.mxu0 %v2832
        %2871 = vmatpush.msra.mxu0 %v2831
        %2872 = vmatpush.msra.mxu0 %v2830
        %2873 = vmatpush.msra.mxu0 %v2829
        %2874 = vmatpush.msra.mxu0 %v2828
        %2875 = vmatpush.msra.mxu0 %v2827
        %2876 = vmatpush.msra.mxu0 %v2826
        %2877 = vmatpush.msra.mxu0 %v2825
        %2878 = vmatmul.f32.gmra.mxu0 %v2858
        %v2879 = vpop.f32.mrf.mxu0
        %v2880 = vadd.f32 0.0, %v2879
        %2881 = vdwg.mxu0
        %2882 = vmatpush.msra.mxu0 %v2856
        %2883 = vmatpush.msra.mxu0 %v2855
        %2884 = vmatpush.msra.mxu0 %v2854
        %2885 = vmatpush.msra.mxu0 %v2853
        %2886 = vmatpush.msra.mxu0 %v2852
        %2887 = vmatpush.msra.mxu0 %v2851
        %2888 = vmatpush.msra.mxu0 %v2850
        %2889 = vmatpush.msra.mxu0 %v2849
        %2890 = vmatpush.msra.mxu0 %v2848
        %2891 = vmatpush.msra.mxu0 %v2847
        %2892 = vmatpush.msra.mxu0 %v2846
        %2893 = vmatpush.msra.mxu0 %v2845
        %2894 = vmatpush.msra.mxu0 %v2844
        %2895 = vmatpush.msra.mxu0 %v2843
        %2896 = vmatpush.msra.mxu0 %v2842
        %2897 = vmatpush.msra.mxu0 %v2841
        %2898 = vmatmul.f32.gmra.mxu0 %v2859
        %v2899 = vpop.f32.mrf.mxu0
        %v2900 = vadd.f32 %v2880, %v2899
        %2901 = vdwg.mxu0
        %v2902 = vadd.f32 %v2821, %v2900
        %s2903 = scalar_lea.vmem [#allocation5], 7
        %v2904 = vld [vmem:[%s2903] ss:$8 sm:$0x3]
        %s2905 = scalar_lea.vmem %s5, 1792
        %v2906 = vld [vmem:[%s2905] sm:$0xff]
        %v2907 = vld [vmem:[%s2905 + $0x8] sm:$0xff]
        %v2908 = vld [vmem:[%s2905 + $0x10] sm:$0xff]
        %v2909 = vld [vmem:[%s2905 + $0x18] sm:$0xff]
        %v2910 = vld [vmem:[%s2905 + $0x20] sm:$0xff]
        %v2911 = vld [vmem:[%s2905 + $0x28] sm:$0xff]
        %v2912 = vld [vmem:[%s2905 + $0x30] sm:$0xff]
        %v2913 = vld [vmem:[%s2905 + $0x38] sm:$0xff]
        %v2914 = vld [vmem:[%s2905 + $0x40] sm:$0xff]
        %v2915 = vld [vmem:[%s2905 + $0x48] sm:$0xff]
        %v2916 = vld [vmem:[%s2905 + $0x50] sm:$0xff]
        %v2917 = vld [vmem:[%s2905 + $0x58] sm:$0xff]
        %v2918 = vld [vmem:[%s2905 + $0x60] sm:$0xff]
        %v2919 = vld [vmem:[%s2905 + $0x68] sm:$0xff]
        %v2920 = vld [vmem:[%s2905 + $0x70] sm:$0xff]
        %v2921 = vld [vmem:[%s2905 + $0x78] sm:$0xff]
        %v2922 = vld [vmem:[%s2905 + $0x80] sm:$0xff]
        %v2923 = vld [vmem:[%s2905 + $0x88] sm:$0xff]
        %v2924 = vld [vmem:[%s2905 + $0x90] sm:$0xff]
        %v2925 = vld [vmem:[%s2905 + $0x98] sm:$0xff]
        %v2926 = vld [vmem:[%s2905 + $0xa0] sm:$0xff]
        %v2927 = vld [vmem:[%s2905 + $0xa8] sm:$0xff]
        %v2928 = vld [vmem:[%s2905 + $0xb0] sm:$0xff]
        %v2929 = vld [vmem:[%s2905 + $0xb8] sm:$0xff]
        %v2930 = vld [vmem:[%s2905 + $0xc0] sm:$0xff]
        %v2931 = vld [vmem:[%s2905 + $0xc8] sm:$0xff]
        %v2932 = vld [vmem:[%s2905 + $0xd0] sm:$0xff]
        %v2933 = vld [vmem:[%s2905 + $0xd8] sm:$0xff]
        %v2934 = vld [vmem:[%s2905 + $0xe0] sm:$0xff]
        %v2935 = vld [vmem:[%s2905 + $0xe8] sm:$0xff]
        %v2936 = vld [vmem:[%s2905 + $0xf0] sm:$0xff]
        %v2937 = vld [vmem:[%s2905 + $0xf8] sm:$0xff]
        %v2939 = vperm.slane %v2904, 0
        %v2940 = vperm.slane %v2904, 1
        %2943 = vmatpush.msra.mxu0 %v2921
        %2944 = vmatpush.msra.mxu0 %v2920
        %2945 = vmatpush.msra.mxu0 %v2919
        %2946 = vmatpush.msra.mxu0 %v2918
        %2947 = vmatpush.msra.mxu0 %v2917
        %2948 = vmatpush.msra.mxu0 %v2916
        %2949 = vmatpush.msra.mxu0 %v2915
        %2950 = vmatpush.msra.mxu0 %v2914
        %2951 = vmatpush.msra.mxu0 %v2913
        %2952 = vmatpush.msra.mxu0 %v2912
        %2953 = vmatpush.msra.mxu0 %v2911
        %2954 = vmatpush.msra.mxu0 %v2910
        %2955 = vmatpush.msra.mxu0 %v2909
        %2956 = vmatpush.msra.mxu0 %v2908
        %2957 = vmatpush.msra.mxu0 %v2907
        %2958 = vmatpush.msra.mxu0 %v2906
        %2959 = vmatmul.f32.gmra.mxu0 %v2939
        %v2960 = vpop.f32.mrf.mxu0
        %v2961 = vadd.f32 0.0, %v2960
        %2962 = vdwg.mxu0
        %2963 = vmatpush.msra.mxu0 %v2937
        %2964 = vmatpush.msra.mxu0 %v2936
        %2965 = vmatpush.msra.mxu0 %v2935
        %2966 = vmatpush.msra.mxu0 %v2934
        %2967 = vmatpush.msra.mxu0 %v2933
        %2968 = vmatpush.msra.mxu0 %v2932
        %2969 = vmatpush.msra.mxu0 %v2931
        %2970 = vmatpush.msra.mxu0 %v2930
        %2971 = vmatpush.msra.mxu0 %v2929
        %2972 = vmatpush.msra.mxu0 %v2928
        %2973 = vmatpush.msra.mxu0 %v2927
        %2974 = vmatpush.msra.mxu0 %v2926
        %2975 = vmatpush.msra.mxu0 %v2925
        %2976 = vmatpush.msra.mxu0 %v2924
        %2977 = vmatpush.msra.mxu0 %v2923
        %2978 = vmatpush.msra.mxu0 %v2922
        %2979 = vmatmul.f32.gmra.mxu0 %v2940
        %v2980 = vpop.f32.mrf.mxu0
        %v2981 = vadd.f32 %v2961, %v2980
        %2982 = vdwg.mxu0
        %v2983 = vadd.f32 %v2902, %v2981
        %s2984 = scalar_lea.vmem [#allocation5], 16
        %v2985 = vld [vmem:[%s2984] ss:$8 sm:$0x3]
        %s2986 = scalar_lea.vmem %s5, 2048
        %v2987 = vld [vmem:[%s2986] sm:$0xff]
        %v2988 = vld [vmem:[%s2986 + $0x8] sm:$0xff]
        %v2989 = vld [vmem:[%s2986 + $0x10] sm:$0xff]
        %v2990 = vld [vmem:[%s2986 + $0x18] sm:$0xff]
        %v2991 = vld [vmem:[%s2986 + $0x20] sm:$0xff]
        %v2992 = vld [vmem:[%s2986 + $0x28] sm:$0xff]
        %v2993 = vld [vmem:[%s2986 + $0x30] sm:$0xff]
        %v2994 = vld [vmem:[%s2986 + $0x38] sm:$0xff]
        %v2995 = vld [vmem:[%s2986 + $0x40] sm:$0xff]
        %v2996 = vld [vmem:[%s2986 + $0x48] sm:$0xff]
        %v2997 = vld [vmem:[%s2986 + $0x50] sm:$0xff]
        %v2998 = vld [vmem:[%s2986 + $0x58] sm:$0xff]
        %v2999 = vld [vmem:[%s2986 + $0x60] sm:$0xff]
        %v3000 = vld [vmem:[%s2986 + $0x68] sm:$0xff]
        %v3001 = vld [vmem:[%s2986 + $0x70] sm:$0xff]
        %v3002 = vld [vmem:[%s2986 + $0x78] sm:$0xff]
        %v3003 = vld [vmem:[%s2986 + $0x80] sm:$0xff]
        %v3004 = vld [vmem:[%s2986 + $0x88] sm:$0xff]
        %v3005 = vld [vmem:[%s2986 + $0x90] sm:$0xff]
        %v3006 = vld [vmem:[%s2986 + $0x98] sm:$0xff]
        %v3007 = vld [vmem:[%s2986 + $0xa0] sm:$0xff]
        %v3008 = vld [vmem:[%s2986 + $0xa8] sm:$0xff]
        %v3009 = vld [vmem:[%s2986 + $0xb0] sm:$0xff]
        %v3010 = vld [vmem:[%s2986 + $0xb8] sm:$0xff]
        %v3011 = vld [vmem:[%s2986 + $0xc0] sm:$0xff]
        %v3012 = vld [vmem:[%s2986 + $0xc8] sm:$0xff]
        %v3013 = vld [vmem:[%s2986 + $0xd0] sm:$0xff]
        %v3014 = vld [vmem:[%s2986 + $0xd8] sm:$0xff]
        %v3015 = vld [vmem:[%s2986 + $0xe0] sm:$0xff]
        %v3016 = vld [vmem:[%s2986 + $0xe8] sm:$0xff]
        %v3017 = vld [vmem:[%s2986 + $0xf0] sm:$0xff]
        %v3018 = vld [vmem:[%s2986 + $0xf8] sm:$0xff]
        %v3020 = vperm.slane %v2985, 0
        %v3021 = vperm.slane %v2985, 1
        %3024 = vmatpush.msra.mxu0 %v3002
        %3025 = vmatpush.msra.mxu0 %v3001
        %3026 = vmatpush.msra.mxu0 %v3000
        %3027 = vmatpush.msra.mxu0 %v2999
        %3028 = vmatpush.msra.mxu0 %v2998
        %3029 = vmatpush.msra.mxu0 %v2997
        %3030 = vmatpush.msra.mxu0 %v2996
        %3031 = vmatpush.msra.mxu0 %v2995
        %3032 = vmatpush.msra.mxu0 %v2994
        %3033 = vmatpush.msra.mxu0 %v2993
        %3034 = vmatpush.msra.mxu0 %v2992
        %3035 = vmatpush.msra.mxu0 %v2991
        %3036 = vmatpush.msra.mxu0 %v2990
        %3037 = vmatpush.msra.mxu0 %v2989
        %3038 = vmatpush.msra.mxu0 %v2988
        %3039 = vmatpush.msra.mxu0 %v2987
        %3040 = vmatmul.f32.gmra.mxu0 %v3020
        %v3041 = vpop.f32.mrf.mxu0
        %v3042 = vadd.f32 0.0, %v3041
        %3043 = vdwg.mxu0
        %3044 = vmatpush.msra.mxu0 %v3018
        %3045 = vmatpush.msra.mxu0 %v3017
        %3046 = vmatpush.msra.mxu0 %v3016
        %3047 = vmatpush.msra.mxu0 %v3015
        %3048 = vmatpush.msra.mxu0 %v3014
        %3049 = vmatpush.msra.mxu0 %v3013
        %3050 = vmatpush.msra.mxu0 %v3012
        %3051 = vmatpush.msra.mxu0 %v3011
        %3052 = vmatpush.msra.mxu0 %v3010
        %3053 = vmatpush.msra.mxu0 %v3009
        %3054 = vmatpush.msra.mxu0 %v3008
        %3055 = vmatpush.msra.mxu0 %v3007
        %3056 = vmatpush.msra.mxu0 %v3006
        %3057 = vmatpush.msra.mxu0 %v3005
        %3058 = vmatpush.msra.mxu0 %v3004
        %3059 = vmatpush.msra.mxu0 %v3003
        %3060 = vmatmul.f32.gmra.mxu0 %v3021
        %v3061 = vpop.f32.mrf.mxu0
        %v3062 = vadd.f32 %v3042, %v3061
        %3063 = vdwg.mxu0
        %v3064 = vadd.f32 %v2983, %v3062
        %s3065 = scalar_lea.vmem [#allocation5], 17
        %v3066 = vld [vmem:[%s3065] ss:$8 sm:$0x3]
        %s3067 = scalar_lea.vmem %s5, 2304
        %v3068 = vld [vmem:[%s3067] sm:$0xff]
        %v3069 = vld [vmem:[%s3067 + $0x8] sm:$0xff]
        %v3070 = vld [vmem:[%s3067 + $0x10] sm:$0xff]
        %v3071 = vld [vmem:[%s3067 + $0x18] sm:$0xff]
        %v3072 = vld [vmem:[%s3067 + $0x20] sm:$0xff]
        %v3073 = vld [vmem:[%s3067 + $0x28] sm:$0xff]
        %v3074 = vld [vmem:[%s3067 + $0x30] sm:$0xff]
        %v3075 = vld [vmem:[%s3067 + $0x38] sm:$0xff]
        %v3076 = vld [vmem:[%s3067 + $0x40] sm:$0xff]
        %v3077 = vld [vmem:[%s3067 + $0x48] sm:$0xff]
        %v3078 = vld [vmem:[%s3067 + $0x50] sm:$0xff]
        %v3079 = vld [vmem:[%s3067 + $0x58] sm:$0xff]
        %v3080 = vld [vmem:[%s3067 + $0x60] sm:$0xff]
        %v3081 = vld [vmem:[%s3067 + $0x68] sm:$0xff]
        %v3082 = vld [vmem:[%s3067 + $0x70] sm:$0xff]
        %v3083 = vld [vmem:[%s3067 + $0x78] sm:$0xff]
        %v3084 = vld [vmem:[%s3067 + $0x80] sm:$0xff]
        %v3085 = vld [vmem:[%s3067 + $0x88] sm:$0xff]
        %v3086 = vld [vmem:[%s3067 + $0x90] sm:$0xff]
        %v3087 = vld [vmem:[%s3067 + $0x98] sm:$0xff]
        %v3088 = vld [vmem:[%s3067 + $0xa0] sm:$0xff]
        %v3089 = vld [vmem:[%s3067 + $0xa8] sm:$0xff]
        %v3090 = vld [vmem:[%s3067 + $0xb0] sm:$0xff]
        %v3091 = vld [vmem:[%s3067 + $0xb8] sm:$0xff]
        %v3092 = vld [vmem:[%s3067 + $0xc0] sm:$0xff]
        %v3093 = vld [vmem:[%s3067 + $0xc8] sm:$0xff]
        %v3094 = vld [vmem:[%s3067 + $0xd0] sm:$0xff]
        %v3095 = vld [vmem:[%s3067 + $0xd8] sm:$0xff]
        %v3096 = vld [vmem:[%s3067 + $0xe0] sm:$0xff]
        %v3097 = vld [vmem:[%s3067 + $0xe8] sm:$0xff]
        %v3098 = vld [vmem:[%s3067 + $0xf0] sm:$0xff]
        %v3099 = vld [vmem:[%s3067 + $0xf8] sm:$0xff]
        %v3101 = vperm.slane %v3066, 0
        %v3102 = vperm.slane %v3066, 1
        %3105 = vmatpush.msra.mxu0 %v3083
        %3106 = vmatpush.msra.mxu0 %v3082
        %3107 = vmatpush.msra.mxu0 %v3081
        %3108 = vmatpush.msra.mxu0 %v3080
        %3109 = vmatpush.msra.mxu0 %v3079
        %3110 = vmatpush.msra.mxu0 %v3078
        %3111 = vmatpush.msra.mxu0 %v3077
        %3112 = vmatpush.msra.mxu0 %v3076
        %3113 = vmatpush.msra.mxu0 %v3075
        %3114 = vmatpush.msra.mxu0 %v3074
        %3115 = vmatpush.msra.mxu0 %v3073
        %3116 = vmatpush.msra.mxu0 %v3072
        %3117 = vmatpush.msra.mxu0 %v3071
        %3118 = vmatpush.msra.mxu0 %v3070
        %3119 = vmatpush.msra.mxu0 %v3069
        %3120 = vmatpush.msra.mxu0 %v3068
        %3121 = vmatmul.f32.gmra.mxu0 %v3101
        %v3122 = vpop.f32.mrf.mxu0
        %v3123 = vadd.f32 0.0, %v3122
        %3124 = vdwg.mxu0
        %3125 = vmatpush.msra.mxu0 %v3099
        %3126 = vmatpush.msra.mxu0 %v3098
        %3127 = vmatpush.msra.mxu0 %v3097
        %3128 = vmatpush.msra.mxu0 %v3096
        %3129 = vmatpush.msra.mxu0 %v3095
        %3130 = vmatpush.msra.mxu0 %v3094
        %3131 = vmatpush.msra.mxu0 %v3093
        %3132 = vmatpush.msra.mxu0 %v3092
        %3133 = vmatpush.msra.mxu0 %v3091
        %3134 = vmatpush.msra.mxu0 %v3090
        %3135 = vmatpush.msra.mxu0 %v3089
        %3136 = vmatpush.msra.mxu0 %v3088
        %3137 = vmatpush.msra.mxu0 %v3087
        %3138 = vmatpush.msra.mxu0 %v3086
        %3139 = vmatpush.msra.mxu0 %v3085
        %3140 = vmatpush.msra.mxu0 %v3084
        %3141 = vmatmul.f32.gmra.mxu0 %v3102
        %v3142 = vpop.f32.mrf.mxu0
        %v3143 = vadd.f32 %v3123, %v3142
        %3144 = vdwg.mxu0
        %v3145 = vadd.f32 %v3064, %v3143
        %s3146 = scalar_lea.vmem [#allocation5], 18
        %v3147 = vld [vmem:[%s3146] ss:$8 sm:$0x3]
        %s3148 = scalar_lea.vmem %s5, 2560
        %v3149 = vld [vmem:[%s3148] sm:$0xff]
        %v3150 = vld [vmem:[%s3148 + $0x8] sm:$0xff]
        %v3151 = vld [vmem:[%s3148 + $0x10] sm:$0xff]
        %v3152 = vld [vmem:[%s3148 + $0x18] sm:$0xff]
        %v3153 = vld [vmem:[%s3148 + $0x20] sm:$0xff]
        %v3154 = vld [vmem:[%s3148 + $0x28] sm:$0xff]
        %v3155 = vld [vmem:[%s3148 + $0x30] sm:$0xff]
        %v3156 = vld [vmem:[%s3148 + $0x38] sm:$0xff]
        %v3157 = vld [vmem:[%s3148 + $0x40] sm:$0xff]
        %v3158 = vld [vmem:[%s3148 + $0x48] sm:$0xff]
        %v3159 = vld [vmem:[%s3148 + $0x50] sm:$0xff]
        %v3160 = vld [vmem:[%s3148 + $0x58] sm:$0xff]
        %v3161 = vld [vmem:[%s3148 + $0x60] sm:$0xff]
        %v3162 = vld [vmem:[%s3148 + $0x68] sm:$0xff]
        %v3163 = vld [vmem:[%s3148 + $0x70] sm:$0xff]
        %v3164 = vld [vmem:[%s3148 + $0x78] sm:$0xff]
        %v3165 = vld [vmem:[%s3148 + $0x80] sm:$0xff]
        %v3166 = vld [vmem:[%s3148 + $0x88] sm:$0xff]
        %v3167 = vld [vmem:[%s3148 + $0x90] sm:$0xff]
        %v3168 = vld [vmem:[%s3148 + $0x98] sm:$0xff]
        %v3169 = vld [vmem:[%s3148 + $0xa0] sm:$0xff]
        %v3170 = vld [vmem:[%s3148 + $0xa8] sm:$0xff]
        %v3171 = vld [vmem:[%s3148 + $0xb0] sm:$0xff]
        %v3172 = vld [vmem:[%s3148 + $0xb8] sm:$0xff]
        %v3173 = vld [vmem:[%s3148 + $0xc0] sm:$0xff]
        %v3174 = vld [vmem:[%s3148 + $0xc8] sm:$0xff]
        %v3175 = vld [vmem:[%s3148 + $0xd0] sm:$0xff]
        %v3176 = vld [vmem:[%s3148 + $0xd8] sm:$0xff]
        %v3177 = vld [vmem:[%s3148 + $0xe0] sm:$0xff]
        %v3178 = vld [vmem:[%s3148 + $0xe8] sm:$0xff]
        %v3179 = vld [vmem:[%s3148 + $0xf0] sm:$0xff]
        %v3180 = vld [vmem:[%s3148 + $0xf8] sm:$0xff]
        %v3182 = vperm.slane %v3147, 0
        %v3183 = vperm.slane %v3147, 1
        %3186 = vmatpush.msra.mxu0 %v3164
        %3187 = vmatpush.msra.mxu0 %v3163
        %3188 = vmatpush.msra.mxu0 %v3162
        %3189 = vmatpush.msra.mxu0 %v3161
        %3190 = vmatpush.msra.mxu0 %v3160
        %3191 = vmatpush.msra.mxu0 %v3159
        %3192 = vmatpush.msra.mxu0 %v3158
        %3193 = vmatpush.msra.mxu0 %v3157
        %3194 = vmatpush.msra.mxu0 %v3156
        %3195 = vmatpush.msra.mxu0 %v3155
        %3196 = vmatpush.msra.mxu0 %v3154
        %3197 = vmatpush.msra.mxu0 %v3153
        %3198 = vmatpush.msra.mxu0 %v3152
        %3199 = vmatpush.msra.mxu0 %v3151
        %3200 = vmatpush.msra.mxu0 %v3150
        %3201 = vmatpush.msra.mxu0 %v3149
        %3202 = vmatmul.f32.gmra.mxu0 %v3182
        %v3203 = vpop.f32.mrf.mxu0
        %v3204 = vadd.f32 0.0, %v3203
        %3205 = vdwg.mxu0
        %3206 = vmatpush.msra.mxu0 %v3180
        %3207 = vmatpush.msra.mxu0 %v3179
        %3208 = vmatpush.msra.mxu0 %v3178
        %3209 = vmatpush.msra.mxu0 %v3177
        %3210 = vmatpush.msra.mxu0 %v3176
        %3211 = vmatpush.msra.mxu0 %v3175
        %3212 = vmatpush.msra.mxu0 %v3174
        %3213 = vmatpush.msra.mxu0 %v3173
        %3214 = vmatpush.msra.mxu0 %v3172
        %3215 = vmatpush.msra.mxu0 %v3171
        %3216 = vmatpush.msra.mxu0 %v3170
        %3217 = vmatpush.msra.mxu0 %v3169
        %3218 = vmatpush.msra.mxu0 %v3168
        %3219 = vmatpush.msra.mxu0 %v3167
        %3220 = vmatpush.msra.mxu0 %v3166
        %3221 = vmatpush.msra.mxu0 %v3165
        %3222 = vmatmul.f32.gmra.mxu0 %v3183
        %v3223 = vpop.f32.mrf.mxu0
        %v3224 = vadd.f32 %v3204, %v3223
        %3225 = vdwg.mxu0
        %v3226 = vadd.f32 %v3145, %v3224
        %s3227 = scalar_lea.vmem [#allocation5], 19
        %v3228 = vld [vmem:[%s3227] ss:$8 sm:$0x3]
        %s3229 = scalar_lea.vmem %s5, 2816
        %v3230 = vld [vmem:[%s3229] sm:$0xff]
        %v3231 = vld [vmem:[%s3229 + $0x8] sm:$0xff]
        %v3232 = vld [vmem:[%s3229 + $0x10] sm:$0xff]
        %v3233 = vld [vmem:[%s3229 + $0x18] sm:$0xff]
        %v3234 = vld [vmem:[%s3229 + $0x20] sm:$0xff]
        %v3235 = vld [vmem:[%s3229 + $0x28] sm:$0xff]
        %v3236 = vld [vmem:[%s3229 + $0x30] sm:$0xff]
        %v3237 = vld [vmem:[%s3229 + $0x38] sm:$0xff]
        %v3238 = vld [vmem:[%s3229 + $0x40] sm:$0xff]
        %v3239 = vld [vmem:[%s3229 + $0x48] sm:$0xff]
        %v3240 = vld [vmem:[%s3229 + $0x50] sm:$0xff]
        %v3241 = vld [vmem:[%s3229 + $0x58] sm:$0xff]
        %v3242 = vld [vmem:[%s3229 + $0x60] sm:$0xff]
        %v3243 = vld [vmem:[%s3229 + $0x68] sm:$0xff]
        %v3244 = vld [vmem:[%s3229 + $0x70] sm:$0xff]
        %v3245 = vld [vmem:[%s3229 + $0x78] sm:$0xff]
        %v3246 = vld [vmem:[%s3229 + $0x80] sm:$0xff]
        %v3247 = vld [vmem:[%s3229 + $0x88] sm:$0xff]
        %v3248 = vld [vmem:[%s3229 + $0x90] sm:$0xff]
        %v3249 = vld [vmem:[%s3229 + $0x98] sm:$0xff]
        %v3250 = vld [vmem:[%s3229 + $0xa0] sm:$0xff]
        %v3251 = vld [vmem:[%s3229 + $0xa8] sm:$0xff]
        %v3252 = vld [vmem:[%s3229 + $0xb0] sm:$0xff]
        %v3253 = vld [vmem:[%s3229 + $0xb8] sm:$0xff]
        %v3254 = vld [vmem:[%s3229 + $0xc0] sm:$0xff]
        %v3255 = vld [vmem:[%s3229 + $0xc8] sm:$0xff]
        %v3256 = vld [vmem:[%s3229 + $0xd0] sm:$0xff]
        %v3257 = vld [vmem:[%s3229 + $0xd8] sm:$0xff]
        %v3258 = vld [vmem:[%s3229 + $0xe0] sm:$0xff]
        %v3259 = vld [vmem:[%s3229 + $0xe8] sm:$0xff]
        %v3260 = vld [vmem:[%s3229 + $0xf0] sm:$0xff]
        %v3261 = vld [vmem:[%s3229 + $0xf8] sm:$0xff]
        %v3263 = vperm.slane %v3228, 0
        %v3264 = vperm.slane %v3228, 1
        %3267 = vmatpush.msra.mxu0 %v3245
        %3268 = vmatpush.msra.mxu0 %v3244
        %3269 = vmatpush.msra.mxu0 %v3243
        %3270 = vmatpush.msra.mxu0 %v3242
        %3271 = vmatpush.msra.mxu0 %v3241
        %3272 = vmatpush.msra.mxu0 %v3240
        %3273 = vmatpush.msra.mxu0 %v3239
        %3274 = vmatpush.msra.mxu0 %v3238
        %3275 = vmatpush.msra.mxu0 %v3237
        %3276 = vmatpush.msra.mxu0 %v3236
        %3277 = vmatpush.msra.mxu0 %v3235
        %3278 = vmatpush.msra.mxu0 %v3234
        %3279 = vmatpush.msra.mxu0 %v3233
        %3280 = vmatpush.msra.mxu0 %v3232
        %3281 = vmatpush.msra.mxu0 %v3231
        %3282 = vmatpush.msra.mxu0 %v3230
        %3283 = vmatmul.f32.gmra.mxu0 %v3263
        %v3284 = vpop.f32.mrf.mxu0
        %v3285 = vadd.f32 0.0, %v3284
        %3286 = vdwg.mxu0
        %3287 = vmatpush.msra.mxu0 %v3261
        %3288 = vmatpush.msra.mxu0 %v3260
        %3289 = vmatpush.msra.mxu0 %v3259
        %3290 = vmatpush.msra.mxu0 %v3258
        %3291 = vmatpush.msra.mxu0 %v3257
        %3292 = vmatpush.msra.mxu0 %v3256
        %3293 = vmatpush.msra.mxu0 %v3255
        %3294 = vmatpush.msra.mxu0 %v3254
        %3295 = vmatpush.msra.mxu0 %v3253
        %3296 = vmatpush.msra.mxu0 %v3252
        %3297 = vmatpush.msra.mxu0 %v3251
        %3298 = vmatpush.msra.mxu0 %v3250
        %3299 = vmatpush.msra.mxu0 %v3249
        %3300 = vmatpush.msra.mxu0 %v3248
        %3301 = vmatpush.msra.mxu0 %v3247
        %3302 = vmatpush.msra.mxu0 %v3246
        %3303 = vmatmul.f32.gmra.mxu0 %v3264
        %v3304 = vpop.f32.mrf.mxu0
        %v3305 = vadd.f32 %v3285, %v3304
        %3306 = vdwg.mxu0
        %v3307 = vadd.f32 %v3226, %v3305
        %s3308 = scalar_lea.vmem [#allocation5], 20
        %v3309 = vld [vmem:[%s3308] ss:$8 sm:$0x3]
        %s3310 = scalar_lea.vmem %s5, 3072
        %v3311 = vld [vmem:[%s3310] sm:$0xff]
        %v3312 = vld [vmem:[%s3310 + $0x8] sm:$0xff]
        %v3313 = vld [vmem:[%s3310 + $0x10] sm:$0xff]
        %v3314 = vld [vmem:[%s3310 + $0x18] sm:$0xff]
        %v3315 = vld [vmem:[%s3310 + $0x20] sm:$0xff]
        %v3316 = vld [vmem:[%s3310 + $0x28] sm:$0xff]
        %v3317 = vld [vmem:[%s3310 + $0x30] sm:$0xff]
        %v3318 = vld [vmem:[%s3310 + $0x38] sm:$0xff]
        %v3319 = vld [vmem:[%s3310 + $0x40] sm:$0xff]
        %v3320 = vld [vmem:[%s3310 + $0x48] sm:$0xff]
        %v3321 = vld [vmem:[%s3310 + $0x50] sm:$0xff]
        %v3322 = vld [vmem:[%s3310 + $0x58] sm:$0xff]
        %v3323 = vld [vmem:[%s3310 + $0x60] sm:$0xff]
        %v3324 = vld [vmem:[%s3310 + $0x68] sm:$0xff]
        %v3325 = vld [vmem:[%s3310 + $0x70] sm:$0xff]
        %v3326 = vld [vmem:[%s3310 + $0x78] sm:$0xff]
        %v3327 = vld [vmem:[%s3310 + $0x80] sm:$0xff]
        %v3328 = vld [vmem:[%s3310 + $0x88] sm:$0xff]
        %v3329 = vld [vmem:[%s3310 + $0x90] sm:$0xff]
        %v3330 = vld [vmem:[%s3310 + $0x98] sm:$0xff]
        %v3331 = vld [vmem:[%s3310 + $0xa0] sm:$0xff]
        %v3332 = vld [vmem:[%s3310 + $0xa8] sm:$0xff]
        %v3333 = vld [vmem:[%s3310 + $0xb0] sm:$0xff]
        %v3334 = vld [vmem:[%s3310 + $0xb8] sm:$0xff]
        %v3335 = vld [vmem:[%s3310 + $0xc0] sm:$0xff]
        %v3336 = vld [vmem:[%s3310 + $0xc8] sm:$0xff]
        %v3337 = vld [vmem:[%s3310 + $0xd0] sm:$0xff]
        %v3338 = vld [vmem:[%s3310 + $0xd8] sm:$0xff]
        %v3339 = vld [vmem:[%s3310 + $0xe0] sm:$0xff]
        %v3340 = vld [vmem:[%s3310 + $0xe8] sm:$0xff]
        %v3341 = vld [vmem:[%s3310 + $0xf0] sm:$0xff]
        %v3342 = vld [vmem:[%s3310 + $0xf8] sm:$0xff]
        %v3344 = vperm.slane %v3309, 0
        %v3345 = vperm.slane %v3309, 1
        %3348 = vmatpush.msra.mxu0 %v3326
        %3349 = vmatpush.msra.mxu0 %v3325
        %3350 = vmatpush.msra.mxu0 %v3324
        %3351 = vmatpush.msra.mxu0 %v3323
        %3352 = vmatpush.msra.mxu0 %v3322
        %3353 = vmatpush.msra.mxu0 %v3321
        %3354 = vmatpush.msra.mxu0 %v3320
        %3355 = vmatpush.msra.mxu0 %v3319
        %3356 = vmatpush.msra.mxu0 %v3318
        %3357 = vmatpush.msra.mxu0 %v3317
        %3358 = vmatpush.msra.mxu0 %v3316
        %3359 = vmatpush.msra.mxu0 %v3315
        %3360 = vmatpush.msra.mxu0 %v3314
        %3361 = vmatpush.msra.mxu0 %v3313
        %3362 = vmatpush.msra.mxu0 %v3312
        %3363 = vmatpush.msra.mxu0 %v3311
        %3364 = vmatmul.f32.gmra.mxu0 %v3344
        %v3365 = vpop.f32.mrf.mxu0
        %v3366 = vadd.f32 0.0, %v3365
        %3367 = vdwg.mxu0
        %3368 = vmatpush.msra.mxu0 %v3342
        %3369 = vmatpush.msra.mxu0 %v3341
        %3370 = vmatpush.msra.mxu0 %v3340
        %3371 = vmatpush.msra.mxu0 %v3339
        %3372 = vmatpush.msra.mxu0 %v3338
        %3373 = vmatpush.msra.mxu0 %v3337
        %3374 = vmatpush.msra.mxu0 %v3336
        %3375 = vmatpush.msra.mxu0 %v3335
        %3376 = vmatpush.msra.mxu0 %v3334
        %3377 = vmatpush.msra.mxu0 %v3333
        %3378 = vmatpush.msra.mxu0 %v3332
        %3379 = vmatpush.msra.mxu0 %v3331
        %3380 = vmatpush.msra.mxu0 %v3330
        %3381 = vmatpush.msra.mxu0 %v3329
        %3382 = vmatpush.msra.mxu0 %v3328
        %3383 = vmatpush.msra.mxu0 %v3327
        %3384 = vmatmul.f32.gmra.mxu0 %v3345
        %v3385 = vpop.f32.mrf.mxu0
        %v3386 = vadd.f32 %v3366, %v3385
        %3387 = vdwg.mxu0
        %v3388 = vadd.f32 %v3307, %v3386
        %s3389 = scalar_lea.vmem [#allocation5], 21
        %v3390 = vld [vmem:[%s3389] ss:$8 sm:$0x3]
        %s3391 = scalar_lea.vmem %s5, 3328
        %v3392 = vld [vmem:[%s3391] sm:$0xff]
        %v3393 = vld [vmem:[%s3391 + $0x8] sm:$0xff]
        %v3394 = vld [vmem:[%s3391 + $0x10] sm:$0xff]
        %v3395 = vld [vmem:[%s3391 + $0x18] sm:$0xff]
        %v3396 = vld [vmem:[%s3391 + $0x20] sm:$0xff]
        %v3397 = vld [vmem:[%s3391 + $0x28] sm:$0xff]
        %v3398 = vld [vmem:[%s3391 + $0x30] sm:$0xff]
        %v3399 = vld [vmem:[%s3391 + $0x38] sm:$0xff]
        %v3400 = vld [vmem:[%s3391 + $0x40] sm:$0xff]
        %v3401 = vld [vmem:[%s3391 + $0x48] sm:$0xff]
        %v3402 = vld [vmem:[%s3391 + $0x50] sm:$0xff]
        %v3403 = vld [vmem:[%s3391 + $0x58] sm:$0xff]
        %v3404 = vld [vmem:[%s3391 + $0x60] sm:$0xff]
        %v3405 = vld [vmem:[%s3391 + $0x68] sm:$0xff]
        %v3406 = vld [vmem:[%s3391 + $0x70] sm:$0xff]
        %v3407 = vld [vmem:[%s3391 + $0x78] sm:$0xff]
        %v3408 = vld [vmem:[%s3391 + $0x80] sm:$0xff]
        %v3409 = vld [vmem:[%s3391 + $0x88] sm:$0xff]
        %v3410 = vld [vmem:[%s3391 + $0x90] sm:$0xff]
        %v3411 = vld [vmem:[%s3391 + $0x98] sm:$0xff]
        %v3412 = vld [vmem:[%s3391 + $0xa0] sm:$0xff]
        %v3413 = vld [vmem:[%s3391 + $0xa8] sm:$0xff]
        %v3414 = vld [vmem:[%s3391 + $0xb0] sm:$0xff]
        %v3415 = vld [vmem:[%s3391 + $0xb8] sm:$0xff]
        %v3416 = vld [vmem:[%s3391 + $0xc0] sm:$0xff]
        %v3417 = vld [vmem:[%s3391 + $0xc8] sm:$0xff]
        %v3418 = vld [vmem:[%s3391 + $0xd0] sm:$0xff]
        %v3419 = vld [vmem:[%s3391 + $0xd8] sm:$0xff]
        %v3420 = vld [vmem:[%s3391 + $0xe0] sm:$0xff]
        %v3421 = vld [vmem:[%s3391 + $0xe8] sm:$0xff]
        %v3422 = vld [vmem:[%s3391 + $0xf0] sm:$0xff]
        %v3423 = vld [vmem:[%s3391 + $0xf8] sm:$0xff]
        %v3425 = vperm.slane %v3390, 0
        %v3426 = vperm.slane %v3390, 1
        %3429 = vmatpush.msra.mxu0 %v3407
        %3430 = vmatpush.msra.mxu0 %v3406
        %3431 = vmatpush.msra.mxu0 %v3405
        %3432 = vmatpush.msra.mxu0 %v3404
        %3433 = vmatpush.msra.mxu0 %v3403
        %3434 = vmatpush.msra.mxu0 %v3402
        %3435 = vmatpush.msra.mxu0 %v3401
        %3436 = vmatpush.msra.mxu0 %v3400
        %3437 = vmatpush.msra.mxu0 %v3399
        %3438 = vmatpush.msra.mxu0 %v3398
        %3439 = vmatpush.msra.mxu0 %v3397
        %3440 = vmatpush.msra.mxu0 %v3396
        %3441 = vmatpush.msra.mxu0 %v3395
        %3442 = vmatpush.msra.mxu0 %v3394
        %3443 = vmatpush.msra.mxu0 %v3393
        %3444 = vmatpush.msra.mxu0 %v3392
        %3445 = vmatmul.f32.gmra.mxu0 %v3425
        %v3446 = vpop.f32.mrf.mxu0
        %v3447 = vadd.f32 0.0, %v3446
        %3448 = vdwg.mxu0
        %3449 = vmatpush.msra.mxu0 %v3423
        %3450 = vmatpush.msra.mxu0 %v3422
        %3451 = vmatpush.msra.mxu0 %v3421
        %3452 = vmatpush.msra.mxu0 %v3420
        %3453 = vmatpush.msra.mxu0 %v3419
        %3454 = vmatpush.msra.mxu0 %v3418
        %3455 = vmatpush.msra.mxu0 %v3417
        %3456 = vmatpush.msra.mxu0 %v3416
        %3457 = vmatpush.msra.mxu0 %v3415
        %3458 = vmatpush.msra.mxu0 %v3414
        %3459 = vmatpush.msra.mxu0 %v3413
        %3460 = vmatpush.msra.mxu0 %v3412
        %3461 = vmatpush.msra.mxu0 %v3411
        %3462 = vmatpush.msra.mxu0 %v3410
        %3463 = vmatpush.msra.mxu0 %v3409
        %3464 = vmatpush.msra.mxu0 %v3408
        %3465 = vmatmul.f32.gmra.mxu0 %v3426
        %v3466 = vpop.f32.mrf.mxu0
        %v3467 = vadd.f32 %v3447, %v3466
        %3468 = vdwg.mxu0
        %v3469 = vadd.f32 %v3388, %v3467
        %s3470 = scalar_lea.vmem [#allocation5], 22
        %v3471 = vld [vmem:[%s3470] ss:$8 sm:$0x3]
        %s3472 = scalar_lea.vmem %s5, 3584
        %v3473 = vld [vmem:[%s3472] sm:$0xff]
        %v3474 = vld [vmem:[%s3472 + $0x8] sm:$0xff]
        %v3475 = vld [vmem:[%s3472 + $0x10] sm:$0xff]
        %v3476 = vld [vmem:[%s3472 + $0x18] sm:$0xff]
        %v3477 = vld [vmem:[%s3472 + $0x20] sm:$0xff]
        %v3478 = vld [vmem:[%s3472 + $0x28] sm:$0xff]
        %v3479 = vld [vmem:[%s3472 + $0x30] sm:$0xff]
        %v3480 = vld [vmem:[%s3472 + $0x38] sm:$0xff]
        %v3481 = vld [vmem:[%s3472 + $0x40] sm:$0xff]
        %v3482 = vld [vmem:[%s3472 + $0x48] sm:$0xff]
        %v3483 = vld [vmem:[%s3472 + $0x50] sm:$0xff]
        %v3484 = vld [vmem:[%s3472 + $0x58] sm:$0xff]
        %v3485 = vld [vmem:[%s3472 + $0x60] sm:$0xff]
        %v3486 = vld [vmem:[%s3472 + $0x68] sm:$0xff]
        %v3487 = vld [vmem:[%s3472 + $0x70] sm:$0xff]
        %v3488 = vld [vmem:[%s3472 + $0x78] sm:$0xff]
        %v3489 = vld [vmem:[%s3472 + $0x80] sm:$0xff]
        %v3490 = vld [vmem:[%s3472 + $0x88] sm:$0xff]
        %v3491 = vld [vmem:[%s3472 + $0x90] sm:$0xff]
        %v3492 = vld [vmem:[%s3472 + $0x98] sm:$0xff]
        %v3493 = vld [vmem:[%s3472 + $0xa0] sm:$0xff]
        %v3494 = vld [vmem:[%s3472 + $0xa8] sm:$0xff]
        %v3495 = vld [vmem:[%s3472 + $0xb0] sm:$0xff]
        %v3496 = vld [vmem:[%s3472 + $0xb8] sm:$0xff]
        %v3497 = vld [vmem:[%s3472 + $0xc0] sm:$0xff]
        %v3498 = vld [vmem:[%s3472 + $0xc8] sm:$0xff]
        %v3499 = vld [vmem:[%s3472 + $0xd0] sm:$0xff]
        %v3500 = vld [vmem:[%s3472 + $0xd8] sm:$0xff]
        %v3501 = vld [vmem:[%s3472 + $0xe0] sm:$0xff]
        %v3502 = vld [vmem:[%s3472 + $0xe8] sm:$0xff]
        %v3503 = vld [vmem:[%s3472 + $0xf0] sm:$0xff]
        %v3504 = vld [vmem:[%s3472 + $0xf8] sm:$0xff]
        %v3506 = vperm.slane %v3471, 0
        %v3507 = vperm.slane %v3471, 1
        %3510 = vmatpush.msra.mxu0 %v3488
        %3511 = vmatpush.msra.mxu0 %v3487
        %3512 = vmatpush.msra.mxu0 %v3486
        %3513 = vmatpush.msra.mxu0 %v3485
        %3514 = vmatpush.msra.mxu0 %v3484
        %3515 = vmatpush.msra.mxu0 %v3483
        %3516 = vmatpush.msra.mxu0 %v3482
        %3517 = vmatpush.msra.mxu0 %v3481
        %3518 = vmatpush.msra.mxu0 %v3480
        %3519 = vmatpush.msra.mxu0 %v3479
        %3520 = vmatpush.msra.mxu0 %v3478
        %3521 = vmatpush.msra.mxu0 %v3477
        %3522 = vmatpush.msra.mxu0 %v3476
        %3523 = vmatpush.msra.mxu0 %v3475
        %3524 = vmatpush.msra.mxu0 %v3474
        %3525 = vmatpush.msra.mxu0 %v3473
        %3526 = vmatmul.f32.gmra.mxu0 %v3506
        %v3527 = vpop.f32.mrf.mxu0
        %v3528 = vadd.f32 0.0, %v3527
        %3529 = vdwg.mxu0
        %3530 = vmatpush.msra.mxu0 %v3504
        %3531 = vmatpush.msra.mxu0 %v3503
        %3532 = vmatpush.msra.mxu0 %v3502
        %3533 = vmatpush.msra.mxu0 %v3501
        %3534 = vmatpush.msra.mxu0 %v3500
        %3535 = vmatpush.msra.mxu0 %v3499
        %3536 = vmatpush.msra.mxu0 %v3498
        %3537 = vmatpush.msra.mxu0 %v3497
        %3538 = vmatpush.msra.mxu0 %v3496
        %3539 = vmatpush.msra.mxu0 %v3495
        %3540 = vmatpush.msra.mxu0 %v3494
        %3541 = vmatpush.msra.mxu0 %v3493
        %3542 = vmatpush.msra.mxu0 %v3492
        %3543 = vmatpush.msra.mxu0 %v3491
        %3544 = vmatpush.msra.mxu0 %v3490
        %3545 = vmatpush.msra.mxu0 %v3489
        %3546 = vmatmul.f32.gmra.mxu0 %v3507
        %v3547 = vpop.f32.mrf.mxu0
        %v3548 = vadd.f32 %v3528, %v3547
        %3549 = vdwg.mxu0
        %v3550 = vadd.f32 %v3469, %v3548
        %s3551 = scalar_lea.vmem [#allocation5], 23
        %v3552 = vld [vmem:[%s3551] ss:$8 sm:$0x3]
        %s3553 = scalar_lea.vmem %s5, 3840
        %v3554 = vld [vmem:[%s3553] sm:$0xff]
        %v3555 = vld [vmem:[%s3553 + $0x8] sm:$0xff]
        %v3556 = vld [vmem:[%s3553 + $0x10] sm:$0xff]
        %v3557 = vld [vmem:[%s3553 + $0x18] sm:$0xff]
        %v3558 = vld [vmem:[%s3553 + $0x20] sm:$0xff]
        %v3559 = vld [vmem:[%s3553 + $0x28] sm:$0xff]
        %v3560 = vld [vmem:[%s3553 + $0x30] sm:$0xff]
        %v3561 = vld [vmem:[%s3553 + $0x38] sm:$0xff]
        %v3562 = vld [vmem:[%s3553 + $0x40] sm:$0xff]
        %v3563 = vld [vmem:[%s3553 + $0x48] sm:$0xff]
        %v3564 = vld [vmem:[%s3553 + $0x50] sm:$0xff]
        %v3565 = vld [vmem:[%s3553 + $0x58] sm:$0xff]
        %v3566 = vld [vmem:[%s3553 + $0x60] sm:$0xff]
        %v3567 = vld [vmem:[%s3553 + $0x68] sm:$0xff]
        %v3568 = vld [vmem:[%s3553 + $0x70] sm:$0xff]
        %v3569 = vld [vmem:[%s3553 + $0x78] sm:$0xff]
        %v3570 = vld [vmem:[%s3553 + $0x80] sm:$0xff]
        %v3571 = vld [vmem:[%s3553 + $0x88] sm:$0xff]
        %v3572 = vld [vmem:[%s3553 + $0x90] sm:$0xff]
        %v3573 = vld [vmem:[%s3553 + $0x98] sm:$0xff]
        %v3574 = vld [vmem:[%s3553 + $0xa0] sm:$0xff]
        %v3575 = vld [vmem:[%s3553 + $0xa8] sm:$0xff]
        %v3576 = vld [vmem:[%s3553 + $0xb0] sm:$0xff]
        %v3577 = vld [vmem:[%s3553 + $0xb8] sm:$0xff]
        %v3578 = vld [vmem:[%s3553 + $0xc0] sm:$0xff]
        %v3579 = vld [vmem:[%s3553 + $0xc8] sm:$0xff]
        %v3580 = vld [vmem:[%s3553 + $0xd0] sm:$0xff]
        %v3581 = vld [vmem:[%s3553 + $0xd8] sm:$0xff]
        %v3582 = vld [vmem:[%s3553 + $0xe0] sm:$0xff]
        %v3583 = vld [vmem:[%s3553 + $0xe8] sm:$0xff]
        %v3584 = vld [vmem:[%s3553 + $0xf0] sm:$0xff]
        %v3585 = vld [vmem:[%s3553 + $0xf8] sm:$0xff]
        %v3587 = vperm.slane %v3552, 0
        %v3588 = vperm.slane %v3552, 1
        %3591 = vmatpush.msra.mxu0 %v3569
        %3592 = vmatpush.msra.mxu0 %v3568
        %3593 = vmatpush.msra.mxu0 %v3567
        %3594 = vmatpush.msra.mxu0 %v3566
        %3595 = vmatpush.msra.mxu0 %v3565
        %3596 = vmatpush.msra.mxu0 %v3564
        %3597 = vmatpush.msra.mxu0 %v3563
        %3598 = vmatpush.msra.mxu0 %v3562
        %3599 = vmatpush.msra.mxu0 %v3561
        %3600 = vmatpush.msra.mxu0 %v3560
        %3601 = vmatpush.msra.mxu0 %v3559
        %3602 = vmatpush.msra.mxu0 %v3558
        %3603 = vmatpush.msra.mxu0 %v3557
        %3604 = vmatpush.msra.mxu0 %v3556
        %3605 = vmatpush.msra.mxu0 %v3555
        %3606 = vmatpush.msra.mxu0 %v3554
        %3607 = vmatmul.f32.gmra.mxu0 %v3587
        %v3608 = vpop.f32.mrf.mxu0
        %v3609 = vadd.f32 0.0, %v3608
        %3610 = vdwg.mxu0
        %3611 = vmatpush.msra.mxu0 %v3585
        %3612 = vmatpush.msra.mxu0 %v3584
        %3613 = vmatpush.msra.mxu0 %v3583
        %3614 = vmatpush.msra.mxu0 %v3582
        %3615 = vmatpush.msra.mxu0 %v3581
        %3616 = vmatpush.msra.mxu0 %v3580
        %3617 = vmatpush.msra.mxu0 %v3579
        %3618 = vmatpush.msra.mxu0 %v3578
        %3619 = vmatpush.msra.mxu0 %v3577
        %3620 = vmatpush.msra.mxu0 %v3576
        %3621 = vmatpush.msra.mxu0 %v3575
        %3622 = vmatpush.msra.mxu0 %v3574
        %3623 = vmatpush.msra.mxu0 %v3573
        %3624 = vmatpush.msra.mxu0 %v3572
        %3625 = vmatpush.msra.mxu0 %v3571
        %3626 = vmatpush.msra.mxu0 %v3570
        %3627 = vmatmul.f32.gmra.mxu0 %v3588
        %v3628 = vpop.f32.mrf.mxu0
        %v3629 = vadd.f32 %v3609, %v3628
        %3630 = vdwg.mxu0
        %v3631 = vadd.f32 %v3550, %v3629
        %v3632 = vld [vmem:[%s6] sm:$0x1]
        %v3633 = vadd.f32 %v3631, %v3632
        %v3634 = vmax.f32 %v3633, 0.0
        %v3635 = vld [vmem:[%s7] sm:$0xff]
        %v3636 = vld [vmem:[%s7 + $0x8] sm:$0xff]
        %v3637 = vld [vmem:[%s7 + $0x10] sm:$0xff]
        %v3638 = vld [vmem:[%s7 + $0x18] sm:$0xff]
        %v3639 = vld [vmem:[%s7 + $0x20] sm:$0xff]
        %v3640 = vld [vmem:[%s7 + $0x28] sm:$0xff]
        %v3641 = vld [vmem:[%s7 + $0x30] sm:$0xff]
        %v3642 = vld [vmem:[%s7 + $0x38] sm:$0xff]
        %v3643 = vld [vmem:[%s7 + $0x40] sm:$0xff]
        %v3644 = vld [vmem:[%s7 + $0x48] sm:$0xff]
        %v3645 = vld [vmem:[%s7 + $0x50] sm:$0xff]
        %v3646 = vld [vmem:[%s7 + $0x58] sm:$0xff]
        %v3647 = vld [vmem:[%s7 + $0x60] sm:$0xff]
        %v3648 = vld [vmem:[%s7 + $0x68] sm:$0xff]
        %v3649 = vld [vmem:[%s7 + $0x70] sm:$0xff]
        %v3650 = vld [vmem:[%s7 + $0x78] sm:$0xff]
        %v3651 = vld [vmem:[%s8] sm:$0x1]
        %3652 = vmatpush.msra.mxu0 %v3650
        %3653 = vmatpush.msra.mxu0 %v3649
        %3654 = vmatpush.msra.mxu0 %v3648
        %3655 = vmatpush.msra.mxu0 %v3647
        %3656 = vmatpush.msra.mxu0 %v3646
        %3657 = vmatpush.msra.mxu0 %v3645
        %3658 = vmatpush.msra.mxu0 %v3644
        %3659 = vmatpush.msra.mxu0 %v3643
        %3660 = vmatpush.msra.mxu0 %v3642
        %3661 = vmatpush.msra.mxu0 %v3641
        %3662 = vmatpush.msra.mxu0 %v3640
        %3663 = vmatpush.msra.mxu0 %v3639
        %3664 = vmatpush.msra.mxu0 %v3638
        %3665 = vmatpush.msra.mxu0 %v3637
        %3666 = vmatpush.msra.mxu0 %v3636
        %3667 = vmatpush.msra.mxu0 %v3635
        %3668 = vmatmul.f32.gmra.mxu0 %v3634
        %v3669 = vpop.f32.mrf.mxu0
        %v3670 = vadd.f32 %v3651, %v3669
        %3671 = vdwg.mxu0
        %v3672 = vmax.f32 %v3670, 0.0
        %v3673 = vld [vmem:[%s9] sm:$0xff]
        %v3674 = vld [vmem:[%s9 + $0x8] sm:$0xff]
        %v3675 = vld [vmem:[%s9 + $0x10] sm:$0xff]
        %v3676 = vld [vmem:[%s9 + $0x18] sm:$0xff]
        %v3677 = vld [vmem:[%s9 + $0x20] sm:$0xff]
        %v3678 = vld [vmem:[%s9 + $0x28] sm:$0xff]
        %v3679 = vld [vmem:[%s9 + $0x30] sm:$0xff]
        %v3680 = vld [vmem:[%s9 + $0x38] sm:$0xff]
        %v3681 = vld [vmem:[%s9 + $0x40] sm:$0xff]
        %v3682 = vld [vmem:[%s9 + $0x48] sm:$0xff]
        %v3683 = vld [vmem:[%s9 + $0x50] sm:$0xff]
        %v3684 = vld [vmem:[%s9 + $0x58] sm:$0xff]
        %v3685 = vld [vmem:[%s9 + $0x60] sm:$0xff]
        %v3686 = vld [vmem:[%s9 + $0x68] sm:$0xff]
        %v3687 = vld [vmem:[%s9 + $0x70] sm:$0xff]
        %v3688 = vld [vmem:[%s9 + $0x78] sm:$0xff]
        %v3689 = vld [vmem:[%s10] sm:$0x1]
        %3690 = vmatpush.msra.mxu0 %v3688
        %3691 = vmatpush.msra.mxu0 %v3687
        %3692 = vmatpush.msra.mxu0 %v3686
        %3693 = vmatpush.msra.mxu0 %v3685
        %3694 = vmatpush.msra.mxu0 %v3684
        %3695 = vmatpush.msra.mxu0 %v3683
        %3696 = vmatpush.msra.mxu0 %v3682
        %3697 = vmatpush.msra.mxu0 %v3681
        %3698 = vmatpush.msra.mxu0 %v3680
        %3699 = vmatpush.msra.mxu0 %v3679
        %3700 = vmatpush.msra.mxu0 %v3678
        %3701 = vmatpush.msra.mxu0 %v3677
        %3702 = vmatpush.msra.mxu0 %v3676
        %3703 = vmatpush.msra.mxu0 %v3675
        %3704 = vmatpush.msra.mxu0 %v3674
        %3705 = vmatpush.msra.mxu0 %v3673
        %3706 = vmatmul.f32.gmra.mxu0 %v3672
        %v3707 = vpop.f32.mrf.mxu0
        %v3708 = vadd.f32 %v3689, %v3707
        %3709 = vdwg.mxu0
        %3710 = vst [vmem:[%s378] sm:$0x1] %v3708
        %s3711 = sand.u32 %s269, 1
        %s3712 = scalar_lea.sflag [#allocation7], %s3711
        %s3713 = sand.u32 %s269, 1
        %s3714 = scalar_lea.vmem [#allocation6], %s3713
        // Predicated region
        $region65: #{lenet_forward.1} parent=63 // pred_check
          %p3715 = pneg %p279
        $region66: #{lenet_forward.1} parent=63 // pred_check_branch
          %3717 = sbr.rel (%p3715) target = $region68
        $region67: #{lenet_forward.1} parent=63 // pred_region
          %3719 = vsyncadd %s3712, 0
          %s3720 = scalar_lea.hbm %s11, %s25
          %s3722 = sshll.u32 %s3714, 4
          %s3723 = int_to_ptr.vmem [resolvable:$true] %s3722
          %s3724 = sshll.u32 %s3720, 4
          %s3725 = int_to_ptr.hbm [resolvable:$true] %s3724
          %3727 = dma.vmem_to_hbm [thread:$0]  %s3723, 16, %s3725, %s3712
        $region68: #{lenet_forward.1} parent=63 // pred_fallthru
          _
      $region64: #{lenet_forward.1} parent=5 // pred_fallthru
        _
      %p3728 = scmp.le.s32.totalorder 2, %s20
      // Predicated region
      $region69: #{lenet_forward.1} parent=5 // pred_check
        %p3729 = pneg %p3728
      $region70: #{lenet_forward.1} parent=5 // pred_check_branch
        %3731 = sbr.rel (%p3729) target = $region72
      $region71: #{lenet_forward.1} parent=5 // pred_region
        %s3732 = ssub.s32 %s20, 2
        // Predicated region
        $region73: #{lenet_forward.1} parent=71 // pred_check
          %p3733 = pneg %p285
        $region74: #{lenet_forward.1} parent=71 // pred_check_branch
          %3735 = sbr.rel (%p3733) target = $region76
        $region75: #{lenet_forward.1} parent=71 // pred_region
          %s3736 = sand.u32 %s270, 1
          %s3737 = scalar_lea.sflag [#allocation7], %s3736
          %s3738 = sand.u32 %s270, 1
          %s3739 = scalar_lea.vmem [#allocation6], %s3738
          %3741 = dma.done %s3737, 16
        $region76: #{lenet_forward.1} parent=71 // pred_fallthru
          _
      $region72: #{lenet_forward.1} parent=5 // pred_fallthru
        _
    $region6: #{lenet_forward.1} parent=1 // loop_footer
      %s24 = sadd.s32 1, %s20
    $region7: #{lenet_forward.1} parent=1 // loop_footer_branch
      %19 = sbr.rel target = $region3
    $region8: #{lenet_forward.1} parent=1 // loop_exit
      _
    %3742 = vsyncpa [#allocation7], 1
    %s3743 = scalar_lea.sflag [#allocation7], 1
    %3744 = vsyncpa %s3743, 1

</llo_original>
